<compile_context>
chip_gen: v7x
topology: tpu7x:2x2x1
jax: 0.10.0
libtpu: 0.0.40
codegen_flags: <defaults>
</compile_context>

<pallas_src>
import functools

import jax
import jax.numpy as jnp
from jax.experimental import pallas as pl
from jax.experimental.pallas import tpu as pltpu


def _gru_autoencoder_kernel(
    # ----- inputs (21 refs) -----
    x_ref,                                      # (T*B, D_in) time-major, flattened
    wi_er_ref, wi_ez_ref, wi_en_ref,            # encoder input weights per gate (D_in, H)
    bi_r_ref, bi_z_ref, bi_n_ref,               # encoder biases (r/z folded with hidden bias) (1, H)
    wh_er_ref, wh_ez_ref, wh_en_ref,            # encoder hidden weights per gate (H, H)
    bh_n_ref,                                   # encoder hidden n-gate bias (1, H)
    wd_r_ref, wd_z_ref, wd_in_ref, wd_hn_ref,   # decoder weights (r/z fused input+hidden) (H, H)
    bd_r_ref, bd_z_ref, bd_in_ref, bd_hn_ref,   # decoder biases (1, H)
    wz_ref, bz_ref,                             # output Linear (H, D_in), (1, D_in)
    # ----- outputs -----
    out_ref,                                    # (T*B, D_in)
    # ----- scratch -----
    hs_ref,                                     # (T*B, H) decoder hidden states
    *, hidden_size, time_step, batch,
):
    B, H, T = batch, hidden_size, time_step
    f32 = jnp.float32

    # Load recurrent weights once (hoisted out of the serial loops).
    wh_er = wh_er_ref[...]
    wh_ez = wh_ez_ref[...]
    wh_en = wh_en_ref[...]
    wd_r = wd_r_ref[...]
    wd_z = wd_z_ref[...]
    wd_in = wd_in_ref[...]
    wd_hn = wd_hn_ref[...]
    cdt = wh_er.dtype  # matmul-operand dtype (f32, or bf16 when enabled in wrapper)

    # Hoisted (B, H) bias broadcasts -- done ONCE, not per serial step.
    bh_n = jnp.broadcast_to(bh_n_ref[...], (B, H))
    bd_r = jnp.broadcast_to(bd_r_ref[...], (B, H))
    bd_z = jnp.broadcast_to(bd_z_ref[...], (B, H))
    bd_in = jnp.broadcast_to(bd_in_ref[...], (B, H))
    bd_hn = jnp.broadcast_to(bd_hn_ref[...], (B, H))

    # ---- hoisted encoder input projection: bulk matmuls over all T*B rows ----
    x_c = x_ref[...].astype(cdt)                               # (T*B, D_in)
    gi_r = jnp.dot(x_c, wi_er_ref[...], preferred_element_type=f32) + bi_r_ref[...]
    gi_z = jnp.dot(x_c, wi_ez_ref[...], preferred_element_type=f32) + bi_z_ref[...]
    gi_n = jnp.dot(x_c, wi_en_ref[...], preferred_element_type=f32) + bi_n_ref[...]

    # ---- encoder recurrence (statically unrolled; h kept in f32) ----
    h = jnp.full((B, H), 0.1, dtype=f32)
    for i in range(T):
        lo = i * B
        hc = h.astype(cdt)
        h_r = jnp.dot(hc, wh_er, preferred_element_type=f32)
        h_z = jnp.dot(hc, wh_ez, preferred_element_type=f32)
        h_n = jnp.dot(hc, wh_en, preferred_element_type=f32)
        r = jax.nn.sigmoid(gi_r[lo:lo + B, :] + h_r)
        z = jax.nn.sigmoid(gi_z[lo:lo + B, :] + h_z)
        n = jnp.tanh(gi_n[lo:lo + B, :] + r * (h_n + bh_n))
        h = (1.0 - z) * n + z * h

    # ---- decoder recurrence (input == hidden -> r/z weights pre-fused) ----
    for i in range(T):
        hc = h.astype(cdt)
        r = jax.nn.sigmoid(jnp.dot(hc, wd_r, preferred_element_type=f32) + bd_r)
        z = jax.nn.sigmoid(jnp.dot(hc, wd_z, preferred_element_type=f32) + bd_z)
        n = jnp.tanh(jnp.dot(hc, wd_in, preferred_element_type=f32) + bd_in
                     + r * (jnp.dot(hc, wd_hn, preferred_element_type=f32) + bd_hn))
        h = (1.0 - z) * n + z * h
        hs_ref[i * B:(i + 1) * B, :] = h          # static-slice store into scratch

    # ---- hoisted output Linear: one bulk matmul + one bulk store ----
    hs = hs_ref[...]                                            # (T*B, H)
    out = jnp.dot(hs.astype(cdt), wz_ref[...], preferred_element_type=f32) + bz_ref[...]
    out_ref[...] = out.astype(out_ref.dtype)


def _prepare_params(params, *, hidden_size, matmul_dtype=jnp.float32):
    """Split per-gate, fuse decoder r/z weights, fold biases (layout plumbing)."""
    H = hidden_size

    def split3(w):  # (D, 3H) or (1, 3H) -> three (D, H) / (1, H), order (r, z, n)
        return w[:, :H], w[:, H:2 * H], w[:, 2 * H:]

    wi_er, wi_ez, wi_en = split3(params["wi_e"])
    wh_er, wh_ez, wh_en = split3(params["wh_e"])
    bi_er, bi_ez, bi_en = split3(params["bi_e"])
    bh_er, bh_ez, bh_en = split3(params["bh_e"])

    wi_dr, wi_dz, wi_dn = split3(params["wi_d"])
    wh_dr, wh_dz, wh_dn = split3(params["wh_d"])
    bi_dr, bi_dz, bi_dn = split3(params["bi_d"])
    bh_dr, bh_dz, bh_dn = split3(params["bh_d"])

    c = lambda w: w.astype(matmul_dtype)
    return (
        # encoder: per-gate input weights; r/z biases folded with hidden biases
        c(wi_er), c(wi_ez), c(wi_en),
        bi_er + bh_er, bi_ez + bh_ez, bi_en,
        c(wh_er), c(wh_ez), c(wh_en),
        bh_en,
        # decoder: input == hidden -> fuse r/z weights & biases; n gate stays split
        c(wi_dr + wh_dr), c(wi_dz + wh_dz), c(wi_dn), c(wh_dn),
        bi_dr + bh_dr, bi_dz + bh_dz, bi_dn, bh_dn,
        # output Linear
        c(params["wz"]), params["bz"],
    )


def gru_autoencoder_forward(x, params, *, hidden_size, time_step,
                            use_bf16_matmul=False):
    """x: (B, T, D_in) float32 -> (B, T, D_in) float32."""
    B, T, D_in = x.shape
    assert T == time_step
    H = hidden_size

    # Time-major, flattened to 2-D so the kernel only touches lane-dense 2-D
    # tiles; timestep i occupies rows [i*B, (i+1)*B).
    x2d = jnp.transpose(x, (1, 0, 2)).reshape(T * B, D_in)

    matmul_dtype = jnp.bfloat16 if use_bf16_matmul else jnp.float32
    prepped = _prepare_params(params, hidden_size=H, matmul_dtype=matmul_dtype)
    inputs = (x2d,) + prepped

    kernel = functools.partial(
        _gru_autoencoder_kernel, hidden_size=H, time_step=T, batch=B)

    # TODO(synk): for B >> 4 on v7x add a "parallel" batch grid axis to use both
    # TensorCores; for much larger T/H tile x/out over T with a BlockSpec grid
    # instead of whole-array VMEM blocks (64 MiB physical VMEM on v7x).
    out2d = pl.pallas_call(
        kernel,
        out_shape=jax.ShapeDtypeStruct((T * B, D_in), jnp.float32),
        in_specs=[pl.BlockSpec(memory_space=pltpu.MemorySpace.VMEM)] * len(inputs),
        out_specs=pl.BlockSpec(memory_space=pltpu.MemorySpace.VMEM),
        scratch_shapes=[pltpu.VMEM((T * B, H), jnp.float32)],
    )(*inputs)

    return jnp.transpose(out2d.reshape(T, B, D_in), (1, 0, 2))


def init_params(key, encoder_input_size, decoder_input_size, hidden_size):
    """Deterministic init matching PyTorch GRUCell/Linear uniform(-1/sqrt(H), 1/sqrt(H)).
    Weights stored pre-transposed for `x @ W^T` -> `x @ W_t`; biases as (1, N)."""
    H = hidden_size
    k = 1.0 / jnp.sqrt(jnp.float32(H))
    keys = jax.random.split(key, 10)

    def u(kk, shape):
        return jax.random.uniform(kk, shape, jnp.float32, minval=-k, maxval=k)

    return {
        # encoder GRUCell(encoder_input_size, H)
        "wi_e": u(keys[0], (encoder_input_size, 3 * H)),   # = weight_ih.T
        "wh_e": u(keys[1], (H, 3 * H)),                    # = weight_hh.T
        "bi_e": u(keys[2], (1, 3 * H)),
        "bh_e": u(keys[3], (1, 3 * H)),
        # decoder GRUCell(decoder_input_size, H); decoder_input_size == H
        "wi_d": u(keys[4], (decoder_input_size, 3 * H)),
        "wh_d": u(keys[5], (H, 3 * H)),
        "bi_d": u(keys[6], (1, 3 * H)),
        "bh_d": u(keys[7], (1, 3 * H)),
        # z = Linear(H, encoder_input_size)
        "wz": u(keys[8], (H, encoder_input_size)),         # = weight.T
        "bz": u(keys[9], (1, encoder_input_size)),
    }


def reference_forward(x, params, *, hidden_size, time_step):
    """Pure-JAX reference mirroring the PyTorch module, for correctness check."""
    B = x.shape[0]
    H = hidden_size

    def step(x_t, h, wi, wh, bi, bh):
        gi = x_t @ wi + bi
        gh = h @ wh + bh
        i_r, i_z, i_n = gi[:, :H], gi[:, H:2 * H], gi[:, 2 * H:]
        h_r, h_z, h_n = gh[:, :H], gh[:, H:2 * H], gh[:, 2 * H:]
        r = jax.nn.sigmoid(i_r + h_r)
        z = jax.nn.sigmoid(i_z + h_z)
        n = jnp.tanh(i_n + r * h_n)
        return (1.0 - z) * n + z * h

    h = jnp.full((B, H), 0.1, dtype=jnp.float32)
    for i in range(time_step):
        h = step(x[:, i, :], h, params["wi_e"], params["wh_e"],
                 params["bi_e"], params["bh_e"])
    zs = []
    for _ in range(time_step):
        h = step(h, h, params["wi_d"], params["wh_d"],
                 params["bi_d"], params["bh_d"])
        zs.append(h @ params["wz"] + params["bz"])
    return jnp.stack(zs).transpose(1, 0, 2)


if __name__ == "__main__":
    # x: (batch, time_step, encoder_input_size);
    # decoder_input_size must equal hidden_size (decoder feeds hx to itself).
    batch = 4
    time_step = 8
    encoder_input_size = 16
    hidden_size = 32
    decoder_input_size = hidden_size

    key = jax.random.PRNGKey(0)
    kx, kp = jax.random.split(key)
    x = jax.random.normal(kx, (batch, time_step, encoder_input_size), jnp.float32)
    params = init_params(kp, encoder_input_size, decoder_input_size, hidden_size)

    out = gru_autoencoder_forward(x, params, hidden_size=hidden_size,
                                  time_step=time_step)
    out = jax.block_until_ready(out)

    ref = reference_forward(x, params, hidden_size=hidden_size,
                            time_step=time_step)
    assert out.shape == (batch, time_step, encoder_input_size)
    assert jnp.allclose(out, ref, atol=2e-5, rtol=2e-5), (
        float(jnp.max(jnp.abs(out - ref))))

    print("KERNEL_OK")
</pallas_src>

<mosaic_0001>
module attributes {stable_mosaic.version = 11 : i64} {
  func.func @_gru_autoencoder_kernel(%arg0: memref<32x16xf32, #tpu.memory_space<vmem>>, %arg1: memref<16x32xf32, #tpu.memory_space<vmem>>, %arg2: memref<16x32xf32, #tpu.memory_space<vmem>>, %arg3: memref<16x32xf32, #tpu.memory_space<vmem>>, %arg4: memref<1x32xf32, #tpu.memory_space<vmem>>, %arg5: memref<1x32xf32, #tpu.memory_space<vmem>>, %arg6: memref<1x32xf32, #tpu.memory_space<vmem>>, %arg7: memref<32x32xf32, #tpu.memory_space<vmem>>, %arg8: memref<32x32xf32, #tpu.memory_space<vmem>>, %arg9: memref<32x32xf32, #tpu.memory_space<vmem>>, %arg10: memref<1x32xf32, #tpu.memory_space<vmem>>, %arg11: memref<32x32xf32, #tpu.memory_space<vmem>>, %arg12: memref<32x32xf32, #tpu.memory_space<vmem>>, %arg13: memref<32x32xf32, #tpu.memory_space<vmem>>, %arg14: memref<32x32xf32, #tpu.memory_space<vmem>>, %arg15: memref<1x32xf32, #tpu.memory_space<vmem>>, %arg16: memref<1x32xf32, #tpu.memory_space<vmem>>, %arg17: memref<1x32xf32, #tpu.memory_space<vmem>>, %arg18: memref<1x32xf32, #tpu.memory_space<vmem>>, %arg19: memref<32x16xf32, #tpu.memory_space<vmem>>, %arg20: memref<1x16xf32, #tpu.memory_space<vmem>>, %arg21: memref<32x16xf32, #tpu.memory_space<vmem>>, %arg22: memref<32x32xf32, #tpu.memory_space<vmem>>) attributes {dimension_semantics = [], scalar_prefetch = 0 : i64, scratch_operands = 1 : i64, tpu.core_type = #tpu.core_type<tc>} {
    %c0 = arith.constant 0 : index
    %c0_0 = arith.constant 0 : index
    %0 = vector.load %arg7[%c0, %c0_0] : memref<32x32xf32, #tpu.memory_space<vmem>>, vector<32x32xf32>
    %c0_1 = arith.constant 0 : index
    %c0_2 = arith.constant 0 : index
    %1 = vector.load %arg8[%c0_1, %c0_2] : memref<32x32xf32, #tpu.memory_space<vmem>>, vector<32x32xf32>
    %c0_3 = arith.constant 0 : index
    %c0_4 = arith.constant 0 : index
    %2 = vector.load %arg9[%c0_3, %c0_4] : memref<32x32xf32, #tpu.memory_space<vmem>>, vector<32x32xf32>
    %c0_5 = arith.constant 0 : index
    %c0_6 = arith.constant 0 : index
    %3 = vector.load %arg11[%c0_5, %c0_6] : memref<32x32xf32, #tpu.memory_space<vmem>>, vector<32x32xf32>
    %c0_7 = arith.constant 0 : index
    %c0_8 = arith.constant 0 : index
    %4 = vector.load %arg12[%c0_7, %c0_8] : memref<32x32xf32, #tpu.memory_space<vmem>>, vector<32x32xf32>
    %c0_9 = arith.constant 0 : index
    %c0_10 = arith.constant 0 : index
    %5 = vector.load %arg13[%c0_9, %c0_10] : memref<32x32xf32, #tpu.memory_space<vmem>>, vector<32x32xf32>
    %c0_11 = arith.constant 0 : index
    %c0_12 = arith.constant 0 : index
    %6 = vector.load %arg14[%c0_11, %c0_12] : memref<32x32xf32, #tpu.memory_space<vmem>>, vector<32x32xf32>
    %c0_13 = arith.constant 0 : index
    %c0_14 = arith.constant 0 : index
    %7 = vector.load %arg10[%c0_13, %c0_14] : memref<1x32xf32, #tpu.memory_space<vmem>>, vector<1x32xf32>
    %8 = vector.shape_cast %7 : vector<1x32xf32> to vector<1x32xf32>
    %9 = vector.broadcast %8 : vector<1x32xf32> to vector<4x32xf32>
    %c0_15 = arith.constant 0 : index
    %c0_16 = arith.constant 0 : index
    %10 = vector.load %arg15[%c0_15, %c0_16] : memref<1x32xf32, #tpu.memory_space<vmem>>, vector<1x32xf32>
    %11 = vector.shape_cast %10 : vector<1x32xf32> to vector<1x32xf32>
    %12 = vector.broadcast %11 : vector<1x32xf32> to vector<4x32xf32>
    %c0_17 = arith.constant 0 : index
    %c0_18 = arith.constant 0 : index
    %13 = vector.load %arg16[%c0_17, %c0_18] : memref<1x32xf32, #tpu.memory_space<vmem>>, vector<1x32xf32>
    %14 = vector.shape_cast %13 : vector<1x32xf32> to vector<1x32xf32>
    %15 = vector.broadcast %14 : vector<1x32xf32> to vector<4x32xf32>
    %c0_19 = arith.constant 0 : index
    %c0_20 = arith.constant 0 : index
    %16 = vector.load %arg17[%c0_19, %c0_20] : memref<1x32xf32, #tpu.memory_space<vmem>>, vector<1x32xf32>
    %17 = vector.shape_cast %16 : vector<1x32xf32> to vector<1x32xf32>
    %18 = vector.broadcast %17 : vector<1x32xf32> to vector<4x32xf32>
    %c0_21 = arith.constant 0 : index
    %c0_22 = arith.constant 0 : index
    %19 = vector.load %arg18[%c0_21, %c0_22] : memref<1x32xf32, #tpu.memory_space<vmem>>, vector<1x32xf32>
    %20 = vector.shape_cast %19 : vector<1x32xf32> to vector<1x32xf32>
    %21 = vector.broadcast %20 : vector<1x32xf32> to vector<4x32xf32>
    %c0_23 = arith.constant 0 : index
    %c0_24 = arith.constant 0 : index
    %22 = vector.load %arg0[%c0_23, %c0_24] : memref<32x16xf32, #tpu.memory_space<vmem>>, vector<32x16xf32>
    %c0_25 = arith.constant 0 : index
    %c0_26 = arith.constant 0 : index
    %23 = vector.load %arg1[%c0_25, %c0_26] : memref<16x32xf32, #tpu.memory_space<vmem>>, vector<16x32xf32>
    %cst = arith.constant dense<0.000000e+00> : vector<32x32xf32>
    %24 = tpu.matmul %22, %23, %cst {dimension_numbers = #tpu.dot_dimension_numbers<[1], [0], [0], [1], [0, 0, 1, 1], [], []>} : vector<32x16xf32>, vector<16x32xf32>, vector<32x32xf32> -> vector<32x32xf32>
    %c0_27 = arith.constant 0 : index
    %c0_28 = arith.constant 0 : index
    %25 = vector.load %arg4[%c0_27, %c0_28] : memref<1x32xf32, #tpu.memory_space<vmem>>, vector<1x32xf32>
    %26 = vector.broadcast %25 : vector<1x32xf32> to vector<32x32xf32>
    %27 = arith.addf %24, %26 : vector<32x32xf32>
    %c0_29 = arith.constant 0 : index
    %c0_30 = arith.constant 0 : index
    %28 = vector.load %arg2[%c0_29, %c0_30] : memref<16x32xf32, #tpu.memory_space<vmem>>, vector<16x32xf32>
    %cst_31 = arith.constant dense<0.000000e+00> : vector<32x32xf32>
    %29 = tpu.matmul %22, %28, %cst_31 {dimension_numbers = #tpu.dot_dimension_numbers<[1], [0], [0], [1], [0, 0, 1, 1], [], []>} : vector<32x16xf32>, vector<16x32xf32>, vector<32x32xf32> -> vector<32x32xf32>
    %c0_32 = arith.constant 0 : index
    %c0_33 = arith.constant 0 : index
    %30 = vector.load %arg5[%c0_32, %c0_33] : memref<1x32xf32, #tpu.memory_space<vmem>>, vector<1x32xf32>
    %31 = vector.broadcast %30 : vector<1x32xf32> to vector<32x32xf32>
    %32 = arith.addf %29, %31 : vector<32x32xf32>
    %c0_34 = arith.constant 0 : index
    %c0_35 = arith.constant 0 : index
    %33 = vector.load %arg3[%c0_34, %c0_35] : memref<16x32xf32, #tpu.memory_space<vmem>>, vector<16x32xf32>
    %cst_36 = arith.constant dense<0.000000e+00> : vector<32x32xf32>
    %34 = tpu.matmul %22, %33, %cst_36 {dimension_numbers = #tpu.dot_dimension_numbers<[1], [0], [0], [1], [0, 0, 1, 1], [], []>} : vector<32x16xf32>, vector<16x32xf32>, vector<32x32xf32> -> vector<32x32xf32>
    %c0_37 = arith.constant 0 : index
    %c0_38 = arith.constant 0 : index
    %35 = vector.load %arg6[%c0_37, %c0_38] : memref<1x32xf32, #tpu.memory_space<vmem>>, vector<1x32xf32>
    %36 = vector.broadcast %35 : vector<1x32xf32> to vector<32x32xf32>
    %37 = arith.addf %34, %36 : vector<32x32xf32>
    %cst_39 = arith.constant 1.000000e-01 : f32
    %38 = vector.broadcast %cst_39 : f32 to vector<4x32xf32>
    %cst_40 = arith.constant dense<0.000000e+00> : vector<4x32xf32>
    %39 = tpu.matmul %38, %0, %cst_40 {dimension_numbers = #tpu.dot_dimension_numbers<[1], [0], [0], [1], [0, 0, 1, 1], [], []>} : vector<4x32xf32>, vector<32x32xf32>, vector<4x32xf32> -> vector<4x32xf32>
    %cst_41 = arith.constant dense<0.000000e+00> : vector<4x32xf32>
    %40 = tpu.matmul %38, %1, %cst_41 {dimension_numbers = #tpu.dot_dimension_numbers<[1], [0], [0], [1], [0, 0, 1, 1], [], []>} : vector<4x32xf32>, vector<32x32xf32>, vector<4x32xf32> -> vector<4x32xf32>
    %cst_42 = arith.constant dense<0.000000e+00> : vector<4x32xf32>
    %41 = tpu.matmul %38, %2, %cst_42 {dimension_numbers = #tpu.dot_dimension_numbers<[1], [0], [0], [1], [0, 0, 1, 1], [], []>} : vector<4x32xf32>, vector<32x32xf32>, vector<4x32xf32> -> vector<4x32xf32>
    %42 = vector.extract_strided_slice %27 {offsets = [0, 0], sizes = [4, 32], strides = [1, 1]} : vector<32x32xf32> to vector<4x32xf32>
    %43 = arith.addf %42, %39 : vector<4x32xf32>
    %44 = arith.negf %43 : vector<4x32xf32>
    %45 = math.exp %44 : vector<4x32xf32>
    %cst_43 = arith.constant 1.000000e+00 : f32
    %46 = vector.broadcast %cst_43 : f32 to vector<4x32xf32>
    %47 = arith.addf %46, %45 : vector<4x32xf32>
    %48 = arith.divf %46, %47 : vector<4x32xf32>
    %49 = vector.extract_strided_slice %32 {offsets = [0, 0], sizes = [4, 32], strides = [1, 1]} : vector<32x32xf32> to vector<4x32xf32>
    %50 = arith.addf %49, %40 : vector<4x32xf32>
    %51 = arith.negf %50 : vector<4x32xf32>
    %52 = math.exp %51 : vector<4x32xf32>
    %cst_44 = arith.constant 1.000000e+00 : f32
    %53 = vector.broadcast %cst_44 : f32 to vector<4x32xf32>
    %54 = arith.addf %53, %52 : vector<4x32xf32>
    %55 = arith.divf %53, %54 : vector<4x32xf32>
    %56 = vector.extract_strided_slice %37 {offsets = [0, 0], sizes = [4, 32], strides = [1, 1]} : vector<32x32xf32> to vector<4x32xf32>
    %57 = arith.addf %41, %9 : vector<4x32xf32>
    %58 = arith.mulf %48, %57 : vector<4x32xf32>
    %59 = arith.addf %56, %58 : vector<4x32xf32>
    %60 = math.tanh %59 : vector<4x32xf32>
    %cst_45 = arith.constant 1.000000e+00 : f32
    %61 = vector.broadcast %cst_45 : f32 to vector<4x32xf32>
    %62 = arith.subf %61, %55 : vector<4x32xf32>
    %63 = arith.mulf %62, %60 : vector<4x32xf32>
    %64 = arith.mulf %55, %38 : vector<4x32xf32>
    %65 = arith.addf %63, %64 : vector<4x32xf32>
    %cst_46 = arith.constant dense<0.000000e+00> : vector<4x32xf32>
    %66 = tpu.matmul %65, %0, %cst_46 {dimension_numbers = #tpu.dot_dimension_numbers<[1], [0], [0], [1], [0, 0, 1, 1], [], []>} : vector<4x32xf32>, vector<32x32xf32>, vector<4x32xf32> -> vector<4x32xf32>
    %cst_47 = arith.constant dense<0.000000e+00> : vector<4x32xf32>
    %67 = tpu.matmul %65, %1, %cst_47 {dimension_numbers = #tpu.dot_dimension_numbers<[1], [0], [0], [1], [0, 0, 1, 1], [], []>} : vector<4x32xf32>, vector<32x32xf32>, vector<4x32xf32> -> vector<4x32xf32>
    %cst_48 = arith.constant dense<0.000000e+00> : vector<4x32xf32>
    %68 = tpu.matmul %65, %2, %cst_48 {dimension_numbers = #tpu.dot_dimension_numbers<[1], [0], [0], [1], [0, 0, 1, 1], [], []>} : vector<4x32xf32>, vector<32x32xf32>, vector<4x32xf32> -> vector<4x32xf32>
    %69 = vector.extract_strided_slice %27 {offsets = [4, 0], sizes = [4, 32], strides = [1, 1]} : vector<32x32xf32> to vector<4x32xf32>
    %70 = arith.addf %69, %66 : vector<4x32xf32>
    %71 = arith.negf %70 : vector<4x32xf32>
    %72 = math.exp %71 : vector<4x32xf32>
    %cst_49 = arith.constant 1.000000e+00 : f32
    %73 = vector.broadcast %cst_49 : f32 to vector<4x32xf32>
    %74 = arith.addf %73, %72 : vector<4x32xf32>
    %75 = arith.divf %73, %74 : vector<4x32xf32>
    %76 = vector.extract_strided_slice %32 {offsets = [4, 0], sizes = [4, 32], strides = [1, 1]} : vector<32x32xf32> to vector<4x32xf32>
    %77 = arith.addf %76, %67 : vector<4x32xf32>
    %78 = arith.negf %77 : vector<4x32xf32>
    %79 = math.exp %78 : vector<4x32xf32>
    %cst_50 = arith.constant 1.000000e+00 : f32
    %80 = vector.broadcast %cst_50 : f32 to vector<4x32xf32>
    %81 = arith.addf %80, %79 : vector<4x32xf32>
    %82 = arith.divf %80, %81 : vector<4x32xf32>
    %83 = vector.extract_strided_slice %37 {offsets = [4, 0], sizes = [4, 32], strides = [1, 1]} : vector<32x32xf32> to vector<4x32xf32>
    %84 = arith.addf %68, %9 : vector<4x32xf32>
    %85 = arith.mulf %75, %84 : vector<4x32xf32>
    %86 = arith.addf %83, %85 : vector<4x32xf32>
    %87 = math.tanh %86 : vector<4x32xf32>
    %cst_51 = arith.constant 1.000000e+00 : f32
    %88 = vector.broadcast %cst_51 : f32 to vector<4x32xf32>
    %89 = arith.subf %88, %82 : vector<4x32xf32>
    %90 = arith.mulf %89, %87 : vector<4x32xf32>
    %91 = arith.mulf %82, %65 : vector<4x32xf32>
    %92 = arith.addf %90, %91 : vector<4x32xf32>
    %cst_52 = arith.constant dense<0.000000e+00> : vector<4x32xf32>
    %93 = tpu.matmul %92, %0, %cst_52 {dimension_numbers = #tpu.dot_dimension_numbers<[1], [0], [0], [1], [0, 0, 1, 1], [], []>} : vector<4x32xf32>, vector<32x32xf32>, vector<4x32xf32> -> vector<4x32xf32>
    %cst_53 = arith.constant dense<0.000000e+00> : vector<4x32xf32>
    %94 = tpu.matmul %92, %1, %cst_53 {dimension_numbers = #tpu.dot_dimension_numbers<[1], [0], [0], [1], [0, 0, 1, 1], [], []>} : vector<4x32xf32>, vector<32x32xf32>, vector<4x32xf32> -> vector<4x32xf32>
    %cst_54 = arith.constant dense<0.000000e+00> : vector<4x32xf32>
    %95 = tpu.matmul %92, %2, %cst_54 {dimension_numbers = #tpu.dot_dimension_numbers<[1], [0], [0], [1], [0, 0, 1, 1], [], []>} : vector<4x32xf32>, vector<32x32xf32>, vector<4x32xf32> -> vector<4x32xf32>
    %96 = vector.extract_strided_slice %27 {offsets = [8, 0], sizes = [4, 32], strides = [1, 1]} : vector<32x32xf32> to vector<4x32xf32>
    %97 = arith.addf %96, %93 : vector<4x32xf32>
    %98 = arith.negf %97 : vector<4x32xf32>
    %99 = math.exp %98 : vector<4x32xf32>
    %cst_55 = arith.constant 1.000000e+00 : f32
    %100 = vector.broadcast %cst_55 : f32 to vector<4x32xf32>
    %101 = arith.addf %100, %99 : vector<4x32xf32>
    %102 = arith.divf %100, %101 : vector<4x32xf32>
    %103 = vector.extract_strided_slice %32 {offsets = [8, 0], sizes = [4, 32], strides = [1, 1]} : vector<32x32xf32> to vector<4x32xf32>
    %104 = arith.addf %103, %94 : vector<4x32xf32>
    %105 = arith.negf %104 : vector<4x32xf32>
    %106 = math.exp %105 : vector<4x32xf32>
    %cst_56 = arith.constant 1.000000e+00 : f32
    %107 = vector.broadcast %cst_56 : f32 to vector<4x32xf32>
    %108 = arith.addf %107, %106 : vector<4x32xf32>
    %109 = arith.divf %107, %108 : vector<4x32xf32>
    %110 = vector.extract_strided_slice %37 {offsets = [8, 0], sizes = [4, 32], strides = [1, 1]} : vector<32x32xf32> to vector<4x32xf32>
    %111 = arith.addf %95, %9 : vector<4x32xf32>
    %112 = arith.mulf %102, %111 : vector<4x32xf32>
    %113 = arith.addf %110, %112 : vector<4x32xf32>
    %114 = math.tanh %113 : vector<4x32xf32>
    %cst_57 = arith.constant 1.000000e+00 : f32
    %115 = vector.broadcast %cst_57 : f32 to vector<4x32xf32>
    %116 = arith.subf %115, %109 : vector<4x32xf32>
    %117 = arith.mulf %116, %114 : vector<4x32xf32>
    %118 = arith.mulf %109, %92 : vector<4x32xf32>
    %119 = arith.addf %117, %118 : vector<4x32xf32>
    %cst_58 = arith.constant dense<0.000000e+00> : vector<4x32xf32>
    %120 = tpu.matmul %119, %0, %cst_58 {dimension_numbers = #tpu.dot_dimension_numbers<[1], [0], [0], [1], [0, 0, 1, 1], [], []>} : vector<4x32xf32>, vector<32x32xf32>, vector<4x32xf32> -> vector<4x32xf32>
    %cst_59 = arith.constant dense<0.000000e+00> : vector<4x32xf32>
    %121 = tpu.matmul %119, %1, %cst_59 {dimension_numbers = #tpu.dot_dimension_numbers<[1], [0], [0], [1], [0, 0, 1, 1], [], []>} : vector<4x32xf32>, vector<32x32xf32>, vector<4x32xf32> -> vector<4x32xf32>
    %cst_60 = arith.constant dense<0.000000e+00> : vector<4x32xf32>
    %122 = tpu.matmul %119, %2, %cst_60 {dimension_numbers = #tpu.dot_dimension_numbers<[1], [0], [0], [1], [0, 0, 1, 1], [], []>} : vector<4x32xf32>, vector<32x32xf32>, vector<4x32xf32> -> vector<4x32xf32>
    %123 = vector.extract_strided_slice %27 {offsets = [12, 0], sizes = [4, 32], strides = [1, 1]} : vector<32x32xf32> to vector<4x32xf32>
    %124 = arith.addf %123, %120 : vector<4x32xf32>
    %125 = arith.negf %124 : vector<4x32xf32>
    %126 = math.exp %125 : vector<4x32xf32>
    %cst_61 = arith.constant 1.000000e+00 : f32
    %127 = vector.broadcast %cst_61 : f32 to vector<4x32xf32>
    %128 = arith.addf %127, %126 : vector<4x32xf32>
    %129 = arith.divf %127, %128 : vector<4x32xf32>
    %130 = vector.extract_strided_slice %32 {offsets = [12, 0], sizes = [4, 32], strides = [1, 1]} : vector<32x32xf32> to vector<4x32xf32>
    %131 = arith.addf %130, %121 : vector<4x32xf32>
    %132 = arith.negf %131 : vector<4x32xf32>
    %133 = math.exp %132 : vector<4x32xf32>
    %cst_62 = arith.constant 1.000000e+00 : f32
    %134 = vector.broadcast %cst_62 : f32 to vector<4x32xf32>
    %135 = arith.addf %134, %133 : vector<4x32xf32>
    %136 = arith.divf %134, %135 : vector<4x32xf32>
    %137 = vector.extract_strided_slice %37 {offsets = [12, 0], sizes = [4, 32], strides = [1, 1]} : vector<32x32xf32> to vector<4x32xf32>
    %138 = arith.addf %122, %9 : vector<4x32xf32>
    %139 = arith.mulf %129, %138 : vector<4x32xf32>
    %140 = arith.addf %137, %139 : vector<4x32xf32>
    %141 = math.tanh %140 : vector<4x32xf32>
    %cst_63 = arith.constant 1.000000e+00 : f32
    %142 = vector.broadcast %cst_63 : f32 to vector<4x32xf32>
    %143 = arith.subf %142, %136 : vector<4x32xf32>
    %144 = arith.mulf %143, %141 : vector<4x32xf32>
    %145 = arith.mulf %136, %119 : vector<4x32xf32>
    %146 = arith.addf %144, %145 : vector<4x32xf32>
    %cst_64 = arith.constant dense<0.000000e+00> : vector<4x32xf32>
    %147 = tpu.matmul %146, %0, %cst_64 {dimension_numbers = #tpu.dot_dimension_numbers<[1], [0], [0], [1], [0, 0, 1, 1], [], []>} : vector<4x32xf32>, vector<32x32xf32>, vector<4x32xf32> -> vector<4x32xf32>
    %cst_65 = arith.constant dense<0.000000e+00> : vector<4x32xf32>
    %148 = tpu.matmul %146, %1, %cst_65 {dimension_numbers = #tpu.dot_dimension_numbers<[1], [0], [0], [1], [0, 0, 1, 1], [], []>} : vector<4x32xf32>, vector<32x32xf32>, vector<4x32xf32> -> vector<4x32xf32>
    %cst_66 = arith.constant dense<0.000000e+00> : vector<4x32xf32>
    %149 = tpu.matmul %146, %2, %cst_66 {dimension_numbers = #tpu.dot_dimension_numbers<[1], [0], [0], [1], [0, 0, 1, 1], [], []>} : vector<4x32xf32>, vector<32x32xf32>, vector<4x32xf32> -> vector<4x32xf32>
    %150 = vector.extract_strided_slice %27 {offsets = [16, 0], sizes = [4, 32], strides = [1, 1]} : vector<32x32xf32> to vector<4x32xf32>
    %151 = arith.addf %150, %147 : vector<4x32xf32>
    %152 = arith.negf %151 : vector<4x32xf32>
    %153 = math.exp %152 : vector<4x32xf32>
    %cst_67 = arith.constant 1.000000e+00 : f32
    %154 = vector.broadcast %cst_67 : f32 to vector<4x32xf32>
    %155 = arith.addf %154, %153 : vector<4x32xf32>
    %156 = arith.divf %154, %155 : vector<4x32xf32>
    %157 = vector.extract_strided_slice %32 {offsets = [16, 0], sizes = [4, 32], strides = [1, 1]} : vector<32x32xf32> to vector<4x32xf32>
    %158 = arith.addf %157, %148 : vector<4x32xf32>
    %159 = arith.negf %158 : vector<4x32xf32>
    %160 = math.exp %159 : vector<4x32xf32>
    %cst_68 = arith.constant 1.000000e+00 : f32
    %161 = vector.broadcast %cst_68 : f32 to vector<4x32xf32>
    %162 = arith.addf %161, %160 : vector<4x32xf32>
    %163 = arith.divf %161, %162 : vector<4x32xf32>
    %164 = vector.extract_strided_slice %37 {offsets = [16, 0], sizes = [4, 32], strides = [1, 1]} : vector<32x32xf32> to vector<4x32xf32>
    %165 = arith.addf %149, %9 : vector<4x32xf32>
    %166 = arith.mulf %156, %165 : vector<4x32xf32>
    %167 = arith.addf %164, %166 : vector<4x32xf32>
    %168 = math.tanh %167 : vector<4x32xf32>
    %cst_69 = arith.constant 1.000000e+00 : f32
    %169 = vector.broadcast %cst_69 : f32 to vector<4x32xf32>
    %170 = arith.subf %169, %163 : vector<4x32xf32>
    %171 = arith.mulf %170, %168 : vector<4x32xf32>
    %172 = arith.mulf %163, %146 : vector<4x32xf32>
    %173 = arith.addf %171, %172 : vector<4x32xf32>
    %cst_70 = arith.constant dense<0.000000e+00> : vector<4x32xf32>
    %174 = tpu.matmul %173, %0, %cst_70 {dimension_numbers = #tpu.dot_dimension_numbers<[1], [0], [0], [1], [0, 0, 1, 1], [], []>} : vector<4x32xf32>, vector<32x32xf32>, vector<4x32xf32> -> vector<4x32xf32>
    %cst_71 = arith.constant dense<0.000000e+00> : vector<4x32xf32>
    %175 = tpu.matmul %173, %1, %cst_71 {dimension_numbers = #tpu.dot_dimension_numbers<[1], [0], [0], [1], [0, 0, 1, 1], [], []>} : vector<4x32xf32>, vector<32x32xf32>, vector<4x32xf32> -> vector<4x32xf32>
    %cst_72 = arith.constant dense<0.000000e+00> : vector<4x32xf32>
    %176 = tpu.matmul %173, %2, %cst_72 {dimension_numbers = #tpu.dot_dimension_numbers<[1], [0], [0], [1], [0, 0, 1, 1], [], []>} : vector<4x32xf32>, vector<32x32xf32>, vector<4x32xf32> -> vector<4x32xf32>
    %177 = vector.extract_strided_slice %27 {offsets = [20, 0], sizes = [4, 32], strides = [1, 1]} : vector<32x32xf32> to vector<4x32xf32>
    %178 = arith.addf %177, %174 : vector<4x32xf32>
    %179 = arith.negf %178 : vector<4x32xf32>
    %180 = math.exp %179 : vector<4x32xf32>
    %cst_73 = arith.constant 1.000000e+00 : f32
    %181 = vector.broadcast %cst_73 : f32 to vector<4x32xf32>
    %182 = arith.addf %181, %180 : vector<4x32xf32>
    %183 = arith.divf %181, %182 : vector<4x32xf32>
    %184 = vector.extract_strided_slice %32 {offsets = [20, 0], sizes = [4, 32], strides = [1, 1]} : vector<32x32xf32> to vector<4x32xf32>
    %185 = arith.addf %184, %175 : vector<4x32xf32>
    %186 = arith.negf %185 : vector<4x32xf32>
    %187 = math.exp %186 : vector<4x32xf32>
    %cst_74 = arith.constant 1.000000e+00 : f32
    %188 = vector.broadcast %cst_74 : f32 to vector<4x32xf32>
    %189 = arith.addf %188, %187 : vector<4x32xf32>
    %190 = arith.divf %188, %189 : vector<4x32xf32>
    %191 = vector.extract_strided_slice %37 {offsets = [20, 0], sizes = [4, 32], strides = [1, 1]} : vector<32x32xf32> to vector<4x32xf32>
    %192 = arith.addf %176, %9 : vector<4x32xf32>
    %193 = arith.mulf %183, %192 : vector<4x32xf32>
    %194 = arith.addf %191, %193 : vector<4x32xf32>
    %195 = math.tanh %194 : vector<4x32xf32>
    %cst_75 = arith.constant 1.000000e+00 : f32
    %196 = vector.broadcast %cst_75 : f32 to vector<4x32xf32>
    %197 = arith.subf %196, %190 : vector<4x32xf32>
    %198 = arith.mulf %197, %195 : vector<4x32xf32>
    %199 = arith.mulf %190, %173 : vector<4x32xf32>
    %200 = arith.addf %198, %199 : vector<4x32xf32>
    %cst_76 = arith.constant dense<0.000000e+00> : vector<4x32xf32>
    %201 = tpu.matmul %200, %0, %cst_76 {dimension_numbers = #tpu.dot_dimension_numbers<[1], [0], [0], [1], [0, 0, 1, 1], [], []>} : vector<4x32xf32>, vector<32x32xf32>, vector<4x32xf32> -> vector<4x32xf32>
    %cst_77 = arith.constant dense<0.000000e+00> : vector<4x32xf32>
    %202 = tpu.matmul %200, %1, %cst_77 {dimension_numbers = #tpu.dot_dimension_numbers<[1], [0], [0], [1], [0, 0, 1, 1], [], []>} : vector<4x32xf32>, vector<32x32xf32>, vector<4x32xf32> -> vector<4x32xf32>
    %cst_78 = arith.constant dense<0.000000e+00> : vector<4x32xf32>
    %203 = tpu.matmul %200, %2, %cst_78 {dimension_numbers = #tpu.dot_dimension_numbers<[1], [0], [0], [1], [0, 0, 1, 1], [], []>} : vector<4x32xf32>, vector<32x32xf32>, vector<4x32xf32> -> vector<4x32xf32>
    %204 = vector.extract_strided_slice %27 {offsets = [24, 0], sizes = [4, 32], strides = [1, 1]} : vector<32x32xf32> to vector<4x32xf32>
    %205 = arith.addf %204, %201 : vector<4x32xf32>
    %206 = arith.negf %205 : vector<4x32xf32>
    %207 = math.exp %206 : vector<4x32xf32>
    %cst_79 = arith.constant 1.000000e+00 : f32
    %208 = vector.broadcast %cst_79 : f32 to vector<4x32xf32>
    %209 = arith.addf %208, %207 : vector<4x32xf32>
    %210 = arith.divf %208, %209 : vector<4x32xf32>
    %211 = vector.extract_strided_slice %32 {offsets = [24, 0], sizes = [4, 32], strides = [1, 1]} : vector<32x32xf32> to vector<4x32xf32>
    %212 = arith.addf %211, %202 : vector<4x32xf32>
    %213 = arith.negf %212 : vector<4x32xf32>
    %214 = math.exp %213 : vector<4x32xf32>
    %cst_80 = arith.constant 1.000000e+00 : f32
    %215 = vector.broadcast %cst_80 : f32 to vector<4x32xf32>
    %216 = arith.addf %215, %214 : vector<4x32xf32>
    %217 = arith.divf %215, %216 : vector<4x32xf32>
    %218 = vector.extract_strided_slice %37 {offsets = [24, 0], sizes = [4, 32], strides = [1, 1]} : vector<32x32xf32> to vector<4x32xf32>
    %219 = arith.addf %203, %9 : vector<4x32xf32>
    %220 = arith.mulf %210, %219 : vector<4x32xf32>
    %221 = arith.addf %218, %220 : vector<4x32xf32>
    %222 = math.tanh %221 : vector<4x32xf32>
    %cst_81 = arith.constant 1.000000e+00 : f32
    %223 = vector.broadcast %cst_81 : f32 to vector<4x32xf32>
    %224 = arith.subf %223, %217 : vector<4x32xf32>
    %225 = arith.mulf %224, %222 : vector<4x32xf32>
    %226 = arith.mulf %217, %200 : vector<4x32xf32>
    %227 = arith.addf %225, %226 : vector<4x32xf32>
    %cst_82 = arith.constant dense<0.000000e+00> : vector<4x32xf32>
    %228 = tpu.matmul %227, %0, %cst_82 {dimension_numbers = #tpu.dot_dimension_numbers<[1], [0], [0], [1], [0, 0, 1, 1], [], []>} : vector<4x32xf32>, vector<32x32xf32>, vector<4x32xf32> -> vector<4x32xf32>
    %cst_83 = arith.constant dense<0.000000e+00> : vector<4x32xf32>
    %229 = tpu.matmul %227, %1, %cst_83 {dimension_numbers = #tpu.dot_dimension_numbers<[1], [0], [0], [1], [0, 0, 1, 1], [], []>} : vector<4x32xf32>, vector<32x32xf32>, vector<4x32xf32> -> vector<4x32xf32>
    %cst_84 = arith.constant dense<0.000000e+00> : vector<4x32xf32>
    %230 = tpu.matmul %227, %2, %cst_84 {dimension_numbers = #tpu.dot_dimension_numbers<[1], [0], [0], [1], [0, 0, 1, 1], [], []>} : vector<4x32xf32>, vector<32x32xf32>, vector<4x32xf32> -> vector<4x32xf32>
    %231 = vector.extract_strided_slice %27 {offsets = [28, 0], sizes = [4, 32], strides = [1, 1]} : vector<32x32xf32> to vector<4x32xf32>
    %232 = arith.addf %231, %228 : vector<4x32xf32>
    %233 = arith.negf %232 : vector<4x32xf32>
    %234 = math.exp %233 : vector<4x32xf32>
    %cst_85 = arith.constant 1.000000e+00 : f32
    %235 = vector.broadcast %cst_85 : f32 to vector<4x32xf32>
    %236 = arith.addf %235, %234 : vector<4x32xf32>
    %237 = arith.divf %235, %236 : vector<4x32xf32>
    %238 = vector.extract_strided_slice %32 {offsets = [28, 0], sizes = [4, 32], strides = [1, 1]} : vector<32x32xf32> to vector<4x32xf32>
    %239 = arith.addf %238, %229 : vector<4x32xf32>
    %240 = arith.negf %239 : vector<4x32xf32>
    %241 = math.exp %240 : vector<4x32xf32>
    %cst_86 = arith.constant 1.000000e+00 : f32
    %242 = vector.broadcast %cst_86 : f32 to vector<4x32xf32>
    %243 = arith.addf %242, %241 : vector<4x32xf32>
    %244 = arith.divf %242, %243 : vector<4x32xf32>
    %245 = vector.extract_strided_slice %37 {offsets = [28, 0], sizes = [4, 32], strides = [1, 1]} : vector<32x32xf32> to vector<4x32xf32>
    %246 = arith.addf %230, %9 : vector<4x32xf32>
    %247 = arith.mulf %237, %246 : vector<4x32xf32>
    %248 = arith.addf %245, %247 : vector<4x32xf32>
    %249 = math.tanh %248 : vector<4x32xf32>
    %cst_87 = arith.constant 1.000000e+00 : f32
    %250 = vector.broadcast %cst_87 : f32 to vector<4x32xf32>
    %251 = arith.subf %250, %244 : vector<4x32xf32>
    %252 = arith.mulf %251, %249 : vector<4x32xf32>
    %253 = arith.mulf %244, %227 : vector<4x32xf32>
    %254 = arith.addf %252, %253 : vector<4x32xf32>
    %cst_88 = arith.constant dense<0.000000e+00> : vector<4x32xf32>
    %255 = tpu.matmul %254, %3, %cst_88 {dimension_numbers = #tpu.dot_dimension_numbers<[1], [0], [0], [1], [0, 0, 1, 1], [], []>} : vector<4x32xf32>, vector<32x32xf32>, vector<4x32xf32> -> vector<4x32xf32>
    %256 = arith.addf %255, %12 : vector<4x32xf32>
    %257 = arith.negf %256 : vector<4x32xf32>
    %258 = math.exp %257 : vector<4x32xf32>
    %cst_89 = arith.constant 1.000000e+00 : f32
    %259 = vector.broadcast %cst_89 : f32 to vector<4x32xf32>
    %260 = arith.addf %259, %258 : vector<4x32xf32>
    %261 = arith.divf %259, %260 : vector<4x32xf32>
    %cst_90 = arith.constant dense<0.000000e+00> : vector<4x32xf32>
    %262 = tpu.matmul %254, %4, %cst_90 {dimension_numbers = #tpu.dot_dimension_numbers<[1], [0], [0], [1], [0, 0, 1, 1], [], []>} : vector<4x32xf32>, vector<32x32xf32>, vector<4x32xf32> -> vector<4x32xf32>
    %263 = arith.addf %262, %15 : vector<4x32xf32>
    %264 = arith.negf %263 : vector<4x32xf32>
    %265 = math.exp %264 : vector<4x32xf32>
    %cst_91 = arith.constant 1.000000e+00 : f32
    %266 = vector.broadcast %cst_91 : f32 to vector<4x32xf32>
    %267 = arith.addf %266, %265 : vector<4x32xf32>
    %268 = arith.divf %266, %267 : vector<4x32xf32>
    %cst_92 = arith.constant dense<0.000000e+00> : vector<4x32xf32>
    %269 = tpu.matmul %254, %5, %cst_92 {dimension_numbers = #tpu.dot_dimension_numbers<[1], [0], [0], [1], [0, 0, 1, 1], [], []>} : vector<4x32xf32>, vector<32x32xf32>, vector<4x32xf32> -> vector<4x32xf32>
    %270 = arith.addf %269, %18 : vector<4x32xf32>
    %cst_93 = arith.constant dense<0.000000e+00> : vector<4x32xf32>
    %271 = tpu.matmul %254, %6, %cst_93 {dimension_numbers = #tpu.dot_dimension_numbers<[1], [0], [0], [1], [0, 0, 1, 1], [], []>} : vector<4x32xf32>, vector<32x32xf32>, vector<4x32xf32> -> vector<4x32xf32>
    %272 = arith.addf %271, %21 : vector<4x32xf32>
    %273 = arith.mulf %261, %272 : vector<4x32xf32>
    %274 = arith.addf %270, %273 : vector<4x32xf32>
    %275 = math.tanh %274 : vector<4x32xf32>
    %cst_94 = arith.constant 1.000000e+00 : f32
    %276 = vector.broadcast %cst_94 : f32 to vector<4x32xf32>
    %277 = arith.subf %276, %268 : vector<4x32xf32>
    %278 = arith.mulf %277, %275 : vector<4x32xf32>
    %279 = arith.mulf %268, %254 : vector<4x32xf32>
    %280 = arith.addf %278, %279 : vector<4x32xf32>
    %c0_95 = arith.constant 0 : index
    %c0_96 = arith.constant 0 : index
    %281 = vector.load %arg22[%c0_95, %c0_96] : memref<32x32xf32, #tpu.memory_space<vmem>>, vector<4x32xf32>
    tpu.vector_store %arg22[%c0_95, %c0_96], %280 {strides = array<i32>} : memref<32x32xf32, #tpu.memory_space<vmem>>, vector<4x32xf32>,
    %cst_97 = arith.constant dense<0.000000e+00> : vector<4x32xf32>
    %282 = tpu.matmul %280, %3, %cst_97 {dimension_numbers = #tpu.dot_dimension_numbers<[1], [0], [0], [1], [0, 0, 1, 1], [], []>} : vector<4x32xf32>, vector<32x32xf32>, vector<4x32xf32> -> vector<4x32xf32>
    %283 = arith.addf %282, %12 : vector<4x32xf32>
    %284 = arith.negf %283 : vector<4x32xf32>
    %285 = math.exp %284 : vector<4x32xf32>
    %cst_98 = arith.constant 1.000000e+00 : f32
    %286 = vector.broadcast %cst_98 : f32 to vector<4x32xf32>
    %287 = arith.addf %286, %285 : vector<4x32xf32>
    %288 = arith.divf %286, %287 : vector<4x32xf32>
    %cst_99 = arith.constant dense<0.000000e+00> : vector<4x32xf32>
    %289 = tpu.matmul %280, %4, %cst_99 {dimension_numbers = #tpu.dot_dimension_numbers<[1], [0], [0], [1], [0, 0, 1, 1], [], []>} : vector<4x32xf32>, vector<32x32xf32>, vector<4x32xf32> -> vector<4x32xf32>
    %290 = arith.addf %289, %15 : vector<4x32xf32>
    %291 = arith.negf %290 : vector<4x32xf32>
    %292 = math.exp %291 : vector<4x32xf32>
    %cst_100 = arith.constant 1.000000e+00 : f32
    %293 = vector.broadcast %cst_100 : f32 to vector<4x32xf32>
    %294 = arith.addf %293, %292 : vector<4x32xf32>
    %295 = arith.divf %293, %294 : vector<4x32xf32>
    %cst_101 = arith.constant dense<0.000000e+00> : vector<4x32xf32>
    %296 = tpu.matmul %280, %5, %cst_101 {dimension_numbers = #tpu.dot_dimension_numbers<[1], [0], [0], [1], [0, 0, 1, 1], [], []>} : vector<4x32xf32>, vector<32x32xf32>, vector<4x32xf32> -> vector<4x32xf32>
    %297 = arith.addf %296, %18 : vector<4x32xf32>
    %cst_102 = arith.constant dense<0.000000e+00> : vector<4x32xf32>
    %298 = tpu.matmul %280, %6, %cst_102 {dimension_numbers = #tpu.dot_dimension_numbers<[1], [0], [0], [1], [0, 0, 1, 1], [], []>} : vector<4x32xf32>, vector<32x32xf32>, vector<4x32xf32> -> vector<4x32xf32>
    %299 = arith.addf %298, %21 : vector<4x32xf32>
    %300 = arith.mulf %288, %299 : vector<4x32xf32>
    %301 = arith.addf %297, %300 : vector<4x32xf32>
    %302 = math.tanh %301 : vector<4x32xf32>
    %cst_103 = arith.constant 1.000000e+00 : f32
    %303 = vector.broadcast %cst_103 : f32 to vector<4x32xf32>
    %304 = arith.subf %303, %295 : vector<4x32xf32>
    %305 = arith.mulf %304, %302 : vector<4x32xf32>
    %306 = arith.mulf %295, %280 : vector<4x32xf32>
    %307 = arith.addf %305, %306 : vector<4x32xf32>
    %c4 = arith.constant 4 : index
    %c0_104 = arith.constant 0 : index
    %308 = vector.load %arg22[%c4, %c0_104] : memref<32x32xf32, #tpu.memory_space<vmem>>, vector<4x32xf32>
    tpu.vector_store %arg22[%c4, %c0_104], %307 {strides = array<i32>} : memref<32x32xf32, #tpu.memory_space<vmem>>, vector<4x32xf32>,
    %cst_105 = arith.constant dense<0.000000e+00> : vector<4x32xf32>
    %309 = tpu.matmul %307, %3, %cst_105 {dimension_numbers = #tpu.dot_dimension_numbers<[1], [0], [0], [1], [0, 0, 1, 1], [], []>} : vector<4x32xf32>, vector<32x32xf32>, vector<4x32xf32> -> vector<4x32xf32>
    %310 = arith.addf %309, %12 : vector<4x32xf32>
    %311 = arith.negf %310 : vector<4x32xf32>
    %312 = math.exp %311 : vector<4x32xf32>
    %cst_106 = arith.constant 1.000000e+00 : f32
    %313 = vector.broadcast %cst_106 : f32 to vector<4x32xf32>
    %314 = arith.addf %313, %312 : vector<4x32xf32>
    %315 = arith.divf %313, %314 : vector<4x32xf32>
    %cst_107 = arith.constant dense<0.000000e+00> : vector<4x32xf32>
    %316 = tpu.matmul %307, %4, %cst_107 {dimension_numbers = #tpu.dot_dimension_numbers<[1], [0], [0], [1], [0, 0, 1, 1], [], []>} : vector<4x32xf32>, vector<32x32xf32>, vector<4x32xf32> -> vector<4x32xf32>
    %317 = arith.addf %316, %15 : vector<4x32xf32>
    %318 = arith.negf %317 : vector<4x32xf32>
    %319 = math.exp %318 : vector<4x32xf32>
    %cst_108 = arith.constant 1.000000e+00 : f32
    %320 = vector.broadcast %cst_108 : f32 to vector<4x32xf32>
    %321 = arith.addf %320, %319 : vector<4x32xf32>
    %322 = arith.divf %320, %321 : vector<4x32xf32>
    %cst_109 = arith.constant dense<0.000000e+00> : vector<4x32xf32>
    %323 = tpu.matmul %307, %5, %cst_109 {dimension_numbers = #tpu.dot_dimension_numbers<[1], [0], [0], [1], [0, 0, 1, 1], [], []>} : vector<4x32xf32>, vector<32x32xf32>, vector<4x32xf32> -> vector<4x32xf32>
    %324 = arith.addf %323, %18 : vector<4x32xf32>
    %cst_110 = arith.constant dense<0.000000e+00> : vector<4x32xf32>
    %325 = tpu.matmul %307, %6, %cst_110 {dimension_numbers = #tpu.dot_dimension_numbers<[1], [0], [0], [1], [0, 0, 1, 1], [], []>} : vector<4x32xf32>, vector<32x32xf32>, vector<4x32xf32> -> vector<4x32xf32>
    %326 = arith.addf %325, %21 : vector<4x32xf32>
    %327 = arith.mulf %315, %326 : vector<4x32xf32>
    %328 = arith.addf %324, %327 : vector<4x32xf32>
    %329 = math.tanh %328 : vector<4x32xf32>
    %cst_111 = arith.constant 1.000000e+00 : f32
    %330 = vector.broadcast %cst_111 : f32 to vector<4x32xf32>
    %331 = arith.subf %330, %322 : vector<4x32xf32>
    %332 = arith.mulf %331, %329 : vector<4x32xf32>
    %333 = arith.mulf %322, %307 : vector<4x32xf32>
    %334 = arith.addf %332, %333 : vector<4x32xf32>
    %c8 = arith.constant 8 : index
    %c0_112 = arith.constant 0 : index
    %335 = vector.load %arg22[%c8, %c0_112] : memref<32x32xf32, #tpu.memory_space<vmem>>, vector<4x32xf32>
    tpu.vector_store %arg22[%c8, %c0_112], %334 {strides = array<i32>} : memref<32x32xf32, #tpu.memory_space<vmem>>, vector<4x32xf32>,
    %cst_113 = arith.constant dense<0.000000e+00> : vector<4x32xf32>
    %336 = tpu.matmul %334, %3, %cst_113 {dimension_numbers = #tpu.dot_dimension_numbers<[1], [0], [0], [1], [0, 0, 1, 1], [], []>} : vector<4x32xf32>, vector<32x32xf32>, vector<4x32xf32> -> vector<4x32xf32>
    %337 = arith.addf %336, %12 : vector<4x32xf32>
    %338 = arith.negf %337 : vector<4x32xf32>
    %339 = math.exp %338 : vector<4x32xf32>
    %cst_114 = arith.constant 1.000000e+00 : f32
    %340 = vector.broadcast %cst_114 : f32 to vector<4x32xf32>
    %341 = arith.addf %340, %339 : vector<4x32xf32>
    %342 = arith.divf %340, %341 : vector<4x32xf32>
    %cst_115 = arith.constant dense<0.000000e+00> : vector<4x32xf32>
    %343 = tpu.matmul %334, %4, %cst_115 {dimension_numbers = #tpu.dot_dimension_numbers<[1], [0], [0], [1], [0, 0, 1, 1], [], []>} : vector<4x32xf32>, vector<32x32xf32>, vector<4x32xf32> -> vector<4x32xf32>
    %344 = arith.addf %343, %15 : vector<4x32xf32>
    %345 = arith.negf %344 : vector<4x32xf32>
    %346 = math.exp %345 : vector<4x32xf32>
    %cst_116 = arith.constant 1.000000e+00 : f32
    %347 = vector.broadcast %cst_116 : f32 to vector<4x32xf32>
    %348 = arith.addf %347, %346 : vector<4x32xf32>
    %349 = arith.divf %347, %348 : vector<4x32xf32>
    %cst_117 = arith.constant dense<0.000000e+00> : vector<4x32xf32>
    %350 = tpu.matmul %334, %5, %cst_117 {dimension_numbers = #tpu.dot_dimension_numbers<[1], [0], [0], [1], [0, 0, 1, 1], [], []>} : vector<4x32xf32>, vector<32x32xf32>, vector<4x32xf32> -> vector<4x32xf32>
    %351 = arith.addf %350, %18 : vector<4x32xf32>
    %cst_118 = arith.constant dense<0.000000e+00> : vector<4x32xf32>
    %352 = tpu.matmul %334, %6, %cst_118 {dimension_numbers = #tpu.dot_dimension_numbers<[1], [0], [0], [1], [0, 0, 1, 1], [], []>} : vector<4x32xf32>, vector<32x32xf32>, vector<4x32xf32> -> vector<4x32xf32>
    %353 = arith.addf %352, %21 : vector<4x32xf32>
    %354 = arith.mulf %342, %353 : vector<4x32xf32>
    %355 = arith.addf %351, %354 : vector<4x32xf32>
    %356 = math.tanh %355 : vector<4x32xf32>
    %cst_119 = arith.constant 1.000000e+00 : f32
    %357 = vector.broadcast %cst_119 : f32 to vector<4x32xf32>
    %358 = arith.subf %357, %349 : vector<4x32xf32>
    %359 = arith.mulf %358, %356 : vector<4x32xf32>
    %360 = arith.mulf %349, %334 : vector<4x32xf32>
    %361 = arith.addf %359, %360 : vector<4x32xf32>
    %c12 = arith.constant 12 : index
    %c0_120 = arith.constant 0 : index
    %362 = vector.load %arg22[%c12, %c0_120] : memref<32x32xf32, #tpu.memory_space<vmem>>, vector<4x32xf32>
    tpu.vector_store %arg22[%c12, %c0_120], %361 {strides = array<i32>} : memref<32x32xf32, #tpu.memory_space<vmem>>, vector<4x32xf32>,
    %cst_121 = arith.constant dense<0.000000e+00> : vector<4x32xf32>
    %363 = tpu.matmul %361, %3, %cst_121 {dimension_numbers = #tpu.dot_dimension_numbers<[1], [0], [0], [1], [0, 0, 1, 1], [], []>} : vector<4x32xf32>, vector<32x32xf32>, vector<4x32xf32> -> vector<4x32xf32>
    %364 = arith.addf %363, %12 : vector<4x32xf32>
    %365 = arith.negf %364 : vector<4x32xf32>
    %366 = math.exp %365 : vector<4x32xf32>
    %cst_122 = arith.constant 1.000000e+00 : f32
    %367 = vector.broadcast %cst_122 : f32 to vector<4x32xf32>
    %368 = arith.addf %367, %366 : vector<4x32xf32>
    %369 = arith.divf %367, %368 : vector<4x32xf32>
    %cst_123 = arith.constant dense<0.000000e+00> : vector<4x32xf32>
    %370 = tpu.matmul %361, %4, %cst_123 {dimension_numbers = #tpu.dot_dimension_numbers<[1], [0], [0], [1], [0, 0, 1, 1], [], []>} : vector<4x32xf32>, vector<32x32xf32>, vector<4x32xf32> -> vector<4x32xf32>
    %371 = arith.addf %370, %15 : vector<4x32xf32>
    %372 = arith.negf %371 : vector<4x32xf32>
    %373 = math.exp %372 : vector<4x32xf32>
    %cst_124 = arith.constant 1.000000e+00 : f32
    %374 = vector.broadcast %cst_124 : f32 to vector<4x32xf32>
    %375 = arith.addf %374, %373 : vector<4x32xf32>
    %376 = arith.divf %374, %375 : vector<4x32xf32>
    %cst_125 = arith.constant dense<0.000000e+00> : vector<4x32xf32>
    %377 = tpu.matmul %361, %5, %cst_125 {dimension_numbers = #tpu.dot_dimension_numbers<[1], [0], [0], [1], [0, 0, 1, 1], [], []>} : vector<4x32xf32>, vector<32x32xf32>, vector<4x32xf32> -> vector<4x32xf32>
    %378 = arith.addf %377, %18 : vector<4x32xf32>
    %cst_126 = arith.constant dense<0.000000e+00> : vector<4x32xf32>
    %379 = tpu.matmul %361, %6, %cst_126 {dimension_numbers = #tpu.dot_dimension_numbers<[1], [0], [0], [1], [0, 0, 1, 1], [], []>} : vector<4x32xf32>, vector<32x32xf32>, vector<4x32xf32> -> vector<4x32xf32>
    %380 = arith.addf %379, %21 : vector<4x32xf32>
    %381 = arith.mulf %369, %380 : vector<4x32xf32>
    %382 = arith.addf %378, %381 : vector<4x32xf32>
    %383 = math.tanh %382 : vector<4x32xf32>
    %cst_127 = arith.constant 1.000000e+00 : f32
    %384 = vector.broadcast %cst_127 : f32 to vector<4x32xf32>
    %385 = arith.subf %384, %376 : vector<4x32xf32>
    %386 = arith.mulf %385, %383 : vector<4x32xf32>
    %387 = arith.mulf %376, %361 : vector<4x32xf32>
    %388 = arith.addf %386, %387 : vector<4x32xf32>
    %c16 = arith.constant 16 : index
    %c0_128 = arith.constant 0 : index
    %389 = vector.load %arg22[%c16, %c0_128] : memref<32x32xf32, #tpu.memory_space<vmem>>, vector<4x32xf32>
    tpu.vector_store %arg22[%c16, %c0_128], %388 {strides = array<i32>} : memref<32x32xf32, #tpu.memory_space<vmem>>, vector<4x32xf32>,
    %cst_129 = arith.constant dense<0.000000e+00> : vector<4x32xf32>
    %390 = tpu.matmul %388, %3, %cst_129 {dimension_numbers = #tpu.dot_dimension_numbers<[1], [0], [0], [1], [0, 0, 1, 1], [], []>} : vector<4x32xf32>, vector<32x32xf32>, vector<4x32xf32> -> vector<4x32xf32>
    %391 = arith.addf %390, %12 : vector<4x32xf32>
    %392 = arith.negf %391 : vector<4x32xf32>
    %393 = math.exp %392 : vector<4x32xf32>
    %cst_130 = arith.constant 1.000000e+00 : f32
    %394 = vector.broadcast %cst_130 : f32 to vector<4x32xf32>
    %395 = arith.addf %394, %393 : vector<4x32xf32>
    %396 = arith.divf %394, %395 : vector<4x32xf32>
    %cst_131 = arith.constant dense<0.000000e+00> : vector<4x32xf32>
    %397 = tpu.matmul %388, %4, %cst_131 {dimension_numbers = #tpu.dot_dimension_numbers<[1], [0], [0], [1], [0, 0, 1, 1], [], []>} : vector<4x32xf32>, vector<32x32xf32>, vector<4x32xf32> -> vector<4x32xf32>
    %398 = arith.addf %397, %15 : vector<4x32xf32>
    %399 = arith.negf %398 : vector<4x32xf32>
    %400 = math.exp %399 : vector<4x32xf32>
    %cst_132 = arith.constant 1.000000e+00 : f32
    %401 = vector.broadcast %cst_132 : f32 to vector<4x32xf32>
    %402 = arith.addf %401, %400 : vector<4x32xf32>
    %403 = arith.divf %401, %402 : vector<4x32xf32>
    %cst_133 = arith.constant dense<0.000000e+00> : vector<4x32xf32>
    %404 = tpu.matmul %388, %5, %cst_133 {dimension_numbers = #tpu.dot_dimension_numbers<[1], [0], [0], [1], [0, 0, 1, 1], [], []>} : vector<4x32xf32>, vector<32x32xf32>, vector<4x32xf32> -> vector<4x32xf32>
    %405 = arith.addf %404, %18 : vector<4x32xf32>
    %cst_134 = arith.constant dense<0.000000e+00> : vector<4x32xf32>
    %406 = tpu.matmul %388, %6, %cst_134 {dimension_numbers = #tpu.dot_dimension_numbers<[1], [0], [0], [1], [0, 0, 1, 1], [], []>} : vector<4x32xf32>, vector<32x32xf32>, vector<4x32xf32> -> vector<4x32xf32>
    %407 = arith.addf %406, %21 : vector<4x32xf32>
    %408 = arith.mulf %396, %407 : vector<4x32xf32>
    %409 = arith.addf %405, %408 : vector<4x32xf32>
    %410 = math.tanh %409 : vector<4x32xf32>
    %cst_135 = arith.constant 1.000000e+00 : f32
    %411 = vector.broadcast %cst_135 : f32 to vector<4x32xf32>
    %412 = arith.subf %411, %403 : vector<4x32xf32>
    %413 = arith.mulf %412, %410 : vector<4x32xf32>
    %414 = arith.mulf %403, %388 : vector<4x32xf32>
    %415 = arith.addf %413, %414 : vector<4x32xf32>
    %c20 = arith.constant 20 : index
    %c0_136 = arith.constant 0 : index
    %416 = vector.load %arg22[%c20, %c0_136] : memref<32x32xf32, #tpu.memory_space<vmem>>, vector<4x32xf32>
    tpu.vector_store %arg22[%c20, %c0_136], %415 {strides = array<i32>} : memref<32x32xf32, #tpu.memory_space<vmem>>, vector<4x32xf32>,
    %cst_137 = arith.constant dense<0.000000e+00> : vector<4x32xf32>
    %417 = tpu.matmul %415, %3, %cst_137 {dimension_numbers = #tpu.dot_dimension_numbers<[1], [0], [0], [1], [0, 0, 1, 1], [], []>} : vector<4x32xf32>, vector<32x32xf32>, vector<4x32xf32> -> vector<4x32xf32>
    %418 = arith.addf %417, %12 : vector<4x32xf32>
    %419 = arith.negf %418 : vector<4x32xf32>
    %420 = math.exp %419 : vector<4x32xf32>
    %cst_138 = arith.constant 1.000000e+00 : f32
    %421 = vector.broadcast %cst_138 : f32 to vector<4x32xf32>
    %422 = arith.addf %421, %420 : vector<4x32xf32>
    %423 = arith.divf %421, %422 : vector<4x32xf32>
    %cst_139 = arith.constant dense<0.000000e+00> : vector<4x32xf32>
    %424 = tpu.matmul %415, %4, %cst_139 {dimension_numbers = #tpu.dot_dimension_numbers<[1], [0], [0], [1], [0, 0, 1, 1], [], []>} : vector<4x32xf32>, vector<32x32xf32>, vector<4x32xf32> -> vector<4x32xf32>
    %425 = arith.addf %424, %15 : vector<4x32xf32>
    %426 = arith.negf %425 : vector<4x32xf32>
    %427 = math.exp %426 : vector<4x32xf32>
    %cst_140 = arith.constant 1.000000e+00 : f32
    %428 = vector.broadcast %cst_140 : f32 to vector<4x32xf32>
    %429 = arith.addf %428, %427 : vector<4x32xf32>
    %430 = arith.divf %428, %429 : vector<4x32xf32>
    %cst_141 = arith.constant dense<0.000000e+00> : vector<4x32xf32>
    %431 = tpu.matmul %415, %5, %cst_141 {dimension_numbers = #tpu.dot_dimension_numbers<[1], [0], [0], [1], [0, 0, 1, 1], [], []>} : vector<4x32xf32>, vector<32x32xf32>, vector<4x32xf32> -> vector<4x32xf32>
    %432 = arith.addf %431, %18 : vector<4x32xf32>
    %cst_142 = arith.constant dense<0.000000e+00> : vector<4x32xf32>
    %433 = tpu.matmul %415, %6, %cst_142 {dimension_numbers = #tpu.dot_dimension_numbers<[1], [0], [0], [1], [0, 0, 1, 1], [], []>} : vector<4x32xf32>, vector<32x32xf32>, vector<4x32xf32> -> vector<4x32xf32>
    %434 = arith.addf %433, %21 : vector<4x32xf32>
    %435 = arith.mulf %423, %434 : vector<4x32xf32>
    %436 = arith.addf %432, %435 : vector<4x32xf32>
    %437 = math.tanh %436 : vector<4x32xf32>
    %cst_143 = arith.constant 1.000000e+00 : f32
    %438 = vector.broadcast %cst_143 : f32 to vector<4x32xf32>
    %439 = arith.subf %438, %430 : vector<4x32xf32>
    %440 = arith.mulf %439, %437 : vector<4x32xf32>
    %441 = arith.mulf %430, %415 : vector<4x32xf32>
    %442 = arith.addf %440, %441 : vector<4x32xf32>
    %c24 = arith.constant 24 : index
    %c0_144 = arith.constant 0 : index
    %443 = vector.load %arg22[%c24, %c0_144] : memref<32x32xf32, #tpu.memory_space<vmem>>, vector<4x32xf32>
    tpu.vector_store %arg22[%c24, %c0_144], %442 {strides = array<i32>} : memref<32x32xf32, #tpu.memory_space<vmem>>, vector<4x32xf32>,
    %cst_145 = arith.constant dense<0.000000e+00> : vector<4x32xf32>
    %444 = tpu.matmul %442, %3, %cst_145 {dimension_numbers = #tpu.dot_dimension_numbers<[1], [0], [0], [1], [0, 0, 1, 1], [], []>} : vector<4x32xf32>, vector<32x32xf32>, vector<4x32xf32> -> vector<4x32xf32>
    %445 = arith.addf %444, %12 : vector<4x32xf32>
    %446 = arith.negf %445 : vector<4x32xf32>
    %447 = math.exp %446 : vector<4x32xf32>
    %cst_146 = arith.constant 1.000000e+00 : f32
    %448 = vector.broadcast %cst_146 : f32 to vector<4x32xf32>
    %449 = arith.addf %448, %447 : vector<4x32xf32>
    %450 = arith.divf %448, %449 : vector<4x32xf32>
    %cst_147 = arith.constant dense<0.000000e+00> : vector<4x32xf32>
    %451 = tpu.matmul %442, %4, %cst_147 {dimension_numbers = #tpu.dot_dimension_numbers<[1], [0], [0], [1], [0, 0, 1, 1], [], []>} : vector<4x32xf32>, vector<32x32xf32>, vector<4x32xf32> -> vector<4x32xf32>
    %452 = arith.addf %451, %15 : vector<4x32xf32>
    %453 = arith.negf %452 : vector<4x32xf32>
    %454 = math.exp %453 : vector<4x32xf32>
    %cst_148 = arith.constant 1.000000e+00 : f32
    %455 = vector.broadcast %cst_148 : f32 to vector<4x32xf32>
    %456 = arith.addf %455, %454 : vector<4x32xf32>
    %457 = arith.divf %455, %456 : vector<4x32xf32>
    %cst_149 = arith.constant dense<0.000000e+00> : vector<4x32xf32>
    %458 = tpu.matmul %442, %5, %cst_149 {dimension_numbers = #tpu.dot_dimension_numbers<[1], [0], [0], [1], [0, 0, 1, 1], [], []>} : vector<4x32xf32>, vector<32x32xf32>, vector<4x32xf32> -> vector<4x32xf32>
    %459 = arith.addf %458, %18 : vector<4x32xf32>
    %cst_150 = arith.constant dense<0.000000e+00> : vector<4x32xf32>
    %460 = tpu.matmul %442, %6, %cst_150 {dimension_numbers = #tpu.dot_dimension_numbers<[1], [0], [0], [1], [0, 0, 1, 1], [], []>} : vector<4x32xf32>, vector<32x32xf32>, vector<4x32xf32> -> vector<4x32xf32>
    %461 = arith.addf %460, %21 : vector<4x32xf32>
    %462 = arith.mulf %450, %461 : vector<4x32xf32>
    %463 = arith.addf %459, %462 : vector<4x32xf32>
    %464 = math.tanh %463 : vector<4x32xf32>
    %cst_151 = arith.constant 1.000000e+00 : f32
    %465 = vector.broadcast %cst_151 : f32 to vector<4x32xf32>
    %466 = arith.subf %465, %457 : vector<4x32xf32>
    %467 = arith.mulf %466, %464 : vector<4x32xf32>
    %468 = arith.mulf %457, %442 : vector<4x32xf32>
    %469 = arith.addf %467, %468 : vector<4x32xf32>
    %c28 = arith.constant 28 : index
    %c0_152 = arith.constant 0 : index
    %470 = vector.load %arg22[%c28, %c0_152] : memref<32x32xf32, #tpu.memory_space<vmem>>, vector<4x32xf32>
    tpu.vector_store %arg22[%c28, %c0_152], %469 {strides = array<i32>} : memref<32x32xf32, #tpu.memory_space<vmem>>, vector<4x32xf32>,
    %c0_153 = arith.constant 0 : index
    %c0_154 = arith.constant 0 : index
    %471 = vector.load %arg22[%c0_153, %c0_154] : memref<32x32xf32, #tpu.memory_space<vmem>>, vector<32x32xf32>
    %c0_155 = arith.constant 0 : index
    %c0_156 = arith.constant 0 : index
    %472 = vector.load %arg19[%c0_155, %c0_156] : memref<32x16xf32, #tpu.memory_space<vmem>>, vector<32x16xf32>
    %cst_157 = arith.constant dense<0.000000e+00> : vector<32x16xf32>
    %473 = tpu.matmul %471, %472, %cst_157 {dimension_numbers = #tpu.dot_dimension_numbers<[1], [0], [0], [1], [0, 0, 1, 1], [], []>} : vector<32x32xf32>, vector<32x16xf32>, vector<32x16xf32> -> vector<32x16xf32>
    %c0_158 = arith.constant 0 : index
    %c0_159 = arith.constant 0 : index
    %474 = vector.load %arg20[%c0_158, %c0_159] : memref<1x16xf32, #tpu.memory_space<vmem>>, vector<1x16xf32>
    %475 = vector.broadcast %474 : vector<1x16xf32> to vector<32x16xf32>
    %476 = arith.addf %473, %475 : vector<32x16xf32>
    %c0_160 = arith.constant 0 : index
    %c0_161 = arith.constant 0 : index
    %477 = vector.load %arg21[%c0_160, %c0_161] : memref<32x16xf32, #tpu.memory_space<vmem>>, vector<32x16xf32>
    tpu.vector_store %arg21[%c0_160, %c0_161], %476 {strides = array<i32>} : memref<32x16xf32, #tpu.memory_space<vmem>>, vector<32x16xf32>,
    return
  }
}

</mosaic_0001>

<llo_original>
// kernel: tpu_custom_call.1
$region0: #{tpu_custom_call.1}
  #allocation0 [shape = 'u32[]', space=smem, size = 0x4, offset = 0x4, fixed_abs, tag = 'smem constant byte address 0x4 - core index']
  #allocation1 [shape = 'u32[144,128]{1,0:T(1,128)}', space=vmem, size = 0x12000, scoped, tag = 'internal scratch']
  #allocation2 [shape = 'f32[32,32]{1,0:T(8,128)}', space=vmem, size = 0x4000, scoped, tag = 'scratch operand']
  %s0 = inlined_call_operand.vmem [shape: f32[32,16], index: 0, kind: input, shape index: {}]
  %s1 = inlined_call_operand.hbm [shape: f32[16,32], index: 1, kind: input, shape index: {}]
  %s2 = inlined_call_operand.hbm [shape: f32[16,32], index: 2, kind: input, shape index: {}]
  %s3 = inlined_call_operand.hbm [shape: f32[16,32], index: 3, kind: input, shape index: {}]
  %s4 = inlined_call_operand.vmem [shape: f32[1,32], index: 4, kind: input, shape index: {}]
  %s5 = inlined_call_operand.hbm [shape: f32[1,32], index: 5, kind: input, shape index: {}]
  %s6 = inlined_call_operand.hbm [shape: f32[1,32], index: 6, kind: input, shape index: {}]
  %s7 = inlined_call_operand.vmem [shape: f32[32,32], index: 7, kind: input, shape index: {}]
  %s8 = inlined_call_operand.vmem [shape: f32[32,32], index: 8, kind: input, shape index: {}]
  %s9 = inlined_call_operand.vmem [shape: f32[32,32], index: 9, kind: input, shape index: {}]
  %s10 = inlined_call_operand.hbm [shape: f32[1,32], index: 10, kind: input, shape index: {}]
  %s11 = inlined_call_operand.vmem [shape: f32[32,32], index: 11, kind: input, shape index: {}]
  %s12 = inlined_call_operand.hbm [shape: f32[32,32], index: 12, kind: input, shape index: {}]
  %s13 = inlined_call_operand.hbm [shape: f32[32,32], index: 13, kind: input, shape index: {}]
  %s14 = inlined_call_operand.hbm [shape: f32[32,32], index: 14, kind: input, shape index: {}]
  %s15 = inlined_call_operand.vmem [shape: f32[1,32], index: 15, kind: input, shape index: {}]
  %s16 = inlined_call_operand.vmem [shape: f32[1,32], index: 16, kind: input, shape index: {}]
  %s17 = inlined_call_operand.vmem [shape: f32[1,32], index: 17, kind: input, shape index: {}]
  %s18 = inlined_call_operand.vmem [shape: f32[1,32], index: 18, kind: input, shape index: {}]
  %s19 = inlined_call_operand.vmem [shape: f32[32,16], index: 19, kind: input, shape index: {}]
  %s20 = inlined_call_operand.vmem [shape: f32[1,16], index: 20, kind: input, shape index: {}]
  %s21 = inlined_call_operand.vmem [shape: f32[32,16], index: 21, kind: output, shape index: {}]
  %s22 = sld [smem:[#allocation0]]
  $region130: #{tpu_custom_call.1} parent=0
    _
  %s24 = ssub.s32 1, %s22
  %s25 = scalar_select 0, %s24, %s22
  $region1: #{tpu_custom_call.1} parent=0
    #allocation3 [shape = 'u8[8192]{0}', space=vmem, size = 0x2000, scoped, tag = 'input window, operand 1, single buffered']
    #allocation4 [shape = 's32[1]{0}', space=sflag, size = 0x4, scoped, tag = 'scoped memory for tpu_custom_call.1']
    #allocation5 [shape = 'u8[8192]{0}', space=vmem, size = 0x2000, scoped, tag = 'input window, operand 2, single buffered']
    #allocation6 [shape = 's32[1]{0}', space=sflag, size = 0x4, scoped, tag = 'scoped memory for tpu_custom_call.1']
    #allocation7 [shape = 'u8[8192]{0}', space=vmem, size = 0x2000, scoped, tag = 'input window, operand 3, single buffered']
    #allocation8 [shape = 'u8[512]{0}', space=vmem, size = 0x400, scoped, tag = 'input window, operand 5, single buffered']
    #allocation9 [shape = 's32[1]{0}', space=sflag, size = 0x4, scoped, tag = 'scoped memory for tpu_custom_call.1']
    #allocation10 [shape = 'u8[512]{0}', space=vmem, size = 0x400, scoped, tag = 'input window, operand 6, single buffered']
    #allocation11 [shape = 'u8[512]{0}', space=vmem, size = 0x400, scoped, tag = 'input window, operand 10, single buffered']
    #allocation12 [shape = 's32[1]{0}', space=sflag, size = 0x4, scoped, tag = 'scoped memory for tpu_custom_call.1']
    #allocation13 [shape = 'u8[16384]{0}', space=vmem, size = 0x4000, scoped, tag = 'input window, operand 12, single buffered']
    #allocation14 [shape = 'u8[16384]{0}', space=vmem, size = 0x4000, scoped, tag = 'input window, operand 13, single buffered']
    #allocation15 [shape = 's32[1]{0}', space=sflag, size = 0x4, scoped, tag = 'scoped memory for tpu_custom_call.1']
    #allocation16 [shape = 'u8[16384]{0}', space=vmem, size = 0x4000, scoped, tag = 'input window, operand 14, single buffered']
    %26 = vsyncpa [#allocation4], 0
    %27 = vsyncpa [#allocation6], 0
    %28 = vsyncpa [#allocation9], 0
    %29 = vsyncpa [#allocation12], 0
    %30 = vsyncpa [#allocation15], 0
    // Predicated region
    $region2: #{tpu_custom_call.1} parent=1 // pred_check
      _
    $region3: #{tpu_custom_call.1} parent=1 // pred_check_branch
      %32 = sbr.rel (0) target = $region5
    $region4: #{tpu_custom_call.1} parent=1 // pred_region
      _
    $region5: #{tpu_custom_call.1} parent=1 // pred_fallthru
      _
    // Predicated region
    $region6: #{tpu_custom_call.1} parent=1 // pred_check
      _
    $region7: #{tpu_custom_call.1} parent=1 // pred_check_branch
      %34 = sbr.rel (0) target = $region9
    $region8: #{tpu_custom_call.1} parent=1 // pred_region
      %s36 = ssub.s32 256, 256
      %37 = vsyncadd [#allocation4], %s36
      %s38 = sshll.u32 [#allocation3], 4
      %s39 = int_to_ptr.vmem [resolvable:$true] %s38
      %44 = dma.hbm_to_vmem [thread:$0]  %s1, 256, %s39, [#allocation4], 128, 128, 8
    $region9: #{tpu_custom_call.1} parent=1 // pred_fallthru
      _
    // Predicated region
    $region10: #{tpu_custom_call.1} parent=1 // pred_check
      _
    $region11: #{tpu_custom_call.1} parent=1 // pred_check_branch
      %46 = sbr.rel (0) target = $region13
    $region12: #{tpu_custom_call.1} parent=1 // pred_region
      %s48 = ssub.s32 256, 256
      %49 = vsyncadd [#allocation6], %s48
      %s50 = sshll.u32 [#allocation5], 4
      %s51 = int_to_ptr.vmem [resolvable:$true] %s50
      %56 = dma.hbm_to_vmem [thread:$0]  %s2, 256, %s51, [#allocation6], 128, 128, 8
    $region13: #{tpu_custom_call.1} parent=1 // pred_fallthru
      _
    // Predicated region
    $region14: #{tpu_custom_call.1} parent=1 // pred_check
      _
    $region15: #{tpu_custom_call.1} parent=1 // pred_check_branch
      %58 = sbr.rel (0) target = $region17
    $region16: #{tpu_custom_call.1} parent=1 // pred_region
      %s60 = ssub.s32 256, 256
      %61 = vsyncadd [#allocation6], %s60
      %s62 = sshll.u32 [#allocation7], 4
      %s63 = int_to_ptr.vmem [resolvable:$true] %s62
      %68 = dma.hbm_to_vmem [thread:$0]  %s3, 256, %s63, [#allocation6], 128, 128, 8
    $region17: #{tpu_custom_call.1} parent=1 // pred_fallthru
      _
    // Predicated region
    $region18: #{tpu_custom_call.1} parent=1 // pred_check
      _
    $region19: #{tpu_custom_call.1} parent=1 // pred_check_branch
      %70 = sbr.rel (0) target = $region21
    $region20: #{tpu_custom_call.1} parent=1 // pred_region
      _
    $region21: #{tpu_custom_call.1} parent=1 // pred_fallthru
      _
    // Predicated region
    $region22: #{tpu_custom_call.1} parent=1 // pred_check
      _
    $region23: #{tpu_custom_call.1} parent=1 // pred_check_branch
      %72 = sbr.rel (0) target = $region25
    $region24: #{tpu_custom_call.1} parent=1 // pred_region
      %s74 = ssub.s32 16, 16
      %75 = vsyncadd [#allocation9], %s74
      %s77 = sshll.u32 [#allocation8], 4
      %s78 = int_to_ptr.vmem [resolvable:$true] %s77
      %80 = dma.hbm_to_vmem [thread:$0]  %s5, 16, %s78, [#allocation9]
    $region25: #{tpu_custom_call.1} parent=1 // pred_fallthru
      _
    // Predicated region
    $region26: #{tpu_custom_call.1} parent=1 // pred_check
      _
    $region27: #{tpu_custom_call.1} parent=1 // pred_check_branch
      %82 = sbr.rel (0) target = $region29
    $region28: #{tpu_custom_call.1} parent=1 // pred_region
      %s84 = ssub.s32 16, 16
      %85 = vsyncadd [#allocation9], %s84
      %s87 = sshll.u32 [#allocation10], 4
      %s88 = int_to_ptr.vmem [resolvable:$true] %s87
      %90 = dma.hbm_to_vmem [thread:$0]  %s6, 16, %s88, [#allocation9]
    $region29: #{tpu_custom_call.1} parent=1 // pred_fallthru
      _
    // Predicated region
    $region30: #{tpu_custom_call.1} parent=1 // pred_check
      _
    $region31: #{tpu_custom_call.1} parent=1 // pred_check_branch
      %92 = sbr.rel (0) target = $region33
    $region32: #{tpu_custom_call.1} parent=1 // pred_region
      _
    $region33: #{tpu_custom_call.1} parent=1 // pred_fallthru
      _
    // Predicated region
    $region34: #{tpu_custom_call.1} parent=1 // pred_check
      _
    $region35: #{tpu_custom_call.1} parent=1 // pred_check_branch
      %94 = sbr.rel (0) target = $region37
    $region36: #{tpu_custom_call.1} parent=1 // pred_region
      _
    $region37: #{tpu_custom_call.1} parent=1 // pred_fallthru
      _
    // Predicated region
    $region38: #{tpu_custom_call.1} parent=1 // pred_check
      _
    $region39: #{tpu_custom_call.1} parent=1 // pred_check_branch
      %96 = sbr.rel (0) target = $region41
    $region40: #{tpu_custom_call.1} parent=1 // pred_region
      _
    $region41: #{tpu_custom_call.1} parent=1 // pred_fallthru
      _
    // Predicated region
    $region42: #{tpu_custom_call.1} parent=1 // pred_check
      _
    $region43: #{tpu_custom_call.1} parent=1 // pred_check_branch
      %98 = sbr.rel (0) target = $region45
    $region44: #{tpu_custom_call.1} parent=1 // pred_region
      %s100 = ssub.s32 16, 16
      %101 = vsyncadd [#allocation12], %s100
      %s103 = sshll.u32 [#allocation11], 4
      %s104 = int_to_ptr.vmem [resolvable:$true] %s103
      %106 = dma.hbm_to_vmem [thread:$0]  %s10, 16, %s104, [#allocation12]
    $region45: #{tpu_custom_call.1} parent=1 // pred_fallthru
      _
    // Predicated region
    $region46: #{tpu_custom_call.1} parent=1 // pred_check
      _
    $region47: #{tpu_custom_call.1} parent=1 // pred_check_branch
      %108 = sbr.rel (0) target = $region49
    $region48: #{tpu_custom_call.1} parent=1 // pred_region
      _
    $region49: #{tpu_custom_call.1} parent=1 // pred_fallthru
      _
    // Predicated region
    $region50: #{tpu_custom_call.1} parent=1 // pred_check
      _
    $region51: #{tpu_custom_call.1} parent=1 // pred_check_branch
      %110 = sbr.rel (0) target = $region53
    $region52: #{tpu_custom_call.1} parent=1 // pred_region
      %s112 = ssub.s32 512, 512
      %113 = vsyncadd [#allocation12], %s112
      %s114 = sshll.u32 [#allocation13], 4
      %s115 = int_to_ptr.vmem [resolvable:$true] %s114
      %120 = dma.hbm_to_vmem [thread:$0]  %s12, 512, %s115, [#allocation12], 128, 128, 8
    $region53: #{tpu_custom_call.1} parent=1 // pred_fallthru
      _
    // Predicated region
    $region54: #{tpu_custom_call.1} parent=1 // pred_check
      _
    $region55: #{tpu_custom_call.1} parent=1 // pred_check_branch
      %122 = sbr.rel (0) target = $region57
    $region56: #{tpu_custom_call.1} parent=1 // pred_region
      %s124 = ssub.s32 512, 512
      %125 = vsyncadd [#allocation15], %s124
      %s126 = sshll.u32 [#allocation14], 4
      %s127 = int_to_ptr.vmem [resolvable:$true] %s126
      %132 = dma.hbm_to_vmem [thread:$0]  %s13, 512, %s127, [#allocation15], 128, 128, 8
    $region57: #{tpu_custom_call.1} parent=1 // pred_fallthru
      _
    // Predicated region
    $region58: #{tpu_custom_call.1} parent=1 // pred_check
      _
    $region59: #{tpu_custom_call.1} parent=1 // pred_check_branch
      %134 = sbr.rel (0) target = $region61
    $region60: #{tpu_custom_call.1} parent=1 // pred_region
      %s136 = ssub.s32 512, 512
      %137 = vsyncadd [#allocation15], %s136
      %s138 = sshll.u32 [#allocation16], 4
      %s139 = int_to_ptr.vmem [resolvable:$true] %s138
      %144 = dma.hbm_to_vmem [thread:$0]  %s14, 512, %s139, [#allocation15], 128, 128, 8
    $region61: #{tpu_custom_call.1} parent=1 // pred_fallthru
      _
    // Predicated region
    $region62: #{tpu_custom_call.1} parent=1 // pred_check
      _
    $region63: #{tpu_custom_call.1} parent=1 // pred_check_branch
      %146 = sbr.rel (0) target = $region65
    $region64: #{tpu_custom_call.1} parent=1 // pred_region
      _
    $region65: #{tpu_custom_call.1} parent=1 // pred_fallthru
      _
    // Predicated region
    $region66: #{tpu_custom_call.1} parent=1 // pred_check
      _
    $region67: #{tpu_custom_call.1} parent=1 // pred_check_branch
      %148 = sbr.rel (0) target = $region69
    $region68: #{tpu_custom_call.1} parent=1 // pred_region
      _
    $region69: #{tpu_custom_call.1} parent=1 // pred_fallthru
      _
    // Predicated region
    $region70: #{tpu_custom_call.1} parent=1 // pred_check
      _
    $region71: #{tpu_custom_call.1} parent=1 // pred_check_branch
      %150 = sbr.rel (0) target = $region73
    $region72: #{tpu_custom_call.1} parent=1 // pred_region
      _
    $region73: #{tpu_custom_call.1} parent=1 // pred_fallthru
      _
    // Predicated region
    $region74: #{tpu_custom_call.1} parent=1 // pred_check
      _
    $region75: #{tpu_custom_call.1} parent=1 // pred_check_branch
      %152 = sbr.rel (0) target = $region77
    $region76: #{tpu_custom_call.1} parent=1 // pred_region
      _
    $region77: #{tpu_custom_call.1} parent=1 // pred_fallthru
      _
    // Predicated region
    $region78: #{tpu_custom_call.1} parent=1 // pred_check
      _
    $region79: #{tpu_custom_call.1} parent=1 // pred_check_branch
      %154 = sbr.rel (0) target = $region81
    $region80: #{tpu_custom_call.1} parent=1 // pred_region
      _
    $region81: #{tpu_custom_call.1} parent=1 // pred_fallthru
      _
    // Predicated region
    $region82: #{tpu_custom_call.1} parent=1 // pred_check
      _
    $region83: #{tpu_custom_call.1} parent=1 // pred_check_branch
      %156 = sbr.rel (0) target = $region85
    $region84: #{tpu_custom_call.1} parent=1 // pred_region
      _
    $region85: #{tpu_custom_call.1} parent=1 // pred_fallthru
      _
    // Predicated region
    $region86: #{tpu_custom_call.1} parent=1 // pred_check
      _
    $region87: #{tpu_custom_call.1} parent=1 // pred_check_branch
      %158 = sbr.rel (0) target = $region89
    $region88: #{tpu_custom_call.1} parent=1 // pred_region
      %159 = dma.done [#allocation4], 256
    $region89: #{tpu_custom_call.1} parent=1 // pred_fallthru
      _
    // Predicated region
    $region90: #{tpu_custom_call.1} parent=1 // pred_check
      _
    $region91: #{tpu_custom_call.1} parent=1 // pred_check_branch
      %161 = sbr.rel (0) target = $region93
    $region92: #{tpu_custom_call.1} parent=1 // pred_region
      %162 = dma.done [#allocation6], 256
    $region93: #{tpu_custom_call.1} parent=1 // pred_fallthru
      _
    // Predicated region
    $region94: #{tpu_custom_call.1} parent=1 // pred_check
      _
    $region95: #{tpu_custom_call.1} parent=1 // pred_check_branch
      %164 = sbr.rel (0) target = $region97
    $region96: #{tpu_custom_call.1} parent=1 // pred_region
      %165 = dma.done [#allocation6], 256
    $region97: #{tpu_custom_call.1} parent=1 // pred_fallthru
      _
    // Predicated region
    $region98: #{tpu_custom_call.1} parent=1 // pred_check
      _
    $region99: #{tpu_custom_call.1} parent=1 // pred_check_branch
      %167 = sbr.rel (0) target = $region101
    $region100: #{tpu_custom_call.1} parent=1 // pred_region
      %168 = dma.done [#allocation9], 16
    $region101: #{tpu_custom_call.1} parent=1 // pred_fallthru
      _
    // Predicated region
    $region102: #{tpu_custom_call.1} parent=1 // pred_check
      _
    $region103: #{tpu_custom_call.1} parent=1 // pred_check_branch
      %170 = sbr.rel (0) target = $region105
    $region104: #{tpu_custom_call.1} parent=1 // pred_region
      %171 = dma.done [#allocation9], 16
    $region105: #{tpu_custom_call.1} parent=1 // pred_fallthru
      _
    // Predicated region
    $region106: #{tpu_custom_call.1} parent=1 // pred_check
      _
    $region107: #{tpu_custom_call.1} parent=1 // pred_check_branch
      %173 = sbr.rel (0) target = $region109
    $region108: #{tpu_custom_call.1} parent=1 // pred_region
      %174 = dma.done [#allocation12], 16
    $region109: #{tpu_custom_call.1} parent=1 // pred_fallthru
      _
    // Predicated region
    $region110: #{tpu_custom_call.1} parent=1 // pred_check
      _
    $region111: #{tpu_custom_call.1} parent=1 // pred_check_branch
      %176 = sbr.rel (0) target = $region113
    $region112: #{tpu_custom_call.1} parent=1 // pred_region
      %177 = dma.done [#allocation12], 512
    $region113: #{tpu_custom_call.1} parent=1 // pred_fallthru
      _
    // Predicated region
    $region114: #{tpu_custom_call.1} parent=1 // pred_check
      _
    $region115: #{tpu_custom_call.1} parent=1 // pred_check_branch
      %179 = sbr.rel (0) target = $region117
    $region116: #{tpu_custom_call.1} parent=1 // pred_region
      %180 = dma.done [#allocation15], 512
    $region117: #{tpu_custom_call.1} parent=1 // pred_fallthru
      _
    // Predicated region
    $region118: #{tpu_custom_call.1} parent=1 // pred_check
      _
    $region119: #{tpu_custom_call.1} parent=1 // pred_check_branch
      %182 = sbr.rel (0) target = $region121
    $region120: #{tpu_custom_call.1} parent=1 // pred_region
      %183 = dma.done [#allocation15], 512
    $region121: #{tpu_custom_call.1} parent=1 // pred_fallthru
      _
    %v184 = vld [vmem:[%s7] sm:$0xff]
    %v185 = vld [vmem:[%s7 + $0x8] sm:$0xff]
    %v186 = vld [vmem:[%s7 + $0x10] sm:$0xff]
    %v187 = vld [vmem:[%s7 + $0x18] sm:$0xff]
    %v188 = vld [vmem:[%s8] sm:$0xff]
    %v189 = vld [vmem:[%s8 + $0x8] sm:$0xff]
    %v190 = vld [vmem:[%s8 + $0x10] sm:$0xff]
    %v191 = vld [vmem:[%s8 + $0x18] sm:$0xff]
    %v192 = vld [vmem:[%s9] sm:$0xff]
    %v193 = vld [vmem:[%s9 + $0x8] sm:$0xff]
    %v194 = vld [vmem:[%s9 + $0x10] sm:$0xff]
    %v195 = vld [vmem:[%s9 + $0x18] sm:$0xff]
    %v196 = vld [vmem:[%s11] sm:$0xff]
    %v197 = vld [vmem:[%s11 + $0x8] sm:$0xff]
    %v198 = vld [vmem:[%s11 + $0x10] sm:$0xff]
    %v199 = vld [vmem:[%s11 + $0x18] sm:$0xff]
    %v200 = vld [vmem:[#allocation13] sm:$0xff]
    %v201 = vld [vmem:[#allocation13 + $0x8] sm:$0xff]
    %v202 = vld [vmem:[#allocation13 + $0x10] sm:$0xff]
    %v203 = vld [vmem:[#allocation13 + $0x18] sm:$0xff]
    %v204 = vld [vmem:[#allocation14] sm:$0xff]
    %v205 = vld [vmem:[#allocation14 + $0x8] sm:$0xff]
    %v206 = vld [vmem:[#allocation14 + $0x10] sm:$0xff]
    %v207 = vld [vmem:[#allocation14 + $0x18] sm:$0xff]
    %v208 = vld [vmem:[#allocation16] sm:$0xff]
    %v209 = vld [vmem:[#allocation16 + $0x8] sm:$0xff]
    %v210 = vld [vmem:[#allocation16 + $0x10] sm:$0xff]
    %v211 = vld [vmem:[#allocation16 + $0x18] sm:$0xff]
    %v212 = vld [vmem:[#allocation11] sm:$0x1]
    %v214 = vlaneseq
    %v215 = vshrl.u32 %v214, 7
    %v216 = vsub.s32 0, %v215
    %v217 = vrot.slane %v212, %v216
    %v219 = vld [vmem:[%s15] sm:$0x1]
    %v221 = vlaneseq
    %v222 = vshrl.u32 %v221, 7
    %v223 = vsub.s32 0, %v222
    %v224 = vrot.slane %v219, %v223
    %v226 = vld [vmem:[%s16] sm:$0x1]
    %v228 = vlaneseq
    %v229 = vshrl.u32 %v228, 7
    %v230 = vsub.s32 0, %v229
    %v231 = vrot.slane %v226, %v230
    %v233 = vld [vmem:[%s17] sm:$0x1]
    %v235 = vlaneseq
    %v236 = vshrl.u32 %v235, 7
    %v237 = vsub.s32 0, %v236
    %v238 = vrot.slane %v233, %v237
    %v240 = vld [vmem:[%s18] sm:$0x1]
    %v242 = vlaneseq
    %v243 = vshrl.u32 %v242, 7
    %v244 = vsub.s32 0, %v243
    %v245 = vrot.slane %v240, %v244
    %v247 = vld [vmem:[%s0] sm:$0xff]
    %v248 = vld [vmem:[%s0 + $0x8] sm:$0xff]
    %v249 = vld [vmem:[%s0 + $0x10] sm:$0xff]
    %v250 = vld [vmem:[%s0 + $0x18] sm:$0xff]
    %v251 = vld [vmem:[#allocation3] sm:$0xff]
    %v252 = vld [vmem:[#allocation3 + $0x8] sm:$0xff]
    %v253 = vld [vmem:[%s4] sm:$0x1]
    %v255 = vlaneseq
    %v256 = vshrl.u32 %v255, 7
    %v257 = vsub.s32 0, %v256
    %v258 = vrot.slane %v253, %v257
    %vm260 = vcmask 130048
    %v262 = vsel %vm260, %v247, 0
    %v265 = vsel %vm260, %v248, 0
    %v268 = vsel %vm260, %v249, 0
    %v271 = vsel %vm260, %v250, 0
    %273 = vmatprep.subr.mxu0 0.0
    %274 = vmatpush1.msra.mxu0 %v251
    %275 = vmatprep.subr.mxu0 0.0
    %276 = vmatpush1.msra.mxu0 %v252
    %277 = vmatprep.subr.mxu0 0.0
    %278 = vmatpush1.msra.mxu0 0.0
    %279 = vmatprep.subr.mxu0 0.0
    %280 = vmatpush1.msra.mxu0 0.0
    %281 = vmatprep.subr.mxu0 0.0
    %282 = vmatpush1.msra.mxu0 0.0
    %283 = vmatprep.subr.mxu0 0.0
    %284 = vmatpush1.msra.mxu0 0.0
    %285 = vmatprep.subr.mxu0 0.0
    %286 = vmatpush1.msra.mxu0 0.0
    %287 = vmatprep.subr.mxu0 0.0
    %288 = vmatpush1.msra.mxu0 0.0
    %289 = vmatprep.subr.mxu0 0.0
    %290 = vmatpush1.msra.mxu0 0.0
    %291 = vmatprep.subr.mxu0 0.0
    %292 = vmatpush1.msra.mxu0 0.0
    %293 = vmatprep.subr.mxu0 0.0
    %294 = vmatpush1.msra.mxu0 0.0
    %295 = vmatprep.subr.mxu0 0.0
    %296 = vmatpush1.msra.mxu0 0.0
    %297 = vmatprep.subr.mxu0 0.0
    %298 = vmatpush1.msra.mxu0 0.0
    %299 = vmatprep.subr.mxu0 0.0
    %300 = vmatpush1.msra.mxu0 0.0
    %301 = vmatprep.subr.mxu0 0.0
    %302 = vmatpush1.msra.mxu0 0.0
    %303 = vmatprep.subr.mxu0 0.0
    %304 = vmatpush1.msra.mxu0 0.0
    %305 = vmatprep.subr.mxu0 0.0
    %306 = vmatpush1.msra.mxu0 0.0
    %307 = vmatprep.subr.mxu0 0.0
    %308 = vmatpush1.msra.mxu0 0.0
    %309 = vmatprep.subr.mxu0 0.0
    %310 = vmatpush1.msra.mxu0 0.0
    %311 = vmatprep.subr.mxu0 0.0
    %312 = vmatpush1.msra.mxu0 0.0
    %313 = vmatprep.subr.mxu0 0.0
    %314 = vmatpush1.msra.mxu0 0.0
    %315 = vmatprep.subr.mxu0 0.0
    %316 = vmatpush1.msra.mxu0 0.0
    %317 = vmatprep.subr.mxu0 0.0
    %318 = vmatpush1.msra.mxu0 0.0
    %319 = vmatprep.subr.mxu0 0.0
    %320 = vmatpush1.msra.mxu0 0.0
    %321 = vmatprep.subr.mxu0 0.0
    %322 = vmatpush1.msra.mxu0 0.0
    %323 = vmatprep.subr.mxu0 0.0
    %324 = vmatpush1.msra.mxu0 0.0
    %325 = vmatprep.subr.mxu0 0.0
    %326 = vmatpush1.msra.mxu0 0.0
    %327 = vmatprep.subr.mxu0 0.0
    %328 = vmatpush1.msra.mxu0 0.0
    %329 = vmatprep.subr.mxu0 0.0
    %330 = vmatpush1.msra.mxu0 0.0
    %331 = vmatprep.subr.mxu0 0.0
    %332 = vmatpush1.msra.mxu0 0.0
    %333 = vmatprep.subr.mxu0 0.0
    %334 = vmatpush1.msra.mxu0 0.0
    %335 = vmatprep.subr.mxu0 0.0
    %336 = vmatpush1.msra.mxu0 0.0
    %337 = vmatprep.mubr.f32.mxu0 0.0
    %338 = vmatmul.mubr.f32.gmra.mrb[0].mxu0 %v262
    %v339 = vpop.f32.mrb[0].mxu0
    %v340 = vadd.f32 %v258, %v339
    %v341 = vpop.f32.mrb[0].mxu0
    %342 = vmatprep.mubr.f32.mxu0 0.0
    %343 = vmatmul.mubr.f32.gmra.mrb[0].mxu0 %v265
    %v344 = vpop.f32.mrb[0].mxu0
    %v345 = vadd.f32 %v258, %v344
    %v346 = vpop.f32.mrb[0].mxu0
    %347 = vmatprep.mubr.f32.mxu0 0.0
    %348 = vmatmul.mubr.f32.gmra.mrb[0].mxu0 %v268
    %v349 = vpop.f32.mrb[0].mxu0
    %v350 = vadd.f32 %v258, %v349
    %v351 = vpop.f32.mrb[0].mxu0
    %352 = vmatprep.mubr.f32.mxu0 0.0
    %353 = vmatmul.mubr.f32.gmra.mrb[0].mxu0 %v271
    %v354 = vpop.f32.mrb[0].mxu0
    %v355 = vadd.f32 %v258, %v354
    %v356 = vpop.f32.mrb[0].mxu0
    %357 = vdwg.mxu0
    %v358 = vld [vmem:[#allocation5] sm:$0xff]
    %v359 = vld [vmem:[#allocation5 + $0x8] sm:$0xff]
    %v360 = vld [vmem:[#allocation8] sm:$0x1]
    %v362 = vlaneseq
    %v363 = vshrl.u32 %v362, 7
    %v364 = vsub.s32 0, %v363
    %v365 = vrot.slane %v360, %v364
    %367 = vmatprep.subr.mxu0 0.0
    %368 = vmatpush1.msra.mxu0 %v358
    %369 = vmatprep.subr.mxu0 0.0
    %370 = vmatpush1.msra.mxu0 %v359
    %371 = vmatprep.subr.mxu0 0.0
    %372 = vmatpush1.msra.mxu0 0.0
    %373 = vmatprep.subr.mxu0 0.0
    %374 = vmatpush1.msra.mxu0 0.0
    %375 = vmatprep.subr.mxu0 0.0
    %376 = vmatpush1.msra.mxu0 0.0
    %377 = vmatprep.subr.mxu0 0.0
    %378 = vmatpush1.msra.mxu0 0.0
    %379 = vmatprep.subr.mxu0 0.0
    %380 = vmatpush1.msra.mxu0 0.0
    %381 = vmatprep.subr.mxu0 0.0
    %382 = vmatpush1.msra.mxu0 0.0
    %383 = vmatprep.subr.mxu0 0.0
    %384 = vmatpush1.msra.mxu0 0.0
    %385 = vmatprep.subr.mxu0 0.0
    %386 = vmatpush1.msra.mxu0 0.0
    %387 = vmatprep.subr.mxu0 0.0
    %388 = vmatpush1.msra.mxu0 0.0
    %389 = vmatprep.subr.mxu0 0.0
    %390 = vmatpush1.msra.mxu0 0.0
    %391 = vmatprep.subr.mxu0 0.0
    %392 = vmatpush1.msra.mxu0 0.0
    %393 = vmatprep.subr.mxu0 0.0
    %394 = vmatpush1.msra.mxu0 0.0
    %395 = vmatprep.subr.mxu0 0.0
    %396 = vmatpush1.msra.mxu0 0.0
    %397 = vmatprep.subr.mxu0 0.0
    %398 = vmatpush1.msra.mxu0 0.0
    %399 = vmatprep.subr.mxu0 0.0
    %400 = vmatpush1.msra.mxu0 0.0
    %401 = vmatprep.subr.mxu0 0.0
    %402 = vmatpush1.msra.mxu0 0.0
    %403 = vmatprep.subr.mxu0 0.0
    %404 = vmatpush1.msra.mxu0 0.0
    %405 = vmatprep.subr.mxu0 0.0
    %406 = vmatpush1.msra.mxu0 0.0
    %407 = vmatprep.subr.mxu0 0.0
    %408 = vmatpush1.msra.mxu0 0.0
    %409 = vmatprep.subr.mxu0 0.0
    %410 = vmatpush1.msra.mxu0 0.0
    %411 = vmatprep.subr.mxu0 0.0
    %412 = vmatpush1.msra.mxu0 0.0
    %413 = vmatprep.subr.mxu0 0.0
    %414 = vmatpush1.msra.mxu0 0.0
    %415 = vmatprep.subr.mxu0 0.0
    %416 = vmatpush1.msra.mxu0 0.0
    %417 = vmatprep.subr.mxu0 0.0
    %418 = vmatpush1.msra.mxu0 0.0
    %419 = vmatprep.subr.mxu0 0.0
    %420 = vmatpush1.msra.mxu0 0.0
    %421 = vmatprep.subr.mxu0 0.0
    %422 = vmatpush1.msra.mxu0 0.0
    %423 = vmatprep.subr.mxu0 0.0
    %424 = vmatpush1.msra.mxu0 0.0
    %425 = vmatprep.subr.mxu0 0.0
    %426 = vmatpush1.msra.mxu0 0.0
    %427 = vmatprep.subr.mxu0 0.0
    %428 = vmatpush1.msra.mxu0 0.0
    %429 = vmatprep.subr.mxu0 0.0
    %430 = vmatpush1.msra.mxu0 0.0
    %431 = vmatprep.mubr.f32.mxu0 0.0
    %432 = vmatmul.mubr.f32.gmra.mrb[0].mxu0 %v262
    %v433 = vpop.f32.mrb[0].mxu0
    %v434 = vadd.f32 %v365, %v433
    %v435 = vpop.f32.mrb[0].mxu0
    %436 = vmatprep.mubr.f32.mxu0 0.0
    %437 = vmatmul.mubr.f32.gmra.mrb[0].mxu0 %v265
    %v438 = vpop.f32.mrb[0].mxu0
    %v439 = vadd.f32 %v365, %v438
    %v440 = vpop.f32.mrb[0].mxu0
    %441 = vmatprep.mubr.f32.mxu0 0.0
    %442 = vmatmul.mubr.f32.gmra.mrb[0].mxu0 %v268
    %v443 = vpop.f32.mrb[0].mxu0
    %v444 = vadd.f32 %v365, %v443
    %v445 = vpop.f32.mrb[0].mxu0
    %446 = vmatprep.mubr.f32.mxu0 0.0
    %447 = vmatmul.mubr.f32.gmra.mrb[0].mxu0 %v271
    %v448 = vpop.f32.mrb[0].mxu0
    %v449 = vadd.f32 %v365, %v448
    %v450 = vpop.f32.mrb[0].mxu0
    %451 = vdwg.mxu0
    %v452 = vld [vmem:[#allocation7] sm:$0xff]
    %v453 = vld [vmem:[#allocation7 + $0x8] sm:$0xff]
    %v454 = vld [vmem:[#allocation10] sm:$0x1]
    %v456 = vlaneseq
    %v457 = vshrl.u32 %v456, 7
    %v458 = vsub.s32 0, %v457
    %v459 = vrot.slane %v454, %v458
    %461 = vmatprep.subr.mxu0 0.0
    %462 = vmatpush1.msra.mxu0 %v452
    %463 = vmatprep.subr.mxu0 0.0
    %464 = vmatpush1.msra.mxu0 %v453
    %465 = vmatprep.subr.mxu0 0.0
    %466 = vmatpush1.msra.mxu0 0.0
    %467 = vmatprep.subr.mxu0 0.0
    %468 = vmatpush1.msra.mxu0 0.0
    %469 = vmatprep.subr.mxu0 0.0
    %470 = vmatpush1.msra.mxu0 0.0
    %471 = vmatprep.subr.mxu0 0.0
    %472 = vmatpush1.msra.mxu0 0.0
    %473 = vmatprep.subr.mxu0 0.0
    %474 = vmatpush1.msra.mxu0 0.0
    %475 = vmatprep.subr.mxu0 0.0
    %476 = vmatpush1.msra.mxu0 0.0
    %477 = vmatprep.subr.mxu0 0.0
    %478 = vmatpush1.msra.mxu0 0.0
    %479 = vmatprep.subr.mxu0 0.0
    %480 = vmatpush1.msra.mxu0 0.0
    %481 = vmatprep.subr.mxu0 0.0
    %482 = vmatpush1.msra.mxu0 0.0
    %483 = vmatprep.subr.mxu0 0.0
    %484 = vmatpush1.msra.mxu0 0.0
    %485 = vmatprep.subr.mxu0 0.0
    %486 = vmatpush1.msra.mxu0 0.0
    %487 = vmatprep.subr.mxu0 0.0
    %488 = vmatpush1.msra.mxu0 0.0
    %489 = vmatprep.subr.mxu0 0.0
    %490 = vmatpush1.msra.mxu0 0.0
    %491 = vmatprep.subr.mxu0 0.0
    %492 = vmatpush1.msra.mxu0 0.0
    %493 = vmatprep.subr.mxu0 0.0
    %494 = vmatpush1.msra.mxu0 0.0
    %495 = vmatprep.subr.mxu0 0.0
    %496 = vmatpush1.msra.mxu0 0.0
    %497 = vmatprep.subr.mxu0 0.0
    %498 = vmatpush1.msra.mxu0 0.0
    %499 = vmatprep.subr.mxu0 0.0
    %500 = vmatpush1.msra.mxu0 0.0
    %501 = vmatprep.subr.mxu0 0.0
    %502 = vmatpush1.msra.mxu0 0.0
    %503 = vmatprep.subr.mxu0 0.0
    %504 = vmatpush1.msra.mxu0 0.0
    %505 = vmatprep.subr.mxu0 0.0
    %506 = vmatpush1.msra.mxu0 0.0
    %507 = vmatprep.subr.mxu0 0.0
    %508 = vmatpush1.msra.mxu0 0.0
    %509 = vmatprep.subr.mxu0 0.0
    %510 = vmatpush1.msra.mxu0 0.0
    %511 = vmatprep.subr.mxu0 0.0
    %512 = vmatpush1.msra.mxu0 0.0
    %513 = vmatprep.subr.mxu0 0.0
    %514 = vmatpush1.msra.mxu0 0.0
    %515 = vmatprep.subr.mxu0 0.0
    %516 = vmatpush1.msra.mxu0 0.0
    %517 = vmatprep.subr.mxu0 0.0
    %518 = vmatpush1.msra.mxu0 0.0
    %519 = vmatprep.subr.mxu0 0.0
    %520 = vmatpush1.msra.mxu0 0.0
    %521 = vmatprep.subr.mxu0 0.0
    %522 = vmatpush1.msra.mxu0 0.0
    %523 = vmatprep.subr.mxu0 0.0
    %524 = vmatpush1.msra.mxu0 0.0
    %525 = vmatprep.mubr.f32.mxu0 0.0
    %526 = vmatmul.mubr.f32.gmra.mrb[0].mxu0 %v262
    %v527 = vpop.f32.mrb[0].mxu0
    %v528 = vadd.f32 %v459, %v527
    %v529 = vpop.f32.mrb[0].mxu0
    %530 = vmatprep.mubr.f32.mxu0 0.0
    %531 = vmatmul.mubr.f32.gmra.mrb[0].mxu0 %v265
    %v532 = vpop.f32.mrb[0].mxu0
    %v533 = vadd.f32 %v459, %v532
    %v534 = vpop.f32.mrb[0].mxu0
    %535 = vmatprep.mubr.f32.mxu0 0.0
    %536 = vmatmul.mubr.f32.gmra.mrb[0].mxu0 %v268
    %v537 = vpop.f32.mrb[0].mxu0
    %v538 = vadd.f32 %v459, %v537
    %v539 = vpop.f32.mrb[0].mxu0
    %540 = vmatprep.mubr.f32.mxu0 0.0
    %541 = vmatmul.mubr.f32.gmra.mrb[0].mxu0 %v271
    %v542 = vpop.f32.mrb[0].mxu0
    %v543 = vadd.f32 %v459, %v542
    %v544 = vpop.f32.mrb[0].mxu0
    %545 = vdwg.mxu0
    %vm546 = vcmask 261120
    %v548 = vsel %vm546, 0.1, 0
    %550 = vmatprep.subr.mxu0 0.0
    %551 = vmatpush1.msra.mxu0 %v184
    %552 = vmatprep.subr.mxu0 0.0
    %553 = vmatpush1.msra.mxu0 %v185
    %554 = vmatprep.subr.mxu0 0.0
    %555 = vmatpush1.msra.mxu0 %v186
    %556 = vmatprep.subr.mxu0 0.0
    %557 = vmatpush1.msra.mxu0 %v187
    %558 = vmatprep.subr.mxu0 0.0
    %559 = vmatpush1.msra.mxu0 0.0
    %560 = vmatprep.subr.mxu0 0.0
    %561 = vmatpush1.msra.mxu0 0.0
    %562 = vmatprep.subr.mxu0 0.0
    %563 = vmatpush1.msra.mxu0 0.0
    %564 = vmatprep.subr.mxu0 0.0
    %565 = vmatpush1.msra.mxu0 0.0
    %566 = vmatprep.subr.mxu0 0.0
    %567 = vmatpush1.msra.mxu0 0.0
    %568 = vmatprep.subr.mxu0 0.0
    %569 = vmatpush1.msra.mxu0 0.0
    %570 = vmatprep.subr.mxu0 0.0
    %571 = vmatpush1.msra.mxu0 0.0
    %572 = vmatprep.subr.mxu0 0.0
    %573 = vmatpush1.msra.mxu0 0.0
    %574 = vmatprep.subr.mxu0 0.0
    %575 = vmatpush1.msra.mxu0 0.0
    %576 = vmatprep.subr.mxu0 0.0
    %577 = vmatpush1.msra.mxu0 0.0
    %578 = vmatprep.subr.mxu0 0.0
    %579 = vmatpush1.msra.mxu0 0.0
    %580 = vmatprep.subr.mxu0 0.0
    %581 = vmatpush1.msra.mxu0 0.0
    %582 = vmatprep.subr.mxu0 0.0
    %583 = vmatpush1.msra.mxu0 0.0
    %584 = vmatprep.subr.mxu0 0.0
    %585 = vmatpush1.msra.mxu0 0.0
    %586 = vmatprep.subr.mxu0 0.0
    %587 = vmatpush1.msra.mxu0 0.0
    %588 = vmatprep.subr.mxu0 0.0
    %589 = vmatpush1.msra.mxu0 0.0
    %590 = vmatprep.subr.mxu0 0.0
    %591 = vmatpush1.msra.mxu0 0.0
    %592 = vmatprep.subr.mxu0 0.0
    %593 = vmatpush1.msra.mxu0 0.0
    %594 = vmatprep.subr.mxu0 0.0
    %595 = vmatpush1.msra.mxu0 0.0
    %596 = vmatprep.subr.mxu0 0.0
    %597 = vmatpush1.msra.mxu0 0.0
    %598 = vmatprep.subr.mxu0 0.0
    %599 = vmatpush1.msra.mxu0 0.0
    %600 = vmatprep.subr.mxu0 0.0
    %601 = vmatpush1.msra.mxu0 0.0
    %602 = vmatprep.subr.mxu0 0.0
    %603 = vmatpush1.msra.mxu0 0.0
    %604 = vmatprep.subr.mxu0 0.0
    %605 = vmatpush1.msra.mxu0 0.0
    %606 = vmatprep.subr.mxu0 0.0
    %607 = vmatpush1.msra.mxu0 0.0
    %608 = vmatprep.subr.mxu0 0.0
    %609 = vmatpush1.msra.mxu0 0.0
    %610 = vmatprep.subr.mxu0 0.0
    %611 = vmatpush1.msra.mxu0 0.0
    %612 = vmatprep.subr.mxu0 0.0
    %613 = vmatpush1.msra.mxu0 0.0
    %614 = vmatprep.mubr.f32.mxu0 0.0
    %615 = vmatmul.mubr.f32.gmra.mrb[0].mxu0 %v548
    %v616 = vpop.f32.mrb[0].mxu0
    %v617 = vadd.f32 0.0, %v616
    %v618 = vpop.f32.mrb[0].mxu0
    %619 = vdwg.mxu0
    %620 = vmatprep.subr.mxu0 0.0
    %621 = vmatpush1.msra.mxu0 %v188
    %622 = vmatprep.subr.mxu0 0.0
    %623 = vmatpush1.msra.mxu0 %v189
    %624 = vmatprep.subr.mxu0 0.0
    %625 = vmatpush1.msra.mxu0 %v190
    %626 = vmatprep.subr.mxu0 0.0
    %627 = vmatpush1.msra.mxu0 %v191
    %628 = vmatprep.subr.mxu0 0.0
    %629 = vmatpush1.msra.mxu0 0.0
    %630 = vmatprep.subr.mxu0 0.0
    %631 = vmatpush1.msra.mxu0 0.0
    %632 = vmatprep.subr.mxu0 0.0
    %633 = vmatpush1.msra.mxu0 0.0
    %634 = vmatprep.subr.mxu0 0.0
    %635 = vmatpush1.msra.mxu0 0.0
    %636 = vmatprep.subr.mxu0 0.0
    %637 = vmatpush1.msra.mxu0 0.0
    %638 = vmatprep.subr.mxu0 0.0
    %639 = vmatpush1.msra.mxu0 0.0
    %640 = vmatprep.subr.mxu0 0.0
    %641 = vmatpush1.msra.mxu0 0.0
    %642 = vmatprep.subr.mxu0 0.0
    %643 = vmatpush1.msra.mxu0 0.0
    %644 = vmatprep.subr.mxu0 0.0
    %645 = vmatpush1.msra.mxu0 0.0
    %646 = vmatprep.subr.mxu0 0.0
    %647 = vmatpush1.msra.mxu0 0.0
    %648 = vmatprep.subr.mxu0 0.0
    %649 = vmatpush1.msra.mxu0 0.0
    %650 = vmatprep.subr.mxu0 0.0
    %651 = vmatpush1.msra.mxu0 0.0
    %652 = vmatprep.subr.mxu0 0.0
    %653 = vmatpush1.msra.mxu0 0.0
    %654 = vmatprep.subr.mxu0 0.0
    %655 = vmatpush1.msra.mxu0 0.0
    %656 = vmatprep.subr.mxu0 0.0
    %657 = vmatpush1.msra.mxu0 0.0
    %658 = vmatprep.subr.mxu0 0.0
    %659 = vmatpush1.msra.mxu0 0.0
    %660 = vmatprep.subr.mxu0 0.0
    %661 = vmatpush1.msra.mxu0 0.0
    %662 = vmatprep.subr.mxu0 0.0
    %663 = vmatpush1.msra.mxu0 0.0
    %664 = vmatprep.subr.mxu0 0.0
    %665 = vmatpush1.msra.mxu0 0.0
    %666 = vmatprep.subr.mxu0 0.0
    %667 = vmatpush1.msra.mxu0 0.0
    %668 = vmatprep.subr.mxu0 0.0
    %669 = vmatpush1.msra.mxu0 0.0
    %670 = vmatprep.subr.mxu0 0.0
    %671 = vmatpush1.msra.mxu0 0.0
    %672 = vmatprep.subr.mxu0 0.0
    %673 = vmatpush1.msra.mxu0 0.0
    %674 = vmatprep.subr.mxu0 0.0
    %675 = vmatpush1.msra.mxu0 0.0
    %676 = vmatprep.subr.mxu0 0.0
    %677 = vmatpush1.msra.mxu0 0.0
    %678 = vmatprep.subr.mxu0 0.0
    %679 = vmatpush1.msra.mxu0 0.0
    %680 = vmatprep.subr.mxu0 0.0
    %681 = vmatpush1.msra.mxu0 0.0
    %682 = vmatprep.subr.mxu0 0.0
    %683 = vmatpush1.msra.mxu0 0.0
    %684 = vmatprep.mubr.f32.mxu0 0.0
    %685 = vmatmul.mubr.f32.gmra.mrb[0].mxu0 %v548
    %v686 = vpop.f32.mrb[0].mxu0
    %v687 = vadd.f32 0.0, %v686
    %v688 = vpop.f32.mrb[0].mxu0
    %689 = vdwg.mxu0
    %v690 = vadd.f32 %v340, %v617
    %v691 = vxor.u32 %v690, 2147483648
    %v692 = vmul.f32 %v691, 1.442695
    %v693 = vpow.pop %v692
    %v694 = vadd.f32 %v693, 1.0
    %v695 = vrcp.pop %v694
    %v696 = vmul.f32 1.0, %v695
    %v697 = vadd.f32 %v434, %v687
    %v698 = vxor.u32 %v697, 2147483648
    %v699 = vmul.f32 %v698, 1.442695
    %v700 = vpow.pop %v699
    %v701 = vadd.f32 %v700, 1.0
    %v702 = vrcp.pop %v701
    %v703 = vmul.f32 1.0, %v702
    %704 = vmatprep.subr.mxu0 0.0
    %705 = vmatpush1.msra.mxu0 %v192
    %706 = vmatprep.subr.mxu0 0.0
    %707 = vmatpush1.msra.mxu0 %v193
    %708 = vmatprep.subr.mxu0 0.0
    %709 = vmatpush1.msra.mxu0 %v194
    %710 = vmatprep.subr.mxu0 0.0
    %711 = vmatpush1.msra.mxu0 %v195
    %712 = vmatprep.subr.mxu0 0.0
    %713 = vmatpush1.msra.mxu0 0.0
    %714 = vmatprep.subr.mxu0 0.0
    %715 = vmatpush1.msra.mxu0 0.0
    %716 = vmatprep.subr.mxu0 0.0
    %717 = vmatpush1.msra.mxu0 0.0
    %718 = vmatprep.subr.mxu0 0.0
    %719 = vmatpush1.msra.mxu0 0.0
    %720 = vmatprep.subr.mxu0 0.0
    %721 = vmatpush1.msra.mxu0 0.0
    %722 = vmatprep.subr.mxu0 0.0
    %723 = vmatpush1.msra.mxu0 0.0
    %724 = vmatprep.subr.mxu0 0.0
    %725 = vmatpush1.msra.mxu0 0.0
    %726 = vmatprep.subr.mxu0 0.0
    %727 = vmatpush1.msra.mxu0 0.0
    %728 = vmatprep.subr.mxu0 0.0
    %729 = vmatpush1.msra.mxu0 0.0
    %730 = vmatprep.subr.mxu0 0.0
    %731 = vmatpush1.msra.mxu0 0.0
    %732 = vmatprep.subr.mxu0 0.0
    %733 = vmatpush1.msra.mxu0 0.0
    %734 = vmatprep.subr.mxu0 0.0
    %735 = vmatpush1.msra.mxu0 0.0
    %736 = vmatprep.subr.mxu0 0.0
    %737 = vmatpush1.msra.mxu0 0.0
    %738 = vmatprep.subr.mxu0 0.0
    %739 = vmatpush1.msra.mxu0 0.0
    %740 = vmatprep.subr.mxu0 0.0
    %741 = vmatpush1.msra.mxu0 0.0
    %742 = vmatprep.subr.mxu0 0.0
    %743 = vmatpush1.msra.mxu0 0.0
    %744 = vmatprep.subr.mxu0 0.0
    %745 = vmatpush1.msra.mxu0 0.0
    %746 = vmatprep.subr.mxu0 0.0
    %747 = vmatpush1.msra.mxu0 0.0
    %748 = vmatprep.subr.mxu0 0.0
    %749 = vmatpush1.msra.mxu0 0.0
    %750 = vmatprep.subr.mxu0 0.0
    %751 = vmatpush1.msra.mxu0 0.0
    %752 = vmatprep.subr.mxu0 0.0
    %753 = vmatpush1.msra.mxu0 0.0
    %754 = vmatprep.subr.mxu0 0.0
    %755 = vmatpush1.msra.mxu0 0.0
    %756 = vmatprep.subr.mxu0 0.0
    %757 = vmatpush1.msra.mxu0 0.0
    %758 = vmatprep.subr.mxu0 0.0
    %759 = vmatpush1.msra.mxu0 0.0
    %760 = vmatprep.subr.mxu0 0.0
    %761 = vmatpush1.msra.mxu0 0.0
    %762 = vmatprep.subr.mxu0 0.0
    %763 = vmatpush1.msra.mxu0 0.0
    %764 = vmatprep.subr.mxu0 0.0
    %765 = vmatpush1.msra.mxu0 0.0
    %766 = vmatprep.subr.mxu0 0.0
    %767 = vmatpush1.msra.mxu0 0.0
    %768 = vmatprep.mubr.f32.mxu0 0.0
    %769 = vmatmul.mubr.f32.gmra.mrb[0].mxu0 %v548
    %v770 = vpop.f32.mrb[0].mxu0
    %v771 = vadd.f32 %v217, %v770
    %v772 = vpop.f32.mrb[0].mxu0
    %773 = vdwg.mxu0
    %v774 = vmul.f32 %v696, %v771
    %v775 = vadd.f32 %v528, %v774
    %v776 = vtanh.pop %v775
    %v777 = vsub.f32 1.0, %v703
    %v778 = vmul.f32 %v777, %v776
    %v779 = vmul.f32 %v703, 0.1
    %v780 = vadd.f32 %v778, %v779
    %v782 = vsel %vm546, %v780, 0
    %784 = vmatprep.subr.mxu0 0.0
    %785 = vmatpush1.msra.mxu0 %v184
    %786 = vmatprep.subr.mxu0 0.0
    %787 = vmatpush1.msra.mxu0 %v185
    %788 = vmatprep.subr.mxu0 0.0
    %789 = vmatpush1.msra.mxu0 %v186
    %790 = vmatprep.subr.mxu0 0.0
    %791 = vmatpush1.msra.mxu0 %v187
    %792 = vmatprep.subr.mxu0 0.0
    %793 = vmatpush1.msra.mxu0 0.0
    %794 = vmatprep.subr.mxu0 0.0
    %795 = vmatpush1.msra.mxu0 0.0
    %796 = vmatprep.subr.mxu0 0.0
    %797 = vmatpush1.msra.mxu0 0.0
    %798 = vmatprep.subr.mxu0 0.0
    %799 = vmatpush1.msra.mxu0 0.0
    %800 = vmatprep.subr.mxu0 0.0
    %801 = vmatpush1.msra.mxu0 0.0
    %802 = vmatprep.subr.mxu0 0.0
    %803 = vmatpush1.msra.mxu0 0.0
    %804 = vmatprep.subr.mxu0 0.0
    %805 = vmatpush1.msra.mxu0 0.0
    %806 = vmatprep.subr.mxu0 0.0
    %807 = vmatpush1.msra.mxu0 0.0
    %808 = vmatprep.subr.mxu0 0.0
    %809 = vmatpush1.msra.mxu0 0.0
    %810 = vmatprep.subr.mxu0 0.0
    %811 = vmatpush1.msra.mxu0 0.0
    %812 = vmatprep.subr.mxu0 0.0
    %813 = vmatpush1.msra.mxu0 0.0
    %814 = vmatprep.subr.mxu0 0.0
    %815 = vmatpush1.msra.mxu0 0.0
    %816 = vmatprep.subr.mxu0 0.0
    %817 = vmatpush1.msra.mxu0 0.0
    %818 = vmatprep.subr.mxu0 0.0
    %819 = vmatpush1.msra.mxu0 0.0
    %820 = vmatprep.subr.mxu0 0.0
    %821 = vmatpush1.msra.mxu0 0.0
    %822 = vmatprep.subr.mxu0 0.0
    %823 = vmatpush1.msra.mxu0 0.0
    %824 = vmatprep.subr.mxu0 0.0
    %825 = vmatpush1.msra.mxu0 0.0
    %826 = vmatprep.subr.mxu0 0.0
    %827 = vmatpush1.msra.mxu0 0.0
    %828 = vmatprep.subr.mxu0 0.0
    %829 = vmatpush1.msra.mxu0 0.0
    %830 = vmatprep.subr.mxu0 0.0
    %831 = vmatpush1.msra.mxu0 0.0
    %832 = vmatprep.subr.mxu0 0.0
    %833 = vmatpush1.msra.mxu0 0.0
    %834 = vmatprep.subr.mxu0 0.0
    %835 = vmatpush1.msra.mxu0 0.0
    %836 = vmatprep.subr.mxu0 0.0
    %837 = vmatpush1.msra.mxu0 0.0
    %838 = vmatprep.subr.mxu0 0.0
    %839 = vmatpush1.msra.mxu0 0.0
    %840 = vmatprep.subr.mxu0 0.0
    %841 = vmatpush1.msra.mxu0 0.0
    %842 = vmatprep.subr.mxu0 0.0
    %843 = vmatpush1.msra.mxu0 0.0
    %844 = vmatprep.subr.mxu0 0.0
    %845 = vmatpush1.msra.mxu0 0.0
    %846 = vmatprep.subr.mxu0 0.0
    %847 = vmatpush1.msra.mxu0 0.0
    %848 = vmatprep.mubr.f32.mxu0 0.0
    %849 = vmatmul.mubr.f32.gmra.mrb[0].mxu0 %v782
    %v850 = vpop.f32.mrb[0].mxu0
    %v851 = vadd.f32 0.0, %v850
    %v852 = vpop.f32.mrb[0].mxu0
    %853 = vdwg.mxu0
    %854 = vmatprep.subr.mxu0 0.0
    %855 = vmatpush1.msra.mxu0 %v188
    %856 = vmatprep.subr.mxu0 0.0
    %857 = vmatpush1.msra.mxu0 %v189
    %858 = vmatprep.subr.mxu0 0.0
    %859 = vmatpush1.msra.mxu0 %v190
    %860 = vmatprep.subr.mxu0 0.0
    %861 = vmatpush1.msra.mxu0 %v191
    %862 = vmatprep.subr.mxu0 0.0
    %863 = vmatpush1.msra.mxu0 0.0
    %864 = vmatprep.subr.mxu0 0.0
    %865 = vmatpush1.msra.mxu0 0.0
    %866 = vmatprep.subr.mxu0 0.0
    %867 = vmatpush1.msra.mxu0 0.0
    %868 = vmatprep.subr.mxu0 0.0
    %869 = vmatpush1.msra.mxu0 0.0
    %870 = vmatprep.subr.mxu0 0.0
    %871 = vmatpush1.msra.mxu0 0.0
    %872 = vmatprep.subr.mxu0 0.0
    %873 = vmatpush1.msra.mxu0 0.0
    %874 = vmatprep.subr.mxu0 0.0
    %875 = vmatpush1.msra.mxu0 0.0
    %876 = vmatprep.subr.mxu0 0.0
    %877 = vmatpush1.msra.mxu0 0.0
    %878 = vmatprep.subr.mxu0 0.0
    %879 = vmatpush1.msra.mxu0 0.0
    %880 = vmatprep.subr.mxu0 0.0
    %881 = vmatpush1.msra.mxu0 0.0
    %882 = vmatprep.subr.mxu0 0.0
    %883 = vmatpush1.msra.mxu0 0.0
    %884 = vmatprep.subr.mxu0 0.0
    %885 = vmatpush1.msra.mxu0 0.0
    %886 = vmatprep.subr.mxu0 0.0
    %887 = vmatpush1.msra.mxu0 0.0
    %888 = vmatprep.subr.mxu0 0.0
    %889 = vmatpush1.msra.mxu0 0.0
    %890 = vmatprep.subr.mxu0 0.0
    %891 = vmatpush1.msra.mxu0 0.0
    %892 = vmatprep.subr.mxu0 0.0
    %893 = vmatpush1.msra.mxu0 0.0
    %894 = vmatprep.subr.mxu0 0.0
    %895 = vmatpush1.msra.mxu0 0.0
    %896 = vmatprep.subr.mxu0 0.0
    %897 = vmatpush1.msra.mxu0 0.0
    %898 = vmatprep.subr.mxu0 0.0
    %899 = vmatpush1.msra.mxu0 0.0
    %900 = vmatprep.subr.mxu0 0.0
    %901 = vmatpush1.msra.mxu0 0.0
    %902 = vmatprep.subr.mxu0 0.0
    %903 = vmatpush1.msra.mxu0 0.0
    %904 = vmatprep.subr.mxu0 0.0
    %905 = vmatpush1.msra.mxu0 0.0
    %906 = vmatprep.subr.mxu0 0.0
    %907 = vmatpush1.msra.mxu0 0.0
    %908 = vmatprep.subr.mxu0 0.0
    %909 = vmatpush1.msra.mxu0 0.0
    %910 = vmatprep.subr.mxu0 0.0
    %911 = vmatpush1.msra.mxu0 0.0
    %912 = vmatprep.subr.mxu0 0.0
    %913 = vmatpush1.msra.mxu0 0.0
    %914 = vmatprep.subr.mxu0 0.0
    %915 = vmatpush1.msra.mxu0 0.0
    %916 = vmatprep.subr.mxu0 0.0
    %917 = vmatpush1.msra.mxu0 0.0
    %918 = vmatprep.mubr.f32.mxu0 0.0
    %919 = vmatmul.mubr.f32.gmra.mrb[0].mxu0 %v782
    %v920 = vpop.f32.mrb[0].mxu0
    %v921 = vadd.f32 0.0, %v920
    %v922 = vpop.f32.mrb[0].mxu0
    %923 = vdwg.mxu0
    %v925 = vrot.slane %v851, 4
    %v927 = vadd.f32 %v340, %v925
    %v928 = vxor.u32 %v927, 2147483648
    %v929 = vmul.f32 %v928, 1.442695
    %v930 = vpow.pop %v929
    %v931 = vadd.f32 %v930, 1.0
    %v932 = vrcp.pop %v931
    %v933 = vmul.f32 1.0, %v932
    %v935 = vrot.slane %v921, 4
    %v937 = vadd.f32 %v434, %v935
    %v938 = vxor.u32 %v937, 2147483648
    %v939 = vmul.f32 %v938, 1.442695
    %v940 = vpow.pop %v939
    %v941 = vadd.f32 %v940, 1.0
    %v942 = vrcp.pop %v941
    %v943 = vmul.f32 1.0, %v942
    %944 = vmatprep.subr.mxu0 0.0
    %945 = vmatpush1.msra.mxu0 %v192
    %946 = vmatprep.subr.mxu0 0.0
    %947 = vmatpush1.msra.mxu0 %v193
    %948 = vmatprep.subr.mxu0 0.0
    %949 = vmatpush1.msra.mxu0 %v194
    %950 = vmatprep.subr.mxu0 0.0
    %951 = vmatpush1.msra.mxu0 %v195
    %952 = vmatprep.subr.mxu0 0.0
    %953 = vmatpush1.msra.mxu0 0.0
    %954 = vmatprep.subr.mxu0 0.0
    %955 = vmatpush1.msra.mxu0 0.0
    %956 = vmatprep.subr.mxu0 0.0
    %957 = vmatpush1.msra.mxu0 0.0
    %958 = vmatprep.subr.mxu0 0.0
    %959 = vmatpush1.msra.mxu0 0.0
    %960 = vmatprep.subr.mxu0 0.0
    %961 = vmatpush1.msra.mxu0 0.0
    %962 = vmatprep.subr.mxu0 0.0
    %963 = vmatpush1.msra.mxu0 0.0
    %964 = vmatprep.subr.mxu0 0.0
    %965 = vmatpush1.msra.mxu0 0.0
    %966 = vmatprep.subr.mxu0 0.0
    %967 = vmatpush1.msra.mxu0 0.0
    %968 = vmatprep.subr.mxu0 0.0
    %969 = vmatpush1.msra.mxu0 0.0
    %970 = vmatprep.subr.mxu0 0.0
    %971 = vmatpush1.msra.mxu0 0.0
    %972 = vmatprep.subr.mxu0 0.0
    %973 = vmatpush1.msra.mxu0 0.0
    %974 = vmatprep.subr.mxu0 0.0
    %975 = vmatpush1.msra.mxu0 0.0
    %976 = vmatprep.subr.mxu0 0.0
    %977 = vmatpush1.msra.mxu0 0.0
    %978 = vmatprep.subr.mxu0 0.0
    %979 = vmatpush1.msra.mxu0 0.0
    %980 = vmatprep.subr.mxu0 0.0
    %981 = vmatpush1.msra.mxu0 0.0
    %982 = vmatprep.subr.mxu0 0.0
    %983 = vmatpush1.msra.mxu0 0.0
    %984 = vmatprep.subr.mxu0 0.0
    %985 = vmatpush1.msra.mxu0 0.0
    %986 = vmatprep.subr.mxu0 0.0
    %987 = vmatpush1.msra.mxu0 0.0
    %988 = vmatprep.subr.mxu0 0.0
    %989 = vmatpush1.msra.mxu0 0.0
    %990 = vmatprep.subr.mxu0 0.0
    %991 = vmatpush1.msra.mxu0 0.0
    %992 = vmatprep.subr.mxu0 0.0
    %993 = vmatpush1.msra.mxu0 0.0
    %994 = vmatprep.subr.mxu0 0.0
    %995 = vmatpush1.msra.mxu0 0.0
    %996 = vmatprep.subr.mxu0 0.0
    %997 = vmatpush1.msra.mxu0 0.0
    %998 = vmatprep.subr.mxu0 0.0
    %999 = vmatpush1.msra.mxu0 0.0
    %1000 = vmatprep.subr.mxu0 0.0
    %1001 = vmatpush1.msra.mxu0 0.0
    %1002 = vmatprep.subr.mxu0 0.0
    %1003 = vmatpush1.msra.mxu0 0.0
    %1004 = vmatprep.subr.mxu0 0.0
    %1005 = vmatpush1.msra.mxu0 0.0
    %1006 = vmatprep.subr.mxu0 0.0
    %1007 = vmatpush1.msra.mxu0 0.0
    %1008 = vmatprep.mubr.f32.mxu0 0.0
    %1009 = vmatmul.mubr.f32.gmra.mrb[0].mxu0 %v782
    %v1010 = vpop.f32.mrb[0].mxu0
    %v1011 = vadd.f32 %v217, %v1010
    %v1012 = vpop.f32.mrb[0].mxu0
    %1013 = vdwg.mxu0
    %v1015 = vrot.slane %v1011, 4
    %v1017 = vmul.f32 %v933, %v1015
    %v1018 = vadd.f32 %v528, %v1017
    %v1019 = vtanh.pop %v1018
    %v1020 = vsub.f32 1.0, %v943
    %v1021 = vmul.f32 %v1020, %v1019
    %v1022 = vrot.slane %v780, 4
    %v1024 = vmul.f32 %v943, %v1022
    %v1025 = vadd.f32 %v1021, %v1024
    %v1027 = vrot.slane %v1025, 4
    %v1028 = vsel %vm546, %v1027, 0
    %1030 = vmatprep.subr.mxu0 0.0
    %1031 = vmatpush1.msra.mxu0 %v184
    %1032 = vmatprep.subr.mxu0 0.0
    %1033 = vmatpush1.msra.mxu0 %v185
    %1034 = vmatprep.subr.mxu0 0.0
    %1035 = vmatpush1.msra.mxu0 %v186
    %1036 = vmatprep.subr.mxu0 0.0
    %1037 = vmatpush1.msra.mxu0 %v187
    %1038 = vmatprep.subr.mxu0 0.0
    %1039 = vmatpush1.msra.mxu0 0.0
    %1040 = vmatprep.subr.mxu0 0.0
    %1041 = vmatpush1.msra.mxu0 0.0
    %1042 = vmatprep.subr.mxu0 0.0
    %1043 = vmatpush1.msra.mxu0 0.0
    %1044 = vmatprep.subr.mxu0 0.0
    %1045 = vmatpush1.msra.mxu0 0.0
    %1046 = vmatprep.subr.mxu0 0.0
    %1047 = vmatpush1.msra.mxu0 0.0
    %1048 = vmatprep.subr.mxu0 0.0
    %1049 = vmatpush1.msra.mxu0 0.0
    %1050 = vmatprep.subr.mxu0 0.0
    %1051 = vmatpush1.msra.mxu0 0.0
    %1052 = vmatprep.subr.mxu0 0.0
    %1053 = vmatpush1.msra.mxu0 0.0
    %1054 = vmatprep.subr.mxu0 0.0
    %1055 = vmatpush1.msra.mxu0 0.0
    %1056 = vmatprep.subr.mxu0 0.0
    %1057 = vmatpush1.msra.mxu0 0.0
    %1058 = vmatprep.subr.mxu0 0.0
    %1059 = vmatpush1.msra.mxu0 0.0
    %1060 = vmatprep.subr.mxu0 0.0
    %1061 = vmatpush1.msra.mxu0 0.0
    %1062 = vmatprep.subr.mxu0 0.0
    %1063 = vmatpush1.msra.mxu0 0.0
    %1064 = vmatprep.subr.mxu0 0.0
    %1065 = vmatpush1.msra.mxu0 0.0
    %1066 = vmatprep.subr.mxu0 0.0
    %1067 = vmatpush1.msra.mxu0 0.0
    %1068 = vmatprep.subr.mxu0 0.0
    %1069 = vmatpush1.msra.mxu0 0.0
    %1070 = vmatprep.subr.mxu0 0.0
    %1071 = vmatpush1.msra.mxu0 0.0
    %1072 = vmatprep.subr.mxu0 0.0
    %1073 = vmatpush1.msra.mxu0 0.0
    %1074 = vmatprep.subr.mxu0 0.0
    %1075 = vmatpush1.msra.mxu0 0.0
    %1076 = vmatprep.subr.mxu0 0.0
    %1077 = vmatpush1.msra.mxu0 0.0
    %1078 = vmatprep.subr.mxu0 0.0
    %1079 = vmatpush1.msra.mxu0 0.0
    %1080 = vmatprep.subr.mxu0 0.0
    %1081 = vmatpush1.msra.mxu0 0.0
    %1082 = vmatprep.subr.mxu0 0.0
    %1083 = vmatpush1.msra.mxu0 0.0
    %1084 = vmatprep.subr.mxu0 0.0
    %1085 = vmatpush1.msra.mxu0 0.0
    %1086 = vmatprep.subr.mxu0 0.0
    %1087 = vmatpush1.msra.mxu0 0.0
    %1088 = vmatprep.subr.mxu0 0.0
    %1089 = vmatpush1.msra.mxu0 0.0
    %1090 = vmatprep.subr.mxu0 0.0
    %1091 = vmatpush1.msra.mxu0 0.0
    %1092 = vmatprep.subr.mxu0 0.0
    %1093 = vmatpush1.msra.mxu0 0.0
    %1094 = vmatprep.mubr.f32.mxu0 0.0
    %1095 = vmatmul.mubr.f32.gmra.mrb[0].mxu0 %v1028
    %v1096 = vpop.f32.mrb[0].mxu0
    %v1097 = vadd.f32 0.0, %v1096
    %v1098 = vpop.f32.mrb[0].mxu0
    %1099 = vdwg.mxu0
    %1100 = vmatprep.subr.mxu0 0.0
    %1101 = vmatpush1.msra.mxu0 %v188
    %1102 = vmatprep.subr.mxu0 0.0
    %1103 = vmatpush1.msra.mxu0 %v189
    %1104 = vmatprep.subr.mxu0 0.0
    %1105 = vmatpush1.msra.mxu0 %v190
    %1106 = vmatprep.subr.mxu0 0.0
    %1107 = vmatpush1.msra.mxu0 %v191
    %1108 = vmatprep.subr.mxu0 0.0
    %1109 = vmatpush1.msra.mxu0 0.0
    %1110 = vmatprep.subr.mxu0 0.0
    %1111 = vmatpush1.msra.mxu0 0.0
    %1112 = vmatprep.subr.mxu0 0.0
    %1113 = vmatpush1.msra.mxu0 0.0
    %1114 = vmatprep.subr.mxu0 0.0
    %1115 = vmatpush1.msra.mxu0 0.0
    %1116 = vmatprep.subr.mxu0 0.0
    %1117 = vmatpush1.msra.mxu0 0.0
    %1118 = vmatprep.subr.mxu0 0.0
    %1119 = vmatpush1.msra.mxu0 0.0
    %1120 = vmatprep.subr.mxu0 0.0
    %1121 = vmatpush1.msra.mxu0 0.0
    %1122 = vmatprep.subr.mxu0 0.0
    %1123 = vmatpush1.msra.mxu0 0.0
    %1124 = vmatprep.subr.mxu0 0.0
    %1125 = vmatpush1.msra.mxu0 0.0
    %1126 = vmatprep.subr.mxu0 0.0
    %1127 = vmatpush1.msra.mxu0 0.0
    %1128 = vmatprep.subr.mxu0 0.0
    %1129 = vmatpush1.msra.mxu0 0.0
    %1130 = vmatprep.subr.mxu0 0.0
    %1131 = vmatpush1.msra.mxu0 0.0
    %1132 = vmatprep.subr.mxu0 0.0
    %1133 = vmatpush1.msra.mxu0 0.0
    %1134 = vmatprep.subr.mxu0 0.0
    %1135 = vmatpush1.msra.mxu0 0.0
    %1136 = vmatprep.subr.mxu0 0.0
    %1137 = vmatpush1.msra.mxu0 0.0
    %1138 = vmatprep.subr.mxu0 0.0
    %1139 = vmatpush1.msra.mxu0 0.0
    %1140 = vmatprep.subr.mxu0 0.0
    %1141 = vmatpush1.msra.mxu0 0.0
    %1142 = vmatprep.subr.mxu0 0.0
    %1143 = vmatpush1.msra.mxu0 0.0
    %1144 = vmatprep.subr.mxu0 0.0
    %1145 = vmatpush1.msra.mxu0 0.0
    %1146 = vmatprep.subr.mxu0 0.0
    %1147 = vmatpush1.msra.mxu0 0.0
    %1148 = vmatprep.subr.mxu0 0.0
    %1149 = vmatpush1.msra.mxu0 0.0
    %1150 = vmatprep.subr.mxu0 0.0
    %1151 = vmatpush1.msra.mxu0 0.0
    %1152 = vmatprep.subr.mxu0 0.0
    %1153 = vmatpush1.msra.mxu0 0.0
    %1154 = vmatprep.subr.mxu0 0.0
    %1155 = vmatpush1.msra.mxu0 0.0
    %1156 = vmatprep.subr.mxu0 0.0
    %1157 = vmatpush1.msra.mxu0 0.0
    %1158 = vmatprep.subr.mxu0 0.0
    %1159 = vmatpush1.msra.mxu0 0.0
    %1160 = vmatprep.subr.mxu0 0.0
    %1161 = vmatpush1.msra.mxu0 0.0
    %1162 = vmatprep.subr.mxu0 0.0
    %1163 = vmatpush1.msra.mxu0 0.0
    %1164 = vmatprep.mubr.f32.mxu0 0.0
    %1165 = vmatmul.mubr.f32.gmra.mrb[0].mxu0 %v1028
    %v1166 = vpop.f32.mrb[0].mxu0
    %v1167 = vadd.f32 0.0, %v1166
    %v1168 = vpop.f32.mrb[0].mxu0
    %1169 = vdwg.mxu0
    %v1170 = vadd.f32 %v345, %v1097
    %v1171 = vxor.u32 %v1170, 2147483648
    %v1172 = vmul.f32 %v1171, 1.442695
    %v1173 = vpow.pop %v1172
    %v1174 = vadd.f32 %v1173, 1.0
    %v1175 = vrcp.pop %v1174
    %v1176 = vmul.f32 1.0, %v1175
    %v1177 = vadd.f32 %v439, %v1167
    %v1178 = vxor.u32 %v1177, 2147483648
    %v1179 = vmul.f32 %v1178, 1.442695
    %v1180 = vpow.pop %v1179
    %v1181 = vadd.f32 %v1180, 1.0
    %v1182 = vrcp.pop %v1181
    %v1183 = vmul.f32 1.0, %v1182
    %1184 = vmatprep.subr.mxu0 0.0
    %1185 = vmatpush1.msra.mxu0 %v192
    %1186 = vmatprep.subr.mxu0 0.0
    %1187 = vmatpush1.msra.mxu0 %v193
    %1188 = vmatprep.subr.mxu0 0.0
    %1189 = vmatpush1.msra.mxu0 %v194
    %1190 = vmatprep.subr.mxu0 0.0
    %1191 = vmatpush1.msra.mxu0 %v195
    %1192 = vmatprep.subr.mxu0 0.0
    %1193 = vmatpush1.msra.mxu0 0.0
    %1194 = vmatprep.subr.mxu0 0.0
    %1195 = vmatpush1.msra.mxu0 0.0
    %1196 = vmatprep.subr.mxu0 0.0
    %1197 = vmatpush1.msra.mxu0 0.0
    %1198 = vmatprep.subr.mxu0 0.0
    %1199 = vmatpush1.msra.mxu0 0.0
    %1200 = vmatprep.subr.mxu0 0.0
    %1201 = vmatpush1.msra.mxu0 0.0
    %1202 = vmatprep.subr.mxu0 0.0
    %1203 = vmatpush1.msra.mxu0 0.0
    %1204 = vmatprep.subr.mxu0 0.0
    %1205 = vmatpush1.msra.mxu0 0.0
    %1206 = vmatprep.subr.mxu0 0.0
    %1207 = vmatpush1.msra.mxu0 0.0
    %1208 = vmatprep.subr.mxu0 0.0
    %1209 = vmatpush1.msra.mxu0 0.0
    %1210 = vmatprep.subr.mxu0 0.0
    %1211 = vmatpush1.msra.mxu0 0.0
    %1212 = vmatprep.subr.mxu0 0.0
    %1213 = vmatpush1.msra.mxu0 0.0
    %1214 = vmatprep.subr.mxu0 0.0
    %1215 = vmatpush1.msra.mxu0 0.0
    %1216 = vmatprep.subr.mxu0 0.0
    %1217 = vmatpush1.msra.mxu0 0.0
    %1218 = vmatprep.subr.mxu0 0.0
    %1219 = vmatpush1.msra.mxu0 0.0
    %1220 = vmatprep.subr.mxu0 0.0
    %1221 = vmatpush1.msra.mxu0 0.0
    %1222 = vmatprep.subr.mxu0 0.0
    %1223 = vmatpush1.msra.mxu0 0.0
    %1224 = vmatprep.subr.mxu0 0.0
    %1225 = vmatpush1.msra.mxu0 0.0
    %1226 = vmatprep.subr.mxu0 0.0
    %1227 = vmatpush1.msra.mxu0 0.0
    %1228 = vmatprep.subr.mxu0 0.0
    %1229 = vmatpush1.msra.mxu0 0.0
    %1230 = vmatprep.subr.mxu0 0.0
    %1231 = vmatpush1.msra.mxu0 0.0
    %1232 = vmatprep.subr.mxu0 0.0
    %1233 = vmatpush1.msra.mxu0 0.0
    %1234 = vmatprep.subr.mxu0 0.0
    %1235 = vmatpush1.msra.mxu0 0.0
    %1236 = vmatprep.subr.mxu0 0.0
    %1237 = vmatpush1.msra.mxu0 0.0
    %1238 = vmatprep.subr.mxu0 0.0
    %1239 = vmatpush1.msra.mxu0 0.0
    %1240 = vmatprep.subr.mxu0 0.0
    %1241 = vmatpush1.msra.mxu0 0.0
    %1242 = vmatprep.subr.mxu0 0.0
    %1243 = vmatpush1.msra.mxu0 0.0
    %1244 = vmatprep.subr.mxu0 0.0
    %1245 = vmatpush1.msra.mxu0 0.0
    %1246 = vmatprep.subr.mxu0 0.0
    %1247 = vmatpush1.msra.mxu0 0.0
    %1248 = vmatprep.mubr.f32.mxu0 0.0
    %1249 = vmatmul.mubr.f32.gmra.mrb[0].mxu0 %v1028
    %v1250 = vpop.f32.mrb[0].mxu0
    %v1251 = vadd.f32 %v217, %v1250
    %v1252 = vpop.f32.mrb[0].mxu0
    %1253 = vdwg.mxu0
    %v1254 = vmul.f32 %v1176, %v1251
    %v1255 = vadd.f32 %v533, %v1254
    %v1256 = vtanh.pop %v1255
    %v1257 = vsub.f32 1.0, %v1183
    %v1258 = vmul.f32 %v1257, %v1256
    %v1260 = vmul.f32 %v1183, %v1027
    %v1261 = vadd.f32 %v1258, %v1260
    %v1263 = vsel %vm546, %v1261, 0
    %1265 = vmatprep.subr.mxu0 0.0
    %1266 = vmatpush1.msra.mxu0 %v184
    %1267 = vmatprep.subr.mxu0 0.0
    %1268 = vmatpush1.msra.mxu0 %v185
    %1269 = vmatprep.subr.mxu0 0.0
    %1270 = vmatpush1.msra.mxu0 %v186
    %1271 = vmatprep.subr.mxu0 0.0
    %1272 = vmatpush1.msra.mxu0 %v187
    %1273 = vmatprep.subr.mxu0 0.0
    %1274 = vmatpush1.msra.mxu0 0.0
    %1275 = vmatprep.subr.mxu0 0.0
    %1276 = vmatpush1.msra.mxu0 0.0
    %1277 = vmatprep.subr.mxu0 0.0
    %1278 = vmatpush1.msra.mxu0 0.0
    %1279 = vmatprep.subr.mxu0 0.0
    %1280 = vmatpush1.msra.mxu0 0.0
    %1281 = vmatprep.subr.mxu0 0.0
    %1282 = vmatpush1.msra.mxu0 0.0
    %1283 = vmatprep.subr.mxu0 0.0
    %1284 = vmatpush1.msra.mxu0 0.0
    %1285 = vmatprep.subr.mxu0 0.0
    %1286 = vmatpush1.msra.mxu0 0.0
    %1287 = vmatprep.subr.mxu0 0.0
    %1288 = vmatpush1.msra.mxu0 0.0
    %1289 = vmatprep.subr.mxu0 0.0
    %1290 = vmatpush1.msra.mxu0 0.0
    %1291 = vmatprep.subr.mxu0 0.0
    %1292 = vmatpush1.msra.mxu0 0.0
    %1293 = vmatprep.subr.mxu0 0.0
    %1294 = vmatpush1.msra.mxu0 0.0
    %1295 = vmatprep.subr.mxu0 0.0
    %1296 = vmatpush1.msra.mxu0 0.0
    %1297 = vmatprep.subr.mxu0 0.0
    %1298 = vmatpush1.msra.mxu0 0.0
    %1299 = vmatprep.subr.mxu0 0.0
    %1300 = vmatpush1.msra.mxu0 0.0
    %1301 = vmatprep.subr.mxu0 0.0
    %1302 = vmatpush1.msra.mxu0 0.0
    %1303 = vmatprep.subr.mxu0 0.0
    %1304 = vmatpush1.msra.mxu0 0.0
    %1305 = vmatprep.subr.mxu0 0.0
    %1306 = vmatpush1.msra.mxu0 0.0
    %1307 = vmatprep.subr.mxu0 0.0
    %1308 = vmatpush1.msra.mxu0 0.0
    %1309 = vmatprep.subr.mxu0 0.0
    %1310 = vmatpush1.msra.mxu0 0.0
    %1311 = vmatprep.subr.mxu0 0.0
    %1312 = vmatpush1.msra.mxu0 0.0
    %1313 = vmatprep.subr.mxu0 0.0
    %1314 = vmatpush1.msra.mxu0 0.0
    %1315 = vmatprep.subr.mxu0 0.0
    %1316 = vmatpush1.msra.mxu0 0.0
    %1317 = vmatprep.subr.mxu0 0.0
    %1318 = vmatpush1.msra.mxu0 0.0
    %1319 = vmatprep.subr.mxu0 0.0
    %1320 = vmatpush1.msra.mxu0 0.0
    %1321 = vmatprep.subr.mxu0 0.0
    %1322 = vmatpush1.msra.mxu0 0.0
    %1323 = vmatprep.subr.mxu0 0.0
    %1324 = vmatpush1.msra.mxu0 0.0
    %1325 = vmatprep.subr.mxu0 0.0
    %1326 = vmatpush1.msra.mxu0 0.0
    %1327 = vmatprep.subr.mxu0 0.0
    %1328 = vmatpush1.msra.mxu0 0.0
    %1329 = vmatprep.mubr.f32.mxu0 0.0
    %1330 = vmatmul.mubr.f32.gmra.mrb[0].mxu0 %v1263
    %v1331 = vpop.f32.mrb[0].mxu0
    %v1332 = vadd.f32 0.0, %v1331
    %v1333 = vpop.f32.mrb[0].mxu0
    %1334 = vdwg.mxu0
    %1335 = vmatprep.subr.mxu0 0.0
    %1336 = vmatpush1.msra.mxu0 %v188
    %1337 = vmatprep.subr.mxu0 0.0
    %1338 = vmatpush1.msra.mxu0 %v189
    %1339 = vmatprep.subr.mxu0 0.0
    %1340 = vmatpush1.msra.mxu0 %v190
    %1341 = vmatprep.subr.mxu0 0.0
    %1342 = vmatpush1.msra.mxu0 %v191
    %1343 = vmatprep.subr.mxu0 0.0
    %1344 = vmatpush1.msra.mxu0 0.0
    %1345 = vmatprep.subr.mxu0 0.0
    %1346 = vmatpush1.msra.mxu0 0.0
    %1347 = vmatprep.subr.mxu0 0.0
    %1348 = vmatpush1.msra.mxu0 0.0
    %1349 = vmatprep.subr.mxu0 0.0
    %1350 = vmatpush1.msra.mxu0 0.0
    %1351 = vmatprep.subr.mxu0 0.0
    %1352 = vmatpush1.msra.mxu0 0.0
    %1353 = vmatprep.subr.mxu0 0.0
    %1354 = vmatpush1.msra.mxu0 0.0
    %1355 = vmatprep.subr.mxu0 0.0
    %1356 = vmatpush1.msra.mxu0 0.0
    %1357 = vmatprep.subr.mxu0 0.0
    %1358 = vmatpush1.msra.mxu0 0.0
    %1359 = vmatprep.subr.mxu0 0.0
    %1360 = vmatpush1.msra.mxu0 0.0
    %1361 = vmatprep.subr.mxu0 0.0
    %1362 = vmatpush1.msra.mxu0 0.0
    %1363 = vmatprep.subr.mxu0 0.0
    %1364 = vmatpush1.msra.mxu0 0.0
    %1365 = vmatprep.subr.mxu0 0.0
    %1366 = vmatpush1.msra.mxu0 0.0
    %1367 = vmatprep.subr.mxu0 0.0
    %1368 = vmatpush1.msra.mxu0 0.0
    %1369 = vmatprep.subr.mxu0 0.0
    %1370 = vmatpush1.msra.mxu0 0.0
    %1371 = vmatprep.subr.mxu0 0.0
    %1372 = vmatpush1.msra.mxu0 0.0
    %1373 = vmatprep.subr.mxu0 0.0
    %1374 = vmatpush1.msra.mxu0 0.0
    %1375 = vmatprep.subr.mxu0 0.0
    %1376 = vmatpush1.msra.mxu0 0.0
    %1377 = vmatprep.subr.mxu0 0.0
    %1378 = vmatpush1.msra.mxu0 0.0
    %1379 = vmatprep.subr.mxu0 0.0
    %1380 = vmatpush1.msra.mxu0 0.0
    %1381 = vmatprep.subr.mxu0 0.0
    %1382 = vmatpush1.msra.mxu0 0.0
    %1383 = vmatprep.subr.mxu0 0.0
    %1384 = vmatpush1.msra.mxu0 0.0
    %1385 = vmatprep.subr.mxu0 0.0
    %1386 = vmatpush1.msra.mxu0 0.0
    %1387 = vmatprep.subr.mxu0 0.0
    %1388 = vmatpush1.msra.mxu0 0.0
    %1389 = vmatprep.subr.mxu0 0.0
    %1390 = vmatpush1.msra.mxu0 0.0
    %1391 = vmatprep.subr.mxu0 0.0
    %1392 = vmatpush1.msra.mxu0 0.0
    %1393 = vmatprep.subr.mxu0 0.0
    %1394 = vmatpush1.msra.mxu0 0.0
    %1395 = vmatprep.subr.mxu0 0.0
    %1396 = vmatpush1.msra.mxu0 0.0
    %1397 = vmatprep.subr.mxu0 0.0
    %1398 = vmatpush1.msra.mxu0 0.0
    %1399 = vmatprep.mubr.f32.mxu0 0.0
    %1400 = vmatmul.mubr.f32.gmra.mrb[0].mxu0 %v1263
    %v1401 = vpop.f32.mrb[0].mxu0
    %v1402 = vadd.f32 0.0, %v1401
    %v1403 = vpop.f32.mrb[0].mxu0
    %1404 = vdwg.mxu0
    %v1406 = vrot.slane %v1332, 4
    %v1408 = vadd.f32 %v345, %v1406
    %v1409 = vxor.u32 %v1408, 2147483648
    %v1410 = vmul.f32 %v1409, 1.442695
    %v1411 = vpow.pop %v1410
    %v1412 = vadd.f32 %v1411, 1.0
    %v1413 = vrcp.pop %v1412
    %v1414 = vmul.f32 1.0, %v1413
    %v1416 = vrot.slane %v1402, 4
    %v1418 = vadd.f32 %v439, %v1416
    %v1419 = vxor.u32 %v1418, 2147483648
    %v1420 = vmul.f32 %v1419, 1.442695
    %v1421 = vpow.pop %v1420
    %v1422 = vadd.f32 %v1421, 1.0
    %v1423 = vrcp.pop %v1422
    %v1424 = vmul.f32 1.0, %v1423
    %1425 = vmatprep.subr.mxu0 0.0
    %1426 = vmatpush1.msra.mxu0 %v192
    %1427 = vmatprep.subr.mxu0 0.0
    %1428 = vmatpush1.msra.mxu0 %v193
    %1429 = vmatprep.subr.mxu0 0.0
    %1430 = vmatpush1.msra.mxu0 %v194
    %1431 = vmatprep.subr.mxu0 0.0
    %1432 = vmatpush1.msra.mxu0 %v195
    %1433 = vmatprep.subr.mxu0 0.0
    %1434 = vmatpush1.msra.mxu0 0.0
    %1435 = vmatprep.subr.mxu0 0.0
    %1436 = vmatpush1.msra.mxu0 0.0
    %1437 = vmatprep.subr.mxu0 0.0
    %1438 = vmatpush1.msra.mxu0 0.0
    %1439 = vmatprep.subr.mxu0 0.0
    %1440 = vmatpush1.msra.mxu0 0.0
    %1441 = vmatprep.subr.mxu0 0.0
    %1442 = vmatpush1.msra.mxu0 0.0
    %1443 = vmatprep.subr.mxu0 0.0
    %1444 = vmatpush1.msra.mxu0 0.0
    %1445 = vmatprep.subr.mxu0 0.0
    %1446 = vmatpush1.msra.mxu0 0.0
    %1447 = vmatprep.subr.mxu0 0.0
    %1448 = vmatpush1.msra.mxu0 0.0
    %1449 = vmatprep.subr.mxu0 0.0
    %1450 = vmatpush1.msra.mxu0 0.0
    %1451 = vmatprep.subr.mxu0 0.0
    %1452 = vmatpush1.msra.mxu0 0.0
    %1453 = vmatprep.subr.mxu0 0.0
    %1454 = vmatpush1.msra.mxu0 0.0
    %1455 = vmatprep.subr.mxu0 0.0
    %1456 = vmatpush1.msra.mxu0 0.0
    %1457 = vmatprep.subr.mxu0 0.0
    %1458 = vmatpush1.msra.mxu0 0.0
    %1459 = vmatprep.subr.mxu0 0.0
    %1460 = vmatpush1.msra.mxu0 0.0
    %1461 = vmatprep.subr.mxu0 0.0
    %1462 = vmatpush1.msra.mxu0 0.0
    %1463 = vmatprep.subr.mxu0 0.0
    %1464 = vmatpush1.msra.mxu0 0.0
    %1465 = vmatprep.subr.mxu0 0.0
    %1466 = vmatpush1.msra.mxu0 0.0
    %1467 = vmatprep.subr.mxu0 0.0
    %1468 = vmatpush1.msra.mxu0 0.0
    %1469 = vmatprep.subr.mxu0 0.0
    %1470 = vmatpush1.msra.mxu0 0.0
    %1471 = vmatprep.subr.mxu0 0.0
    %1472 = vmatpush1.msra.mxu0 0.0
    %1473 = vmatprep.subr.mxu0 0.0
    %1474 = vmatpush1.msra.mxu0 0.0
    %1475 = vmatprep.subr.mxu0 0.0
    %1476 = vmatpush1.msra.mxu0 0.0
    %1477 = vmatprep.subr.mxu0 0.0
    %1478 = vmatpush1.msra.mxu0 0.0
    %1479 = vmatprep.subr.mxu0 0.0
    %1480 = vmatpush1.msra.mxu0 0.0
    %1481 = vmatprep.subr.mxu0 0.0
    %1482 = vmatpush1.msra.mxu0 0.0
    %1483 = vmatprep.subr.mxu0 0.0
    %1484 = vmatpush1.msra.mxu0 0.0
    %1485 = vmatprep.subr.mxu0 0.0
    %1486 = vmatpush1.msra.mxu0 0.0
    %1487 = vmatprep.subr.mxu0 0.0
    %1488 = vmatpush1.msra.mxu0 0.0
    %1489 = vmatprep.mubr.f32.mxu0 0.0
    %1490 = vmatmul.mubr.f32.gmra.mrb[0].mxu0 %v1263
    %v1491 = vpop.f32.mrb[0].mxu0
    %v1492 = vadd.f32 %v217, %v1491
    %v1493 = vpop.f32.mrb[0].mxu0
    %1494 = vdwg.mxu0
    %v1496 = vrot.slane %v1492, 4
    %v1498 = vmul.f32 %v1414, %v1496
    %v1499 = vadd.f32 %v533, %v1498
    %v1500 = vtanh.pop %v1499
    %v1501 = vsub.f32 1.0, %v1424
    %v1502 = vmul.f32 %v1501, %v1500
    %v1503 = vrot.slane %v1261, 4
    %v1505 = vmul.f32 %v1424, %v1503
    %v1506 = vadd.f32 %v1502, %v1505
    %v1508 = vrot.slane %v1506, 4
    %v1509 = vsel %vm546, %v1508, 0
    %1511 = vmatprep.subr.mxu0 0.0
    %1512 = vmatpush1.msra.mxu0 %v184
    %1513 = vmatprep.subr.mxu0 0.0
    %1514 = vmatpush1.msra.mxu0 %v185
    %1515 = vmatprep.subr.mxu0 0.0
    %1516 = vmatpush1.msra.mxu0 %v186
    %1517 = vmatprep.subr.mxu0 0.0
    %1518 = vmatpush1.msra.mxu0 %v187
    %1519 = vmatprep.subr.mxu0 0.0
    %1520 = vmatpush1.msra.mxu0 0.0
    %1521 = vmatprep.subr.mxu0 0.0
    %1522 = vmatpush1.msra.mxu0 0.0
    %1523 = vmatprep.subr.mxu0 0.0
    %1524 = vmatpush1.msra.mxu0 0.0
    %1525 = vmatprep.subr.mxu0 0.0
    %1526 = vmatpush1.msra.mxu0 0.0
    %1527 = vmatprep.subr.mxu0 0.0
    %1528 = vmatpush1.msra.mxu0 0.0
    %1529 = vmatprep.subr.mxu0 0.0
    %1530 = vmatpush1.msra.mxu0 0.0
    %1531 = vmatprep.subr.mxu0 0.0
    %1532 = vmatpush1.msra.mxu0 0.0
    %1533 = vmatprep.subr.mxu0 0.0
    %1534 = vmatpush1.msra.mxu0 0.0
    %1535 = vmatprep.subr.mxu0 0.0
    %1536 = vmatpush1.msra.mxu0 0.0
    %1537 = vmatprep.subr.mxu0 0.0
    %1538 = vmatpush1.msra.mxu0 0.0
    %1539 = vmatprep.subr.mxu0 0.0
    %1540 = vmatpush1.msra.mxu0 0.0
    %1541 = vmatprep.subr.mxu0 0.0
    %1542 = vmatpush1.msra.mxu0 0.0
    %1543 = vmatprep.subr.mxu0 0.0
    %1544 = vmatpush1.msra.mxu0 0.0
    %1545 = vmatprep.subr.mxu0 0.0
    %1546 = vmatpush1.msra.mxu0 0.0
    %1547 = vmatprep.subr.mxu0 0.0
    %1548 = vmatpush1.msra.mxu0 0.0
    %1549 = vmatprep.subr.mxu0 0.0
    %1550 = vmatpush1.msra.mxu0 0.0
    %1551 = vmatprep.subr.mxu0 0.0
    %1552 = vmatpush1.msra.mxu0 0.0
    %1553 = vmatprep.subr.mxu0 0.0
    %1554 = vmatpush1.msra.mxu0 0.0
    %1555 = vmatprep.subr.mxu0 0.0
    %1556 = vmatpush1.msra.mxu0 0.0
    %1557 = vmatprep.subr.mxu0 0.0
    %1558 = vmatpush1.msra.mxu0 0.0
    %1559 = vmatprep.subr.mxu0 0.0
    %1560 = vmatpush1.msra.mxu0 0.0
    %1561 = vmatprep.subr.mxu0 0.0
    %1562 = vmatpush1.msra.mxu0 0.0
    %1563 = vmatprep.subr.mxu0 0.0
    %1564 = vmatpush1.msra.mxu0 0.0
    %1565 = vmatprep.subr.mxu0 0.0
    %1566 = vmatpush1.msra.mxu0 0.0
    %1567 = vmatprep.subr.mxu0 0.0
    %1568 = vmatpush1.msra.mxu0 0.0
    %1569 = vmatprep.subr.mxu0 0.0
    %1570 = vmatpush1.msra.mxu0 0.0
    %1571 = vmatprep.subr.mxu0 0.0
    %1572 = vmatpush1.msra.mxu0 0.0
    %1573 = vmatprep.subr.mxu0 0.0
    %1574 = vmatpush1.msra.mxu0 0.0
    %1575 = vmatprep.mubr.f32.mxu0 0.0
    %1576 = vmatmul.mubr.f32.gmra.mrb[0].mxu0 %v1509
    %v1577 = vpop.f32.mrb[0].mxu0
    %v1578 = vadd.f32 0.0, %v1577
    %v1579 = vpop.f32.mrb[0].mxu0
    %1580 = vdwg.mxu0
    %1581 = vmatprep.subr.mxu0 0.0
    %1582 = vmatpush1.msra.mxu0 %v188
    %1583 = vmatprep.subr.mxu0 0.0
    %1584 = vmatpush1.msra.mxu0 %v189
    %1585 = vmatprep.subr.mxu0 0.0
    %1586 = vmatpush1.msra.mxu0 %v190
    %1587 = vmatprep.subr.mxu0 0.0
    %1588 = vmatpush1.msra.mxu0 %v191
    %1589 = vmatprep.subr.mxu0 0.0
    %1590 = vmatpush1.msra.mxu0 0.0
    %1591 = vmatprep.subr.mxu0 0.0
    %1592 = vmatpush1.msra.mxu0 0.0
    %1593 = vmatprep.subr.mxu0 0.0
    %1594 = vmatpush1.msra.mxu0 0.0
    %1595 = vmatprep.subr.mxu0 0.0
    %1596 = vmatpush1.msra.mxu0 0.0
    %1597 = vmatprep.subr.mxu0 0.0
    %1598 = vmatpush1.msra.mxu0 0.0
    %1599 = vmatprep.subr.mxu0 0.0
    %1600 = vmatpush1.msra.mxu0 0.0
    %1601 = vmatprep.subr.mxu0 0.0
    %1602 = vmatpush1.msra.mxu0 0.0
    %1603 = vmatprep.subr.mxu0 0.0
    %1604 = vmatpush1.msra.mxu0 0.0
    %1605 = vmatprep.subr.mxu0 0.0
    %1606 = vmatpush1.msra.mxu0 0.0
    %1607 = vmatprep.subr.mxu0 0.0
    %1608 = vmatpush1.msra.mxu0 0.0
    %1609 = vmatprep.subr.mxu0 0.0
    %1610 = vmatpush1.msra.mxu0 0.0
    %1611 = vmatprep.subr.mxu0 0.0
    %1612 = vmatpush1.msra.mxu0 0.0
    %1613 = vmatprep.subr.mxu0 0.0
    %1614 = vmatpush1.msra.mxu0 0.0
    %1615 = vmatprep.subr.mxu0 0.0
    %1616 = vmatpush1.msra.mxu0 0.0
    %1617 = vmatprep.subr.mxu0 0.0
    %1618 = vmatpush1.msra.mxu0 0.0
    %1619 = vmatprep.subr.mxu0 0.0
    %1620 = vmatpush1.msra.mxu0 0.0
    %1621 = vmatprep.subr.mxu0 0.0
    %1622 = vmatpush1.msra.mxu0 0.0
    %1623 = vmatprep.subr.mxu0 0.0
    %1624 = vmatpush1.msra.mxu0 0.0
    %1625 = vmatprep.subr.mxu0 0.0
    %1626 = vmatpush1.msra.mxu0 0.0
    %1627 = vmatprep.subr.mxu0 0.0
    %1628 = vmatpush1.msra.mxu0 0.0
    %1629 = vmatprep.subr.mxu0 0.0
    %1630 = vmatpush1.msra.mxu0 0.0
    %1631 = vmatprep.subr.mxu0 0.0
    %1632 = vmatpush1.msra.mxu0 0.0
    %1633 = vmatprep.subr.mxu0 0.0
    %1634 = vmatpush1.msra.mxu0 0.0
    %1635 = vmatprep.subr.mxu0 0.0
    %1636 = vmatpush1.msra.mxu0 0.0
    %1637 = vmatprep.subr.mxu0 0.0
    %1638 = vmatpush1.msra.mxu0 0.0
    %1639 = vmatprep.subr.mxu0 0.0
    %1640 = vmatpush1.msra.mxu0 0.0
    %1641 = vmatprep.subr.mxu0 0.0
    %1642 = vmatpush1.msra.mxu0 0.0
    %1643 = vmatprep.subr.mxu0 0.0
    %1644 = vmatpush1.msra.mxu0 0.0
    %1645 = vmatprep.mubr.f32.mxu0 0.0
    %1646 = vmatmul.mubr.f32.gmra.mrb[0].mxu0 %v1509
    %v1647 = vpop.f32.mrb[0].mxu0
    %v1648 = vadd.f32 0.0, %v1647
    %v1649 = vpop.f32.mrb[0].mxu0
    %1650 = vdwg.mxu0
    %v1651 = vadd.f32 %v350, %v1578
    %v1652 = vxor.u32 %v1651, 2147483648
    %v1653 = vmul.f32 %v1652, 1.442695
    %v1654 = vpow.pop %v1653
    %v1655 = vadd.f32 %v1654, 1.0
    %v1656 = vrcp.pop %v1655
    %v1657 = vmul.f32 1.0, %v1656
    %v1658 = vadd.f32 %v444, %v1648
    %v1659 = vxor.u32 %v1658, 2147483648
    %v1660 = vmul.f32 %v1659, 1.442695
    %v1661 = vpow.pop %v1660
    %v1662 = vadd.f32 %v1661, 1.0
    %v1663 = vrcp.pop %v1662
    %v1664 = vmul.f32 1.0, %v1663
    %1665 = vmatprep.subr.mxu0 0.0
    %1666 = vmatpush1.msra.mxu0 %v192
    %1667 = vmatprep.subr.mxu0 0.0
    %1668 = vmatpush1.msra.mxu0 %v193
    %1669 = vmatprep.subr.mxu0 0.0
    %1670 = vmatpush1.msra.mxu0 %v194
    %1671 = vmatprep.subr.mxu0 0.0
    %1672 = vmatpush1.msra.mxu0 %v195
    %1673 = vmatprep.subr.mxu0 0.0
    %1674 = vmatpush1.msra.mxu0 0.0
    %1675 = vmatprep.subr.mxu0 0.0
    %1676 = vmatpush1.msra.mxu0 0.0
    %1677 = vmatprep.subr.mxu0 0.0
    %1678 = vmatpush1.msra.mxu0 0.0
    %1679 = vmatprep.subr.mxu0 0.0
    %1680 = vmatpush1.msra.mxu0 0.0
    %1681 = vmatprep.subr.mxu0 0.0
    %1682 = vmatpush1.msra.mxu0 0.0
    %1683 = vmatprep.subr.mxu0 0.0
    %1684 = vmatpush1.msra.mxu0 0.0
    %1685 = vmatprep.subr.mxu0 0.0
    %1686 = vmatpush1.msra.mxu0 0.0
    %1687 = vmatprep.subr.mxu0 0.0
    %1688 = vmatpush1.msra.mxu0 0.0
    %1689 = vmatprep.subr.mxu0 0.0
    %1690 = vmatpush1.msra.mxu0 0.0
    %1691 = vmatprep.subr.mxu0 0.0
    %1692 = vmatpush1.msra.mxu0 0.0
    %1693 = vmatprep.subr.mxu0 0.0
    %1694 = vmatpush1.msra.mxu0 0.0
    %1695 = vmatprep.subr.mxu0 0.0
    %1696 = vmatpush1.msra.mxu0 0.0
    %1697 = vmatprep.subr.mxu0 0.0
    %1698 = vmatpush1.msra.mxu0 0.0
    %1699 = vmatprep.subr.mxu0 0.0
    %1700 = vmatpush1.msra.mxu0 0.0
    %1701 = vmatprep.subr.mxu0 0.0
    %1702 = vmatpush1.msra.mxu0 0.0
    %1703 = vmatprep.subr.mxu0 0.0
    %1704 = vmatpush1.msra.mxu0 0.0
    %1705 = vmatprep.subr.mxu0 0.0
    %1706 = vmatpush1.msra.mxu0 0.0
    %1707 = vmatprep.subr.mxu0 0.0
    %1708 = vmatpush1.msra.mxu0 0.0
    %1709 = vmatprep.subr.mxu0 0.0
    %1710 = vmatpush1.msra.mxu0 0.0
    %1711 = vmatprep.subr.mxu0 0.0
    %1712 = vmatpush1.msra.mxu0 0.0
    %1713 = vmatprep.subr.mxu0 0.0
    %1714 = vmatpush1.msra.mxu0 0.0
    %1715 = vmatprep.subr.mxu0 0.0
    %1716 = vmatpush1.msra.mxu0 0.0
    %1717 = vmatprep.subr.mxu0 0.0
    %1718 = vmatpush1.msra.mxu0 0.0
    %1719 = vmatprep.subr.mxu0 0.0
    %1720 = vmatpush1.msra.mxu0 0.0
    %1721 = vmatprep.subr.mxu0 0.0
    %1722 = vmatpush1.msra.mxu0 0.0
    %1723 = vmatprep.subr.mxu0 0.0
    %1724 = vmatpush1.msra.mxu0 0.0
    %1725 = vmatprep.subr.mxu0 0.0
    %1726 = vmatpush1.msra.mxu0 0.0
    %1727 = vmatprep.subr.mxu0 0.0
    %1728 = vmatpush1.msra.mxu0 0.0
    %1729 = vmatprep.mubr.f32.mxu0 0.0
    %1730 = vmatmul.mubr.f32.gmra.mrb[0].mxu0 %v1509
    %v1731 = vpop.f32.mrb[0].mxu0
    %v1732 = vadd.f32 %v217, %v1731
    %v1733 = vpop.f32.mrb[0].mxu0
    %1734 = vdwg.mxu0
    %v1735 = vmul.f32 %v1657, %v1732
    %v1736 = vadd.f32 %v538, %v1735
    %v1737 = vtanh.pop %v1736
    %v1738 = vsub.f32 1.0, %v1664
    %v1739 = vmul.f32 %v1738, %v1737
    %v1741 = vmul.f32 %v1664, %v1508
    %v1742 = vadd.f32 %v1739, %v1741
    %v1744 = vsel %vm546, %v1742, 0
    %1746 = vmatprep.subr.mxu0 0.0
    %1747 = vmatpush1.msra.mxu0 %v184
    %1748 = vmatprep.subr.mxu0 0.0
    %1749 = vmatpush1.msra.mxu0 %v185
    %1750 = vmatprep.subr.mxu0 0.0
    %1751 = vmatpush1.msra.mxu0 %v186
    %1752 = vmatprep.subr.mxu0 0.0
    %1753 = vmatpush1.msra.mxu0 %v187
    %1754 = vmatprep.subr.mxu0 0.0
    %1755 = vmatpush1.msra.mxu0 0.0
    %1756 = vmatprep.subr.mxu0 0.0
    %1757 = vmatpush1.msra.mxu0 0.0
    %1758 = vmatprep.subr.mxu0 0.0
    %1759 = vmatpush1.msra.mxu0 0.0
    %1760 = vmatprep.subr.mxu0 0.0
    %1761 = vmatpush1.msra.mxu0 0.0
    %1762 = vmatprep.subr.mxu0 0.0
    %1763 = vmatpush1.msra.mxu0 0.0
    %1764 = vmatprep.subr.mxu0 0.0
    %1765 = vmatpush1.msra.mxu0 0.0
    %1766 = vmatprep.subr.mxu0 0.0
    %1767 = vmatpush1.msra.mxu0 0.0
    %1768 = vmatprep.subr.mxu0 0.0
    %1769 = vmatpush1.msra.mxu0 0.0
    %1770 = vmatprep.subr.mxu0 0.0
    %1771 = vmatpush1.msra.mxu0 0.0
    %1772 = vmatprep.subr.mxu0 0.0
    %1773 = vmatpush1.msra.mxu0 0.0
    %1774 = vmatprep.subr.mxu0 0.0
    %1775 = vmatpush1.msra.mxu0 0.0
    %1776 = vmatprep.subr.mxu0 0.0
    %1777 = vmatpush1.msra.mxu0 0.0
    %1778 = vmatprep.subr.mxu0 0.0
    %1779 = vmatpush1.msra.mxu0 0.0
    %1780 = vmatprep.subr.mxu0 0.0
    %1781 = vmatpush1.msra.mxu0 0.0
    %1782 = vmatprep.subr.mxu0 0.0
    %1783 = vmatpush1.msra.mxu0 0.0
    %1784 = vmatprep.subr.mxu0 0.0
    %1785 = vmatpush1.msra.mxu0 0.0
    %1786 = vmatprep.subr.mxu0 0.0
    %1787 = vmatpush1.msra.mxu0 0.0
    %1788 = vmatprep.subr.mxu0 0.0
    %1789 = vmatpush1.msra.mxu0 0.0
    %1790 = vmatprep.subr.mxu0 0.0
    %1791 = vmatpush1.msra.mxu0 0.0
    %1792 = vmatprep.subr.mxu0 0.0
    %1793 = vmatpush1.msra.mxu0 0.0
    %1794 = vmatprep.subr.mxu0 0.0
    %1795 = vmatpush1.msra.mxu0 0.0
    %1796 = vmatprep.subr.mxu0 0.0
    %1797 = vmatpush1.msra.mxu0 0.0
    %1798 = vmatprep.subr.mxu0 0.0
    %1799 = vmatpush1.msra.mxu0 0.0
    %1800 = vmatprep.subr.mxu0 0.0
    %1801 = vmatpush1.msra.mxu0 0.0
    %1802 = vmatprep.subr.mxu0 0.0
    %1803 = vmatpush1.msra.mxu0 0.0
    %1804 = vmatprep.subr.mxu0 0.0
    %1805 = vmatpush1.msra.mxu0 0.0
    %1806 = vmatprep.subr.mxu0 0.0
    %1807 = vmatpush1.msra.mxu0 0.0
    %1808 = vmatprep.subr.mxu0 0.0
    %1809 = vmatpush1.msra.mxu0 0.0
    %1810 = vmatprep.mubr.f32.mxu0 0.0
    %1811 = vmatmul.mubr.f32.gmra.mrb[0].mxu0 %v1744
    %v1812 = vpop.f32.mrb[0].mxu0
    %v1813 = vadd.f32 0.0, %v1812
    %v1814 = vpop.f32.mrb[0].mxu0
    %1815 = vdwg.mxu0
    %1816 = vmatprep.subr.mxu0 0.0
    %1817 = vmatpush1.msra.mxu0 %v188
    %1818 = vmatprep.subr.mxu0 0.0
    %1819 = vmatpush1.msra.mxu0 %v189
    %1820 = vmatprep.subr.mxu0 0.0
    %1821 = vmatpush1.msra.mxu0 %v190
    %1822 = vmatprep.subr.mxu0 0.0
    %1823 = vmatpush1.msra.mxu0 %v191
    %1824 = vmatprep.subr.mxu0 0.0
    %1825 = vmatpush1.msra.mxu0 0.0
    %1826 = vmatprep.subr.mxu0 0.0
    %1827 = vmatpush1.msra.mxu0 0.0
    %1828 = vmatprep.subr.mxu0 0.0
    %1829 = vmatpush1.msra.mxu0 0.0
    %1830 = vmatprep.subr.mxu0 0.0
    %1831 = vmatpush1.msra.mxu0 0.0
    %1832 = vmatprep.subr.mxu0 0.0
    %1833 = vmatpush1.msra.mxu0 0.0
    %1834 = vmatprep.subr.mxu0 0.0
    %1835 = vmatpush1.msra.mxu0 0.0
    %1836 = vmatprep.subr.mxu0 0.0
    %1837 = vmatpush1.msra.mxu0 0.0
    %1838 = vmatprep.subr.mxu0 0.0
    %1839 = vmatpush1.msra.mxu0 0.0
    %1840 = vmatprep.subr.mxu0 0.0
    %1841 = vmatpush1.msra.mxu0 0.0
    %1842 = vmatprep.subr.mxu0 0.0
    %1843 = vmatpush1.msra.mxu0 0.0
    %1844 = vmatprep.subr.mxu0 0.0
    %1845 = vmatpush1.msra.mxu0 0.0
    %1846 = vmatprep.subr.mxu0 0.0
    %1847 = vmatpush1.msra.mxu0 0.0
    %1848 = vmatprep.subr.mxu0 0.0
    %1849 = vmatpush1.msra.mxu0 0.0
    %1850 = vmatprep.subr.mxu0 0.0
    %1851 = vmatpush1.msra.mxu0 0.0
    %1852 = vmatprep.subr.mxu0 0.0
    %1853 = vmatpush1.msra.mxu0 0.0
    %1854 = vmatprep.subr.mxu0 0.0
    %1855 = vmatpush1.msra.mxu0 0.0
    %1856 = vmatprep.subr.mxu0 0.0
    %1857 = vmatpush1.msra.mxu0 0.0
    %1858 = vmatprep.subr.mxu0 0.0
    %1859 = vmatpush1.msra.mxu0 0.0
    %1860 = vmatprep.subr.mxu0 0.0
    %1861 = vmatpush1.msra.mxu0 0.0
    %1862 = vmatprep.subr.mxu0 0.0
    %1863 = vmatpush1.msra.mxu0 0.0
    %1864 = vmatprep.subr.mxu0 0.0
    %1865 = vmatpush1.msra.mxu0 0.0
    %1866 = vmatprep.subr.mxu0 0.0
    %1867 = vmatpush1.msra.mxu0 0.0
    %1868 = vmatprep.subr.mxu0 0.0
    %1869 = vmatpush1.msra.mxu0 0.0
    %1870 = vmatprep.subr.mxu0 0.0
    %1871 = vmatpush1.msra.mxu0 0.0
    %1872 = vmatprep.subr.mxu0 0.0
    %1873 = vmatpush1.msra.mxu0 0.0
    %1874 = vmatprep.subr.mxu0 0.0
    %1875 = vmatpush1.msra.mxu0 0.0
    %1876 = vmatprep.subr.mxu0 0.0
    %1877 = vmatpush1.msra.mxu0 0.0
    %1878 = vmatprep.subr.mxu0 0.0
    %1879 = vmatpush1.msra.mxu0 0.0
    %1880 = vmatprep.mubr.f32.mxu0 0.0
    %1881 = vmatmul.mubr.f32.gmra.mrb[0].mxu0 %v1744
    %v1882 = vpop.f32.mrb[0].mxu0
    %v1883 = vadd.f32 0.0, %v1882
    %v1884 = vpop.f32.mrb[0].mxu0
    %1885 = vdwg.mxu0
    %v1887 = vrot.slane %v1813, 4
    %v1889 = vadd.f32 %v350, %v1887
    %v1890 = vxor.u32 %v1889, 2147483648
    %v1891 = vmul.f32 %v1890, 1.442695
    %v1892 = vpow.pop %v1891
    %v1893 = vadd.f32 %v1892, 1.0
    %v1894 = vrcp.pop %v1893
    %v1895 = vmul.f32 1.0, %v1894
    %v1897 = vrot.slane %v1883, 4
    %v1899 = vadd.f32 %v444, %v1897
    %v1900 = vxor.u32 %v1899, 2147483648
    %v1901 = vmul.f32 %v1900, 1.442695
    %v1902 = vpow.pop %v1901
    %v1903 = vadd.f32 %v1902, 1.0
    %v1904 = vrcp.pop %v1903
    %v1905 = vmul.f32 1.0, %v1904
    %1906 = vmatprep.subr.mxu0 0.0
    %1907 = vmatpush1.msra.mxu0 %v192
    %1908 = vmatprep.subr.mxu0 0.0
    %1909 = vmatpush1.msra.mxu0 %v193
    %1910 = vmatprep.subr.mxu0 0.0
    %1911 = vmatpush1.msra.mxu0 %v194
    %1912 = vmatprep.subr.mxu0 0.0
    %1913 = vmatpush1.msra.mxu0 %v195
    %1914 = vmatprep.subr.mxu0 0.0
    %1915 = vmatpush1.msra.mxu0 0.0
    %1916 = vmatprep.subr.mxu0 0.0
    %1917 = vmatpush1.msra.mxu0 0.0
    %1918 = vmatprep.subr.mxu0 0.0
    %1919 = vmatpush1.msra.mxu0 0.0
    %1920 = vmatprep.subr.mxu0 0.0
    %1921 = vmatpush1.msra.mxu0 0.0
    %1922 = vmatprep.subr.mxu0 0.0
    %1923 = vmatpush1.msra.mxu0 0.0
    %1924 = vmatprep.subr.mxu0 0.0
    %1925 = vmatpush1.msra.mxu0 0.0
    %1926 = vmatprep.subr.mxu0 0.0
    %1927 = vmatpush1.msra.mxu0 0.0
    %1928 = vmatprep.subr.mxu0 0.0
    %1929 = vmatpush1.msra.mxu0 0.0
    %1930 = vmatprep.subr.mxu0 0.0
    %1931 = vmatpush1.msra.mxu0 0.0
    %1932 = vmatprep.subr.mxu0 0.0
    %1933 = vmatpush1.msra.mxu0 0.0
    %1934 = vmatprep.subr.mxu0 0.0
    %1935 = vmatpush1.msra.mxu0 0.0
    %1936 = vmatprep.subr.mxu0 0.0
    %1937 = vmatpush1.msra.mxu0 0.0
    %1938 = vmatprep.subr.mxu0 0.0
    %1939 = vmatpush1.msra.mxu0 0.0
    %1940 = vmatprep.subr.mxu0 0.0
    %1941 = vmatpush1.msra.mxu0 0.0
    %1942 = vmatprep.subr.mxu0 0.0
    %1943 = vmatpush1.msra.mxu0 0.0
    %1944 = vmatprep.subr.mxu0 0.0
    %1945 = vmatpush1.msra.mxu0 0.0
    %1946 = vmatprep.subr.mxu0 0.0
    %1947 = vmatpush1.msra.mxu0 0.0
    %1948 = vmatprep.subr.mxu0 0.0
    %1949 = vmatpush1.msra.mxu0 0.0
    %1950 = vmatprep.subr.mxu0 0.0
    %1951 = vmatpush1.msra.mxu0 0.0
    %1952 = vmatprep.subr.mxu0 0.0
    %1953 = vmatpush1.msra.mxu0 0.0
    %1954 = vmatprep.subr.mxu0 0.0
    %1955 = vmatpush1.msra.mxu0 0.0
    %1956 = vmatprep.subr.mxu0 0.0
    %1957 = vmatpush1.msra.mxu0 0.0
    %1958 = vmatprep.subr.mxu0 0.0
    %1959 = vmatpush1.msra.mxu0 0.0
    %1960 = vmatprep.subr.mxu0 0.0
    %1961 = vmatpush1.msra.mxu0 0.0
    %1962 = vmatprep.subr.mxu0 0.0
    %1963 = vmatpush1.msra.mxu0 0.0
    %1964 = vmatprep.subr.mxu0 0.0
    %1965 = vmatpush1.msra.mxu0 0.0
    %1966 = vmatprep.subr.mxu0 0.0
    %1967 = vmatpush1.msra.mxu0 0.0
    %1968 = vmatprep.subr.mxu0 0.0
    %1969 = vmatpush1.msra.mxu0 0.0
    %1970 = vmatprep.mubr.f32.mxu0 0.0
    %1971 = vmatmul.mubr.f32.gmra.mrb[0].mxu0 %v1744
    %v1972 = vpop.f32.mrb[0].mxu0
    %v1973 = vadd.f32 %v217, %v1972
    %v1974 = vpop.f32.mrb[0].mxu0
    %1975 = vdwg.mxu0
    %v1977 = vrot.slane %v1973, 4
    %v1979 = vmul.f32 %v1895, %v1977
    %v1980 = vadd.f32 %v538, %v1979
    %v1981 = vtanh.pop %v1980
    %v1982 = vsub.f32 1.0, %v1905
    %v1983 = vmul.f32 %v1982, %v1981
    %v1984 = vrot.slane %v1742, 4
    %v1986 = vmul.f32 %v1905, %v1984
    %v1987 = vadd.f32 %v1983, %v1986
    %v1989 = vrot.slane %v1987, 4
    %v1990 = vsel %vm546, %v1989, 0
    %1992 = vmatprep.subr.mxu0 0.0
    %1993 = vmatpush1.msra.mxu0 %v184
    %1994 = vmatprep.subr.mxu0 0.0
    %1995 = vmatpush1.msra.mxu0 %v185
    %1996 = vmatprep.subr.mxu0 0.0
    %1997 = vmatpush1.msra.mxu0 %v186
    %1998 = vmatprep.subr.mxu0 0.0
    %1999 = vmatpush1.msra.mxu0 %v187
    %2000 = vmatprep.subr.mxu0 0.0
    %2001 = vmatpush1.msra.mxu0 0.0
    %2002 = vmatprep.subr.mxu0 0.0
    %2003 = vmatpush1.msra.mxu0 0.0
    %2004 = vmatprep.subr.mxu0 0.0
    %2005 = vmatpush1.msra.mxu0 0.0
    %2006 = vmatprep.subr.mxu0 0.0
    %2007 = vmatpush1.msra.mxu0 0.0
    %2008 = vmatprep.subr.mxu0 0.0
    %2009 = vmatpush1.msra.mxu0 0.0
    %2010 = vmatprep.subr.mxu0 0.0
    %2011 = vmatpush1.msra.mxu0 0.0
    %2012 = vmatprep.subr.mxu0 0.0
    %2013 = vmatpush1.msra.mxu0 0.0
    %2014 = vmatprep.subr.mxu0 0.0
    %2015 = vmatpush1.msra.mxu0 0.0
    %2016 = vmatprep.subr.mxu0 0.0
    %2017 = vmatpush1.msra.mxu0 0.0
    %2018 = vmatprep.subr.mxu0 0.0
    %2019 = vmatpush1.msra.mxu0 0.0
    %2020 = vmatprep.subr.mxu0 0.0
    %2021 = vmatpush1.msra.mxu0 0.0
    %2022 = vmatprep.subr.mxu0 0.0
    %2023 = vmatpush1.msra.mxu0 0.0
    %2024 = vmatprep.subr.mxu0 0.0
    %2025 = vmatpush1.msra.mxu0 0.0
    %2026 = vmatprep.subr.mxu0 0.0
    %2027 = vmatpush1.msra.mxu0 0.0
    %2028 = vmatprep.subr.mxu0 0.0
    %2029 = vmatpush1.msra.mxu0 0.0
    %2030 = vmatprep.subr.mxu0 0.0
    %2031 = vmatpush1.msra.mxu0 0.0
    %2032 = vmatprep.subr.mxu0 0.0
    %2033 = vmatpush1.msra.mxu0 0.0
    %2034 = vmatprep.subr.mxu0 0.0
    %2035 = vmatpush1.msra.mxu0 0.0
    %2036 = vmatprep.subr.mxu0 0.0
    %2037 = vmatpush1.msra.mxu0 0.0
    %2038 = vmatprep.subr.mxu0 0.0
    %2039 = vmatpush1.msra.mxu0 0.0
    %2040 = vmatprep.subr.mxu0 0.0
    %2041 = vmatpush1.msra.mxu0 0.0
    %2042 = vmatprep.subr.mxu0 0.0
    %2043 = vmatpush1.msra.mxu0 0.0
    %2044 = vmatprep.subr.mxu0 0.0
    %2045 = vmatpush1.msra.mxu0 0.0
    %2046 = vmatprep.subr.mxu0 0.0
    %2047 = vmatpush1.msra.mxu0 0.0
    %2048 = vmatprep.subr.mxu0 0.0
    %2049 = vmatpush1.msra.mxu0 0.0
    %2050 = vmatprep.subr.mxu0 0.0
    %2051 = vmatpush1.msra.mxu0 0.0
    %2052 = vmatprep.subr.mxu0 0.0
    %2053 = vmatpush1.msra.mxu0 0.0
    %2054 = vmatprep.subr.mxu0 0.0
    %2055 = vmatpush1.msra.mxu0 0.0
    %2056 = vmatprep.mubr.f32.mxu0 0.0
    %2057 = vmatmul.mubr.f32.gmra.mrb[0].mxu0 %v1990
    %v2058 = vpop.f32.mrb[0].mxu0
    %v2059 = vadd.f32 0.0, %v2058
    %v2060 = vpop.f32.mrb[0].mxu0
    %2061 = vdwg.mxu0
    %2062 = vmatprep.subr.mxu0 0.0
    %2063 = vmatpush1.msra.mxu0 %v188
    %2064 = vmatprep.subr.mxu0 0.0
    %2065 = vmatpush1.msra.mxu0 %v189
    %2066 = vmatprep.subr.mxu0 0.0
    %2067 = vmatpush1.msra.mxu0 %v190
    %2068 = vmatprep.subr.mxu0 0.0
    %2069 = vmatpush1.msra.mxu0 %v191
    %2070 = vmatprep.subr.mxu0 0.0
    %2071 = vmatpush1.msra.mxu0 0.0
    %2072 = vmatprep.subr.mxu0 0.0
    %2073 = vmatpush1.msra.mxu0 0.0
    %2074 = vmatprep.subr.mxu0 0.0
    %2075 = vmatpush1.msra.mxu0 0.0
    %2076 = vmatprep.subr.mxu0 0.0
    %2077 = vmatpush1.msra.mxu0 0.0
    %2078 = vmatprep.subr.mxu0 0.0
    %2079 = vmatpush1.msra.mxu0 0.0
    %2080 = vmatprep.subr.mxu0 0.0
    %2081 = vmatpush1.msra.mxu0 0.0
    %2082 = vmatprep.subr.mxu0 0.0
    %2083 = vmatpush1.msra.mxu0 0.0
    %2084 = vmatprep.subr.mxu0 0.0
    %2085 = vmatpush1.msra.mxu0 0.0
    %2086 = vmatprep.subr.mxu0 0.0
    %2087 = vmatpush1.msra.mxu0 0.0
    %2088 = vmatprep.subr.mxu0 0.0
    %2089 = vmatpush1.msra.mxu0 0.0
    %2090 = vmatprep.subr.mxu0 0.0
    %2091 = vmatpush1.msra.mxu0 0.0
    %2092 = vmatprep.subr.mxu0 0.0
    %2093 = vmatpush1.msra.mxu0 0.0
    %2094 = vmatprep.subr.mxu0 0.0
    %2095 = vmatpush1.msra.mxu0 0.0
    %2096 = vmatprep.subr.mxu0 0.0
    %2097 = vmatpush1.msra.mxu0 0.0
    %2098 = vmatprep.subr.mxu0 0.0
    %2099 = vmatpush1.msra.mxu0 0.0
    %2100 = vmatprep.subr.mxu0 0.0
    %2101 = vmatpush1.msra.mxu0 0.0
    %2102 = vmatprep.subr.mxu0 0.0
    %2103 = vmatpush1.msra.mxu0 0.0
    %2104 = vmatprep.subr.mxu0 0.0
    %2105 = vmatpush1.msra.mxu0 0.0
    %2106 = vmatprep.subr.mxu0 0.0
    %2107 = vmatpush1.msra.mxu0 0.0
    %2108 = vmatprep.subr.mxu0 0.0
    %2109 = vmatpush1.msra.mxu0 0.0
    %2110 = vmatprep.subr.mxu0 0.0
    %2111 = vmatpush1.msra.mxu0 0.0
    %2112 = vmatprep.subr.mxu0 0.0
    %2113 = vmatpush1.msra.mxu0 0.0
    %2114 = vmatprep.subr.mxu0 0.0
    %2115 = vmatpush1.msra.mxu0 0.0
    %2116 = vmatprep.subr.mxu0 0.0
    %2117 = vmatpush1.msra.mxu0 0.0
    %2118 = vmatprep.subr.mxu0 0.0
    %2119 = vmatpush1.msra.mxu0 0.0
    %2120 = vmatprep.subr.mxu0 0.0
    %2121 = vmatpush1.msra.mxu0 0.0
    %2122 = vmatprep.subr.mxu0 0.0
    %2123 = vmatpush1.msra.mxu0 0.0
    %2124 = vmatprep.subr.mxu0 0.0
    %2125 = vmatpush1.msra.mxu0 0.0
    %2126 = vmatprep.mubr.f32.mxu0 0.0
    %2127 = vmatmul.mubr.f32.gmra.mrb[0].mxu0 %v1990
    %v2128 = vpop.f32.mrb[0].mxu0
    %v2129 = vadd.f32 0.0, %v2128
    %v2130 = vpop.f32.mrb[0].mxu0
    %2131 = vdwg.mxu0
    %v2132 = vadd.f32 %v355, %v2059
    %v2133 = vxor.u32 %v2132, 2147483648
    %v2134 = vmul.f32 %v2133, 1.442695
    %v2135 = vpow.pop %v2134
    %v2136 = vadd.f32 %v2135, 1.0
    %v2137 = vrcp.pop %v2136
    %v2138 = vmul.f32 1.0, %v2137
    %v2139 = vadd.f32 %v449, %v2129
    %v2140 = vxor.u32 %v2139, 2147483648
    %v2141 = vmul.f32 %v2140, 1.442695
    %v2142 = vpow.pop %v2141
    %v2143 = vadd.f32 %v2142, 1.0
    %v2144 = vrcp.pop %v2143
    %v2145 = vmul.f32 1.0, %v2144
    %2146 = vmatprep.subr.mxu0 0.0
    %2147 = vmatpush1.msra.mxu0 %v192
    %2148 = vmatprep.subr.mxu0 0.0
    %2149 = vmatpush1.msra.mxu0 %v193
    %2150 = vmatprep.subr.mxu0 0.0
    %2151 = vmatpush1.msra.mxu0 %v194
    %2152 = vmatprep.subr.mxu0 0.0
    %2153 = vmatpush1.msra.mxu0 %v195
    %2154 = vmatprep.subr.mxu0 0.0
    %2155 = vmatpush1.msra.mxu0 0.0
    %2156 = vmatprep.subr.mxu0 0.0
    %2157 = vmatpush1.msra.mxu0 0.0
    %2158 = vmatprep.subr.mxu0 0.0
    %2159 = vmatpush1.msra.mxu0 0.0
    %2160 = vmatprep.subr.mxu0 0.0
    %2161 = vmatpush1.msra.mxu0 0.0
    %2162 = vmatprep.subr.mxu0 0.0
    %2163 = vmatpush1.msra.mxu0 0.0
    %2164 = vmatprep.subr.mxu0 0.0
    %2165 = vmatpush1.msra.mxu0 0.0
    %2166 = vmatprep.subr.mxu0 0.0
    %2167 = vmatpush1.msra.mxu0 0.0
    %2168 = vmatprep.subr.mxu0 0.0
    %2169 = vmatpush1.msra.mxu0 0.0
    %2170 = vmatprep.subr.mxu0 0.0
    %2171 = vmatpush1.msra.mxu0 0.0
    %2172 = vmatprep.subr.mxu0 0.0
    %2173 = vmatpush1.msra.mxu0 0.0
    %2174 = vmatprep.subr.mxu0 0.0
    %2175 = vmatpush1.msra.mxu0 0.0
    %2176 = vmatprep.subr.mxu0 0.0
    %2177 = vmatpush1.msra.mxu0 0.0
    %2178 = vmatprep.subr.mxu0 0.0
    %2179 = vmatpush1.msra.mxu0 0.0
    %2180 = vmatprep.subr.mxu0 0.0
    %2181 = vmatpush1.msra.mxu0 0.0
    %2182 = vmatprep.subr.mxu0 0.0
    %2183 = vmatpush1.msra.mxu0 0.0
    %2184 = vmatprep.subr.mxu0 0.0
    %2185 = vmatpush1.msra.mxu0 0.0
    %2186 = vmatprep.subr.mxu0 0.0
    %2187 = vmatpush1.msra.mxu0 0.0
    %2188 = vmatprep.subr.mxu0 0.0
    %2189 = vmatpush1.msra.mxu0 0.0
    %2190 = vmatprep.subr.mxu0 0.0
    %2191 = vmatpush1.msra.mxu0 0.0
    %2192 = vmatprep.subr.mxu0 0.0
    %2193 = vmatpush1.msra.mxu0 0.0
    %2194 = vmatprep.subr.mxu0 0.0
    %2195 = vmatpush1.msra.mxu0 0.0
    %2196 = vmatprep.subr.mxu0 0.0
    %2197 = vmatpush1.msra.mxu0 0.0
    %2198 = vmatprep.subr.mxu0 0.0
    %2199 = vmatpush1.msra.mxu0 0.0
    %2200 = vmatprep.subr.mxu0 0.0
    %2201 = vmatpush1.msra.mxu0 0.0
    %2202 = vmatprep.subr.mxu0 0.0
    %2203 = vmatpush1.msra.mxu0 0.0
    %2204 = vmatprep.subr.mxu0 0.0
    %2205 = vmatpush1.msra.mxu0 0.0
    %2206 = vmatprep.subr.mxu0 0.0
    %2207 = vmatpush1.msra.mxu0 0.0
    %2208 = vmatprep.subr.mxu0 0.0
    %2209 = vmatpush1.msra.mxu0 0.0
    %2210 = vmatprep.mubr.f32.mxu0 0.0
    %2211 = vmatmul.mubr.f32.gmra.mrb[0].mxu0 %v1990
    %v2212 = vpop.f32.mrb[0].mxu0
    %v2213 = vadd.f32 %v217, %v2212
    %v2214 = vpop.f32.mrb[0].mxu0
    %2215 = vdwg.mxu0
    %v2216 = vmul.f32 %v2138, %v2213
    %v2217 = vadd.f32 %v543, %v2216
    %v2218 = vtanh.pop %v2217
    %v2219 = vsub.f32 1.0, %v2145
    %v2220 = vmul.f32 %v2219, %v2218
    %v2222 = vmul.f32 %v2145, %v1989
    %v2223 = vadd.f32 %v2220, %v2222
    %v2225 = vsel %vm546, %v2223, 0
    %2227 = vmatprep.subr.mxu0 0.0
    %2228 = vmatpush1.msra.mxu0 %v184
    %2229 = vmatprep.subr.mxu0 0.0
    %2230 = vmatpush1.msra.mxu0 %v185
    %2231 = vmatprep.subr.mxu0 0.0
    %2232 = vmatpush1.msra.mxu0 %v186
    %2233 = vmatprep.subr.mxu0 0.0
    %2234 = vmatpush1.msra.mxu0 %v187
    %2235 = vmatprep.subr.mxu0 0.0
    %2236 = vmatpush1.msra.mxu0 0.0
    %2237 = vmatprep.subr.mxu0 0.0
    %2238 = vmatpush1.msra.mxu0 0.0
    %2239 = vmatprep.subr.mxu0 0.0
    %2240 = vmatpush1.msra.mxu0 0.0
    %2241 = vmatprep.subr.mxu0 0.0
    %2242 = vmatpush1.msra.mxu0 0.0
    %2243 = vmatprep.subr.mxu0 0.0
    %2244 = vmatpush1.msra.mxu0 0.0
    %2245 = vmatprep.subr.mxu0 0.0
    %2246 = vmatpush1.msra.mxu0 0.0
    %2247 = vmatprep.subr.mxu0 0.0
    %2248 = vmatpush1.msra.mxu0 0.0
    %2249 = vmatprep.subr.mxu0 0.0
    %2250 = vmatpush1.msra.mxu0 0.0
    %2251 = vmatprep.subr.mxu0 0.0
    %2252 = vmatpush1.msra.mxu0 0.0
    %2253 = vmatprep.subr.mxu0 0.0
    %2254 = vmatpush1.msra.mxu0 0.0
    %2255 = vmatprep.subr.mxu0 0.0
    %2256 = vmatpush1.msra.mxu0 0.0
    %2257 = vmatprep.subr.mxu0 0.0
    %2258 = vmatpush1.msra.mxu0 0.0
    %2259 = vmatprep.subr.mxu0 0.0
    %2260 = vmatpush1.msra.mxu0 0.0
    %2261 = vmatprep.subr.mxu0 0.0
    %2262 = vmatpush1.msra.mxu0 0.0
    %2263 = vmatprep.subr.mxu0 0.0
    %2264 = vmatpush1.msra.mxu0 0.0
    %2265 = vmatprep.subr.mxu0 0.0
    %2266 = vmatpush1.msra.mxu0 0.0
    %2267 = vmatprep.subr.mxu0 0.0
    %2268 = vmatpush1.msra.mxu0 0.0
    %2269 = vmatprep.subr.mxu0 0.0
    %2270 = vmatpush1.msra.mxu0 0.0
    %2271 = vmatprep.subr.mxu0 0.0
    %2272 = vmatpush1.msra.mxu0 0.0
    %2273 = vmatprep.subr.mxu0 0.0
    %2274 = vmatpush1.msra.mxu0 0.0
    %2275 = vmatprep.subr.mxu0 0.0
    %2276 = vmatpush1.msra.mxu0 0.0
    %2277 = vmatprep.subr.mxu0 0.0
    %2278 = vmatpush1.msra.mxu0 0.0
    %2279 = vmatprep.subr.mxu0 0.0
    %2280 = vmatpush1.msra.mxu0 0.0
    %2281 = vmatprep.subr.mxu0 0.0
    %2282 = vmatpush1.msra.mxu0 0.0
    %2283 = vmatprep.subr.mxu0 0.0
    %2284 = vmatpush1.msra.mxu0 0.0
    %2285 = vmatprep.subr.mxu0 0.0
    %2286 = vmatpush1.msra.mxu0 0.0
    %2287 = vmatprep.subr.mxu0 0.0
    %2288 = vmatpush1.msra.mxu0 0.0
    %2289 = vmatprep.subr.mxu0 0.0
    %2290 = vmatpush1.msra.mxu0 0.0
    %2291 = vmatprep.mubr.f32.mxu0 0.0
    %2292 = vmatmul.mubr.f32.gmra.mrb[0].mxu0 %v2225
    %v2293 = vpop.f32.mrb[0].mxu0
    %v2294 = vadd.f32 0.0, %v2293
    %v2295 = vpop.f32.mrb[0].mxu0
    %2296 = vdwg.mxu0
    %2297 = vmatprep.subr.mxu0 0.0
    %2298 = vmatpush1.msra.mxu0 %v188
    %2299 = vmatprep.subr.mxu0 0.0
    %2300 = vmatpush1.msra.mxu0 %v189
    %2301 = vmatprep.subr.mxu0 0.0
    %2302 = vmatpush1.msra.mxu0 %v190
    %2303 = vmatprep.subr.mxu0 0.0
    %2304 = vmatpush1.msra.mxu0 %v191
    %2305 = vmatprep.subr.mxu0 0.0
    %2306 = vmatpush1.msra.mxu0 0.0
    %2307 = vmatprep.subr.mxu0 0.0
    %2308 = vmatpush1.msra.mxu0 0.0
    %2309 = vmatprep.subr.mxu0 0.0
    %2310 = vmatpush1.msra.mxu0 0.0
    %2311 = vmatprep.subr.mxu0 0.0
    %2312 = vmatpush1.msra.mxu0 0.0
    %2313 = vmatprep.subr.mxu0 0.0
    %2314 = vmatpush1.msra.mxu0 0.0
    %2315 = vmatprep.subr.mxu0 0.0
    %2316 = vmatpush1.msra.mxu0 0.0
    %2317 = vmatprep.subr.mxu0 0.0
    %2318 = vmatpush1.msra.mxu0 0.0
    %2319 = vmatprep.subr.mxu0 0.0
    %2320 = vmatpush1.msra.mxu0 0.0
    %2321 = vmatprep.subr.mxu0 0.0
    %2322 = vmatpush1.msra.mxu0 0.0
    %2323 = vmatprep.subr.mxu0 0.0
    %2324 = vmatpush1.msra.mxu0 0.0
    %2325 = vmatprep.subr.mxu0 0.0
    %2326 = vmatpush1.msra.mxu0 0.0
    %2327 = vmatprep.subr.mxu0 0.0
    %2328 = vmatpush1.msra.mxu0 0.0
    %2329 = vmatprep.subr.mxu0 0.0
    %2330 = vmatpush1.msra.mxu0 0.0
    %2331 = vmatprep.subr.mxu0 0.0
    %2332 = vmatpush1.msra.mxu0 0.0
    %2333 = vmatprep.subr.mxu0 0.0
    %2334 = vmatpush1.msra.mxu0 0.0
    %2335 = vmatprep.subr.mxu0 0.0
    %2336 = vmatpush1.msra.mxu0 0.0
    %2337 = vmatprep.subr.mxu0 0.0
    %2338 = vmatpush1.msra.mxu0 0.0
    %2339 = vmatprep.subr.mxu0 0.0
    %2340 = vmatpush1.msra.mxu0 0.0
    %2341 = vmatprep.subr.mxu0 0.0
    %2342 = vmatpush1.msra.mxu0 0.0
    %2343 = vmatprep.subr.mxu0 0.0
    %2344 = vmatpush1.msra.mxu0 0.0
    %2345 = vmatprep.subr.mxu0 0.0
    %2346 = vmatpush1.msra.mxu0 0.0
    %2347 = vmatprep.subr.mxu0 0.0
    %2348 = vmatpush1.msra.mxu0 0.0
    %2349 = vmatprep.subr.mxu0 0.0
    %2350 = vmatpush1.msra.mxu0 0.0
    %2351 = vmatprep.subr.mxu0 0.0
    %2352 = vmatpush1.msra.mxu0 0.0
    %2353 = vmatprep.subr.mxu0 0.0
    %2354 = vmatpush1.msra.mxu0 0.0
    %2355 = vmatprep.subr.mxu0 0.0
    %2356 = vmatpush1.msra.mxu0 0.0
    %2357 = vmatprep.subr.mxu0 0.0
    %2358 = vmatpush1.msra.mxu0 0.0
    %2359 = vmatprep.subr.mxu0 0.0
    %2360 = vmatpush1.msra.mxu0 0.0
    %2361 = vmatprep.mubr.f32.mxu0 0.0
    %2362 = vmatmul.mubr.f32.gmra.mrb[0].mxu0 %v2225
    %v2363 = vpop.f32.mrb[0].mxu0
    %v2364 = vadd.f32 0.0, %v2363
    %v2365 = vpop.f32.mrb[0].mxu0
    %2366 = vdwg.mxu0
    %v2368 = vrot.slane %v2294, 4
    %v2370 = vadd.f32 %v355, %v2368
    %v2371 = vxor.u32 %v2370, 2147483648
    %v2372 = vmul.f32 %v2371, 1.442695
    %v2373 = vpow.pop %v2372
    %v2374 = vadd.f32 %v2373, 1.0
    %v2375 = vrcp.pop %v2374
    %v2376 = vmul.f32 1.0, %v2375
    %v2378 = vrot.slane %v2364, 4
    %v2380 = vadd.f32 %v449, %v2378
    %v2381 = vxor.u32 %v2380, 2147483648
    %v2382 = vmul.f32 %v2381, 1.442695
    %v2383 = vpow.pop %v2382
    %v2384 = vadd.f32 %v2383, 1.0
    %v2385 = vrcp.pop %v2384
    %v2386 = vmul.f32 1.0, %v2385
    %2387 = vmatprep.subr.mxu0 0.0
    %2388 = vmatpush1.msra.mxu0 %v192
    %2389 = vmatprep.subr.mxu0 0.0
    %2390 = vmatpush1.msra.mxu0 %v193
    %2391 = vmatprep.subr.mxu0 0.0
    %2392 = vmatpush1.msra.mxu0 %v194
    %2393 = vmatprep.subr.mxu0 0.0
    %2394 = vmatpush1.msra.mxu0 %v195
    %2395 = vmatprep.subr.mxu0 0.0
    %2396 = vmatpush1.msra.mxu0 0.0
    %2397 = vmatprep.subr.mxu0 0.0
    %2398 = vmatpush1.msra.mxu0 0.0
    %2399 = vmatprep.subr.mxu0 0.0
    %2400 = vmatpush1.msra.mxu0 0.0
    %2401 = vmatprep.subr.mxu0 0.0
    %2402 = vmatpush1.msra.mxu0 0.0
    %2403 = vmatprep.subr.mxu0 0.0
    %2404 = vmatpush1.msra.mxu0 0.0
    %2405 = vmatprep.subr.mxu0 0.0
    %2406 = vmatpush1.msra.mxu0 0.0
    %2407 = vmatprep.subr.mxu0 0.0
    %2408 = vmatpush1.msra.mxu0 0.0
    %2409 = vmatprep.subr.mxu0 0.0
    %2410 = vmatpush1.msra.mxu0 0.0
    %2411 = vmatprep.subr.mxu0 0.0
    %2412 = vmatpush1.msra.mxu0 0.0
    %2413 = vmatprep.subr.mxu0 0.0
    %2414 = vmatpush1.msra.mxu0 0.0
    %2415 = vmatprep.subr.mxu0 0.0
    %2416 = vmatpush1.msra.mxu0 0.0
    %2417 = vmatprep.subr.mxu0 0.0
    %2418 = vmatpush1.msra.mxu0 0.0
    %2419 = vmatprep.subr.mxu0 0.0
    %2420 = vmatpush1.msra.mxu0 0.0
    %2421 = vmatprep.subr.mxu0 0.0
    %2422 = vmatpush1.msra.mxu0 0.0
    %2423 = vmatprep.subr.mxu0 0.0
    %2424 = vmatpush1.msra.mxu0 0.0
    %2425 = vmatprep.subr.mxu0 0.0
    %2426 = vmatpush1.msra.mxu0 0.0
    %2427 = vmatprep.subr.mxu0 0.0
    %2428 = vmatpush1.msra.mxu0 0.0
    %2429 = vmatprep.subr.mxu0 0.0
    %2430 = vmatpush1.msra.mxu0 0.0
    %2431 = vmatprep.subr.mxu0 0.0
    %2432 = vmatpush1.msra.mxu0 0.0
    %2433 = vmatprep.subr.mxu0 0.0
    %2434 = vmatpush1.msra.mxu0 0.0
    %2435 = vmatprep.subr.mxu0 0.0
    %2436 = vmatpush1.msra.mxu0 0.0
    %2437 = vmatprep.subr.mxu0 0.0
    %2438 = vmatpush1.msra.mxu0 0.0
    %2439 = vmatprep.subr.mxu0 0.0
    %2440 = vmatpush1.msra.mxu0 0.0
    %2441 = vmatprep.subr.mxu0 0.0
    %2442 = vmatpush1.msra.mxu0 0.0
    %2443 = vmatprep.subr.mxu0 0.0
    %2444 = vmatpush1.msra.mxu0 0.0
    %2445 = vmatprep.subr.mxu0 0.0
    %2446 = vmatpush1.msra.mxu0 0.0
    %2447 = vmatprep.subr.mxu0 0.0
    %2448 = vmatpush1.msra.mxu0 0.0
    %2449 = vmatprep.subr.mxu0 0.0
    %2450 = vmatpush1.msra.mxu0 0.0
    %2451 = vmatprep.mubr.f32.mxu0 0.0
    %2452 = vmatmul.mubr.f32.gmra.mrb[0].mxu0 %v2225
    %v2453 = vpop.f32.mrb[0].mxu0
    %v2454 = vadd.f32 %v217, %v2453
    %v2455 = vpop.f32.mrb[0].mxu0
    %2456 = vdwg.mxu0
    %v2458 = vrot.slane %v2454, 4
    %v2460 = vmul.f32 %v2376, %v2458
    %v2461 = vadd.f32 %v543, %v2460
    %v2462 = vtanh.pop %v2461
    %v2463 = vsub.f32 1.0, %v2386
    %v2464 = vmul.f32 %v2463, %v2462
    %v2465 = vrot.slane %v2223, 4
    %v2467 = vmul.f32 %v2386, %v2465
    %v2468 = vadd.f32 %v2464, %v2467
    %v2470 = vrot.slane %v2468, 4
    %v2471 = vsel %vm546, %v2470, 0
    %2473 = vmatprep.subr.mxu0 0.0
    %2474 = vmatpush1.msra.mxu0 %v196
    %2475 = vmatprep.subr.mxu0 0.0
    %2476 = vmatpush1.msra.mxu0 %v197
    %2477 = vmatprep.subr.mxu0 0.0
    %2478 = vmatpush1.msra.mxu0 %v198
    %2479 = vmatprep.subr.mxu0 0.0
    %2480 = vmatpush1.msra.mxu0 %v199
    %2481 = vmatprep.subr.mxu0 0.0
    %2482 = vmatpush1.msra.mxu0 0.0
    %2483 = vmatprep.subr.mxu0 0.0
    %2484 = vmatpush1.msra.mxu0 0.0
    %2485 = vmatprep.subr.mxu0 0.0
    %2486 = vmatpush1.msra.mxu0 0.0
    %2487 = vmatprep.subr.mxu0 0.0
    %2488 = vmatpush1.msra.mxu0 0.0
    %2489 = vmatprep.subr.mxu0 0.0
    %2490 = vmatpush1.msra.mxu0 0.0
    %2491 = vmatprep.subr.mxu0 0.0
    %2492 = vmatpush1.msra.mxu0 0.0
    %2493 = vmatprep.subr.mxu0 0.0
    %2494 = vmatpush1.msra.mxu0 0.0
    %2495 = vmatprep.subr.mxu0 0.0
    %2496 = vmatpush1.msra.mxu0 0.0
    %2497 = vmatprep.subr.mxu0 0.0
    %2498 = vmatpush1.msra.mxu0 0.0
    %2499 = vmatprep.subr.mxu0 0.0
    %2500 = vmatpush1.msra.mxu0 0.0
    %2501 = vmatprep.subr.mxu0 0.0
    %2502 = vmatpush1.msra.mxu0 0.0
    %2503 = vmatprep.subr.mxu0 0.0
    %2504 = vmatpush1.msra.mxu0 0.0
    %2505 = vmatprep.subr.mxu0 0.0
    %2506 = vmatpush1.msra.mxu0 0.0
    %2507 = vmatprep.subr.mxu0 0.0
    %2508 = vmatpush1.msra.mxu0 0.0
    %2509 = vmatprep.subr.mxu0 0.0
    %2510 = vmatpush1.msra.mxu0 0.0
    %2511 = vmatprep.subr.mxu0 0.0
    %2512 = vmatpush1.msra.mxu0 0.0
    %2513 = vmatprep.subr.mxu0 0.0
    %2514 = vmatpush1.msra.mxu0 0.0
    %2515 = vmatprep.subr.mxu0 0.0
    %2516 = vmatpush1.msra.mxu0 0.0
    %2517 = vmatprep.subr.mxu0 0.0
    %2518 = vmatpush1.msra.mxu0 0.0
    %2519 = vmatprep.subr.mxu0 0.0
    %2520 = vmatpush1.msra.mxu0 0.0
    %2521 = vmatprep.subr.mxu0 0.0
    %2522 = vmatpush1.msra.mxu0 0.0
    %2523 = vmatprep.subr.mxu0 0.0
    %2524 = vmatpush1.msra.mxu0 0.0
    %2525 = vmatprep.subr.mxu0 0.0
    %2526 = vmatpush1.msra.mxu0 0.0
    %2527 = vmatprep.subr.mxu0 0.0
    %2528 = vmatpush1.msra.mxu0 0.0
    %2529 = vmatprep.subr.mxu0 0.0
    %2530 = vmatpush1.msra.mxu0 0.0
    %2531 = vmatprep.subr.mxu0 0.0
    %2532 = vmatpush1.msra.mxu0 0.0
    %2533 = vmatprep.subr.mxu0 0.0
    %2534 = vmatpush1.msra.mxu0 0.0
    %2535 = vmatprep.subr.mxu0 0.0
    %2536 = vmatpush1.msra.mxu0 0.0
    %2537 = vmatprep.mubr.f32.mxu0 0.0
    %2538 = vmatmul.mubr.f32.gmra.mrb[0].mxu0 %v2471
    %v2539 = vpop.f32.mrb[0].mxu0
    %v2540 = vadd.f32 %v224, %v2539
    %v2541 = vpop.f32.mrb[0].mxu0
    %2542 = vdwg.mxu0
    %v2543 = vxor.u32 %v2540, 2147483648
    %v2544 = vmul.f32 %v2543, 1.442695
    %v2545 = vpow.pop %v2544
    %v2546 = vadd.f32 %v2545, 1.0
    %v2547 = vrcp.pop %v2546
    %v2548 = vmul.f32 1.0, %v2547
    %2549 = vmatprep.subr.mxu0 0.0
    %2550 = vmatpush1.msra.mxu0 %v200
    %2551 = vmatprep.subr.mxu0 0.0
    %2552 = vmatpush1.msra.mxu0 %v201
    %2553 = vmatprep.subr.mxu0 0.0
    %2554 = vmatpush1.msra.mxu0 %v202
    %2555 = vmatprep.subr.mxu0 0.0
    %2556 = vmatpush1.msra.mxu0 %v203
    %2557 = vmatprep.subr.mxu0 0.0
    %2558 = vmatpush1.msra.mxu0 0.0
    %2559 = vmatprep.subr.mxu0 0.0
    %2560 = vmatpush1.msra.mxu0 0.0
    %2561 = vmatprep.subr.mxu0 0.0
    %2562 = vmatpush1.msra.mxu0 0.0
    %2563 = vmatprep.subr.mxu0 0.0
    %2564 = vmatpush1.msra.mxu0 0.0
    %2565 = vmatprep.subr.mxu0 0.0
    %2566 = vmatpush1.msra.mxu0 0.0
    %2567 = vmatprep.subr.mxu0 0.0
    %2568 = vmatpush1.msra.mxu0 0.0
    %2569 = vmatprep.subr.mxu0 0.0
    %2570 = vmatpush1.msra.mxu0 0.0
    %2571 = vmatprep.subr.mxu0 0.0
    %2572 = vmatpush1.msra.mxu0 0.0
    %2573 = vmatprep.subr.mxu0 0.0
    %2574 = vmatpush1.msra.mxu0 0.0
    %2575 = vmatprep.subr.mxu0 0.0
    %2576 = vmatpush1.msra.mxu0 0.0
    %2577 = vmatprep.subr.mxu0 0.0
    %2578 = vmatpush1.msra.mxu0 0.0
    %2579 = vmatprep.subr.mxu0 0.0
    %2580 = vmatpush1.msra.mxu0 0.0
    %2581 = vmatprep.subr.mxu0 0.0
    %2582 = vmatpush1.msra.mxu0 0.0
    %2583 = vmatprep.subr.mxu0 0.0
    %2584 = vmatpush1.msra.mxu0 0.0
    %2585 = vmatprep.subr.mxu0 0.0
    %2586 = vmatpush1.msra.mxu0 0.0
    %2587 = vmatprep.subr.mxu0 0.0
    %2588 = vmatpush1.msra.mxu0 0.0
    %2589 = vmatprep.subr.mxu0 0.0
    %2590 = vmatpush1.msra.mxu0 0.0
    %2591 = vmatprep.subr.mxu0 0.0
    %2592 = vmatpush1.msra.mxu0 0.0
    %2593 = vmatprep.subr.mxu0 0.0
    %2594 = vmatpush1.msra.mxu0 0.0
    %2595 = vmatprep.subr.mxu0 0.0
    %2596 = vmatpush1.msra.mxu0 0.0
    %2597 = vmatprep.subr.mxu0 0.0
    %2598 = vmatpush1.msra.mxu0 0.0
    %2599 = vmatprep.subr.mxu0 0.0
    %2600 = vmatpush1.msra.mxu0 0.0
    %2601 = vmatprep.subr.mxu0 0.0
    %2602 = vmatpush1.msra.mxu0 0.0
    %2603 = vmatprep.subr.mxu0 0.0
    %2604 = vmatpush1.msra.mxu0 0.0
    %2605 = vmatprep.subr.mxu0 0.0
    %2606 = vmatpush1.msra.mxu0 0.0
    %2607 = vmatprep.subr.mxu0 0.0
    %2608 = vmatpush1.msra.mxu0 0.0
    %2609 = vmatprep.subr.mxu0 0.0
    %2610 = vmatpush1.msra.mxu0 0.0
    %2611 = vmatprep.subr.mxu0 0.0
    %2612 = vmatpush1.msra.mxu0 0.0
    %2613 = vmatprep.mubr.f32.mxu0 0.0
    %2614 = vmatmul.mubr.f32.gmra.mrb[0].mxu0 %v2471
    %v2615 = vpop.f32.mrb[0].mxu0
    %v2616 = vadd.f32 %v231, %v2615
    %v2617 = vpop.f32.mrb[0].mxu0
    %2618 = vdwg.mxu0
    %v2619 = vxor.u32 %v2616, 2147483648
    %v2620 = vmul.f32 %v2619, 1.442695
    %v2621 = vpow.pop %v2620
    %v2622 = vadd.f32 %v2621, 1.0
    %v2623 = vrcp.pop %v2622
    %v2624 = vmul.f32 1.0, %v2623
    %2625 = vmatprep.subr.mxu0 0.0
    %2626 = vmatpush1.msra.mxu0 %v204
    %2627 = vmatprep.subr.mxu0 0.0
    %2628 = vmatpush1.msra.mxu0 %v205
    %2629 = vmatprep.subr.mxu0 0.0
    %2630 = vmatpush1.msra.mxu0 %v206
    %2631 = vmatprep.subr.mxu0 0.0
    %2632 = vmatpush1.msra.mxu0 %v207
    %2633 = vmatprep.subr.mxu0 0.0
    %2634 = vmatpush1.msra.mxu0 0.0
    %2635 = vmatprep.subr.mxu0 0.0
    %2636 = vmatpush1.msra.mxu0 0.0
    %2637 = vmatprep.subr.mxu0 0.0
    %2638 = vmatpush1.msra.mxu0 0.0
    %2639 = vmatprep.subr.mxu0 0.0
    %2640 = vmatpush1.msra.mxu0 0.0
    %2641 = vmatprep.subr.mxu0 0.0
    %2642 = vmatpush1.msra.mxu0 0.0
    %2643 = vmatprep.subr.mxu0 0.0
    %2644 = vmatpush1.msra.mxu0 0.0
    %2645 = vmatprep.subr.mxu0 0.0
    %2646 = vmatpush1.msra.mxu0 0.0
    %2647 = vmatprep.subr.mxu0 0.0
    %2648 = vmatpush1.msra.mxu0 0.0
    %2649 = vmatprep.subr.mxu0 0.0
    %2650 = vmatpush1.msra.mxu0 0.0
    %2651 = vmatprep.subr.mxu0 0.0
    %2652 = vmatpush1.msra.mxu0 0.0
    %2653 = vmatprep.subr.mxu0 0.0
    %2654 = vmatpush1.msra.mxu0 0.0
    %2655 = vmatprep.subr.mxu0 0.0
    %2656 = vmatpush1.msra.mxu0 0.0
    %2657 = vmatprep.subr.mxu0 0.0
    %2658 = vmatpush1.msra.mxu0 0.0
    %2659 = vmatprep.subr.mxu0 0.0
    %2660 = vmatpush1.msra.mxu0 0.0
    %2661 = vmatprep.subr.mxu0 0.0
    %2662 = vmatpush1.msra.mxu0 0.0
    %2663 = vmatprep.subr.mxu0 0.0
    %2664 = vmatpush1.msra.mxu0 0.0
    %2665 = vmatprep.subr.mxu0 0.0
    %2666 = vmatpush1.msra.mxu0 0.0
    %2667 = vmatprep.subr.mxu0 0.0
    %2668 = vmatpush1.msra.mxu0 0.0
    %2669 = vmatprep.subr.mxu0 0.0
    %2670 = vmatpush1.msra.mxu0 0.0
    %2671 = vmatprep.subr.mxu0 0.0
    %2672 = vmatpush1.msra.mxu0 0.0
    %2673 = vmatprep.subr.mxu0 0.0
    %2674 = vmatpush1.msra.mxu0 0.0
    %2675 = vmatprep.subr.mxu0 0.0
    %2676 = vmatpush1.msra.mxu0 0.0
    %2677 = vmatprep.subr.mxu0 0.0
    %2678 = vmatpush1.msra.mxu0 0.0
    %2679 = vmatprep.subr.mxu0 0.0
    %2680 = vmatpush1.msra.mxu0 0.0
    %2681 = vmatprep.subr.mxu0 0.0
    %2682 = vmatpush1.msra.mxu0 0.0
    %2683 = vmatprep.subr.mxu0 0.0
    %2684 = vmatpush1.msra.mxu0 0.0
    %2685 = vmatprep.subr.mxu0 0.0
    %2686 = vmatpush1.msra.mxu0 0.0
    %2687 = vmatprep.subr.mxu0 0.0
    %2688 = vmatpush1.msra.mxu0 0.0
    %2689 = vmatprep.mubr.f32.mxu0 0.0
    %2690 = vmatmul.mubr.f32.gmra.mrb[0].mxu0 %v2471
    %v2691 = vpop.f32.mrb[0].mxu0
    %v2692 = vadd.f32 %v238, %v2691
    %v2693 = vpop.f32.mrb[0].mxu0
    %2694 = vdwg.mxu0
    %2695 = vmatprep.subr.mxu0 0.0
    %2696 = vmatpush1.msra.mxu0 %v208
    %2697 = vmatprep.subr.mxu0 0.0
    %2698 = vmatpush1.msra.mxu0 %v209
    %2699 = vmatprep.subr.mxu0 0.0
    %2700 = vmatpush1.msra.mxu0 %v210
    %2701 = vmatprep.subr.mxu0 0.0
    %2702 = vmatpush1.msra.mxu0 %v211
    %2703 = vmatprep.subr.mxu0 0.0
    %2704 = vmatpush1.msra.mxu0 0.0
    %2705 = vmatprep.subr.mxu0 0.0
    %2706 = vmatpush1.msra.mxu0 0.0
    %2707 = vmatprep.subr.mxu0 0.0
    %2708 = vmatpush1.msra.mxu0 0.0
    %2709 = vmatprep.subr.mxu0 0.0
    %2710 = vmatpush1.msra.mxu0 0.0
    %2711 = vmatprep.subr.mxu0 0.0
    %2712 = vmatpush1.msra.mxu0 0.0
    %2713 = vmatprep.subr.mxu0 0.0
    %2714 = vmatpush1.msra.mxu0 0.0
    %2715 = vmatprep.subr.mxu0 0.0
    %2716 = vmatpush1.msra.mxu0 0.0
    %2717 = vmatprep.subr.mxu0 0.0
    %2718 = vmatpush1.msra.mxu0 0.0
    %2719 = vmatprep.subr.mxu0 0.0
    %2720 = vmatpush1.msra.mxu0 0.0
    %2721 = vmatprep.subr.mxu0 0.0
    %2722 = vmatpush1.msra.mxu0 0.0
    %2723 = vmatprep.subr.mxu0 0.0
    %2724 = vmatpush1.msra.mxu0 0.0
    %2725 = vmatprep.subr.mxu0 0.0
    %2726 = vmatpush1.msra.mxu0 0.0
    %2727 = vmatprep.subr.mxu0 0.0
    %2728 = vmatpush1.msra.mxu0 0.0
    %2729 = vmatprep.subr.mxu0 0.0
    %2730 = vmatpush1.msra.mxu0 0.0
    %2731 = vmatprep.subr.mxu0 0.0
    %2732 = vmatpush1.msra.mxu0 0.0
    %2733 = vmatprep.subr.mxu0 0.0
    %2734 = vmatpush1.msra.mxu0 0.0
    %2735 = vmatprep.subr.mxu0 0.0
    %2736 = vmatpush1.msra.mxu0 0.0
    %2737 = vmatprep.subr.mxu0 0.0
    %2738 = vmatpush1.msra.mxu0 0.0
    %2739 = vmatprep.subr.mxu0 0.0
    %2740 = vmatpush1.msra.mxu0 0.0
    %2741 = vmatprep.subr.mxu0 0.0
    %2742 = vmatpush1.msra.mxu0 0.0
    %2743 = vmatprep.subr.mxu0 0.0
    %2744 = vmatpush1.msra.mxu0 0.0
    %2745 = vmatprep.subr.mxu0 0.0
    %2746 = vmatpush1.msra.mxu0 0.0
    %2747 = vmatprep.subr.mxu0 0.0
    %2748 = vmatpush1.msra.mxu0 0.0
    %2749 = vmatprep.subr.mxu0 0.0
    %2750 = vmatpush1.msra.mxu0 0.0
    %2751 = vmatprep.subr.mxu0 0.0
    %2752 = vmatpush1.msra.mxu0 0.0
    %2753 = vmatprep.subr.mxu0 0.0
    %2754 = vmatpush1.msra.mxu0 0.0
    %2755 = vmatprep.subr.mxu0 0.0
    %2756 = vmatpush1.msra.mxu0 0.0
    %2757 = vmatprep.subr.mxu0 0.0
    %2758 = vmatpush1.msra.mxu0 0.0
    %2759 = vmatprep.mubr.f32.mxu0 0.0
    %2760 = vmatmul.mubr.f32.gmra.mrb[0].mxu0 %v2471
    %v2761 = vpop.f32.mrb[0].mxu0
    %v2762 = vadd.f32 %v245, %v2761
    %v2763 = vpop.f32.mrb[0].mxu0
    %2764 = vdwg.mxu0
    %v2765 = vmul.f32 %v2548, %v2762
    %v2766 = vadd.f32 %v2692, %v2765
    %v2767 = vtanh.pop %v2766
    %v2768 = vsub.f32 1.0, %v2624
    %v2769 = vmul.f32 %v2768, %v2767
    %v2771 = vmul.f32 %v2624, %v2470
    %v2772 = vadd.f32 %v2769, %v2771
    %vm2773 = vcmask 257024
    %2774 = vst.msk [vmem:[#allocation2] sm:$0xf] %vm2773, %v2772
    %v2776 = vsel %vm546, %v2772, 0
    %2778 = vmatprep.subr.mxu0 0.0
    %2779 = vmatpush1.msra.mxu0 %v196
    %2780 = vmatprep.subr.mxu0 0.0
    %2781 = vmatpush1.msra.mxu0 %v197
    %2782 = vmatprep.subr.mxu0 0.0
    %2783 = vmatpush1.msra.mxu0 %v198
    %2784 = vmatprep.subr.mxu0 0.0
    %2785 = vmatpush1.msra.mxu0 %v199
    %2786 = vmatprep.subr.mxu0 0.0
    %2787 = vmatpush1.msra.mxu0 0.0
    %2788 = vmatprep.subr.mxu0 0.0
    %2789 = vmatpush1.msra.mxu0 0.0
    %2790 = vmatprep.subr.mxu0 0.0
    %2791 = vmatpush1.msra.mxu0 0.0
    %2792 = vmatprep.subr.mxu0 0.0
    %2793 = vmatpush1.msra.mxu0 0.0
    %2794 = vmatprep.subr.mxu0 0.0
    %2795 = vmatpush1.msra.mxu0 0.0
    %2796 = vmatprep.subr.mxu0 0.0
    %2797 = vmatpush1.msra.mxu0 0.0
    %2798 = vmatprep.subr.mxu0 0.0
    %2799 = vmatpush1.msra.mxu0 0.0
    %2800 = vmatprep.subr.mxu0 0.0
    %2801 = vmatpush1.msra.mxu0 0.0
    %2802 = vmatprep.subr.mxu0 0.0
    %2803 = vmatpush1.msra.mxu0 0.0
    %2804 = vmatprep.subr.mxu0 0.0
    %2805 = vmatpush1.msra.mxu0 0.0
    %2806 = vmatprep.subr.mxu0 0.0
    %2807 = vmatpush1.msra.mxu0 0.0
    %2808 = vmatprep.subr.mxu0 0.0
    %2809 = vmatpush1.msra.mxu0 0.0
    %2810 = vmatprep.subr.mxu0 0.0
    %2811 = vmatpush1.msra.mxu0 0.0
    %2812 = vmatprep.subr.mxu0 0.0
    %2813 = vmatpush1.msra.mxu0 0.0
    %2814 = vmatprep.subr.mxu0 0.0
    %2815 = vmatpush1.msra.mxu0 0.0
    %2816 = vmatprep.subr.mxu0 0.0
    %2817 = vmatpush1.msra.mxu0 0.0
    %2818 = vmatprep.subr.mxu0 0.0
    %2819 = vmatpush1.msra.mxu0 0.0
    %2820 = vmatprep.subr.mxu0 0.0
    %2821 = vmatpush1.msra.mxu0 0.0
    %2822 = vmatprep.subr.mxu0 0.0
    %2823 = vmatpush1.msra.mxu0 0.0
    %2824 = vmatprep.subr.mxu0 0.0
    %2825 = vmatpush1.msra.mxu0 0.0
    %2826 = vmatprep.subr.mxu0 0.0
    %2827 = vmatpush1.msra.mxu0 0.0
    %2828 = vmatprep.subr.mxu0 0.0
    %2829 = vmatpush1.msra.mxu0 0.0
    %2830 = vmatprep.subr.mxu0 0.0
    %2831 = vmatpush1.msra.mxu0 0.0
    %2832 = vmatprep.subr.mxu0 0.0
    %2833 = vmatpush1.msra.mxu0 0.0
    %2834 = vmatprep.subr.mxu0 0.0
    %2835 = vmatpush1.msra.mxu0 0.0
    %2836 = vmatprep.subr.mxu0 0.0
    %2837 = vmatpush1.msra.mxu0 0.0
    %2838 = vmatprep.subr.mxu0 0.0
    %2839 = vmatpush1.msra.mxu0 0.0
    %2840 = vmatprep.subr.mxu0 0.0
    %2841 = vmatpush1.msra.mxu0 0.0
    %2842 = vmatprep.mubr.f32.mxu0 0.0
    %2843 = vmatmul.mubr.f32.gmra.mrb[0].mxu0 %v2776
    %v2844 = vpop.f32.mrb[0].mxu0
    %v2845 = vadd.f32 %v224, %v2844
    %v2846 = vpop.f32.mrb[0].mxu0
    %2847 = vdwg.mxu0
    %v2848 = vxor.u32 %v2845, 2147483648
    %v2849 = vmul.f32 %v2848, 1.442695
    %v2850 = vpow.pop %v2849
    %v2851 = vadd.f32 %v2850, 1.0
    %v2852 = vrcp.pop %v2851
    %v2853 = vmul.f32 1.0, %v2852
    %2854 = vmatprep.subr.mxu0 0.0
    %2855 = vmatpush1.msra.mxu0 %v200
    %2856 = vmatprep.subr.mxu0 0.0
    %2857 = vmatpush1.msra.mxu0 %v201
    %2858 = vmatprep.subr.mxu0 0.0
    %2859 = vmatpush1.msra.mxu0 %v202
    %2860 = vmatprep.subr.mxu0 0.0
    %2861 = vmatpush1.msra.mxu0 %v203
    %2862 = vmatprep.subr.mxu0 0.0
    %2863 = vmatpush1.msra.mxu0 0.0
    %2864 = vmatprep.subr.mxu0 0.0
    %2865 = vmatpush1.msra.mxu0 0.0
    %2866 = vmatprep.subr.mxu0 0.0
    %2867 = vmatpush1.msra.mxu0 0.0
    %2868 = vmatprep.subr.mxu0 0.0
    %2869 = vmatpush1.msra.mxu0 0.0
    %2870 = vmatprep.subr.mxu0 0.0
    %2871 = vmatpush1.msra.mxu0 0.0
    %2872 = vmatprep.subr.mxu0 0.0
    %2873 = vmatpush1.msra.mxu0 0.0
    %2874 = vmatprep.subr.mxu0 0.0
    %2875 = vmatpush1.msra.mxu0 0.0
    %2876 = vmatprep.subr.mxu0 0.0
    %2877 = vmatpush1.msra.mxu0 0.0
    %2878 = vmatprep.subr.mxu0 0.0
    %2879 = vmatpush1.msra.mxu0 0.0
    %2880 = vmatprep.subr.mxu0 0.0
    %2881 = vmatpush1.msra.mxu0 0.0
    %2882 = vmatprep.subr.mxu0 0.0
    %2883 = vmatpush1.msra.mxu0 0.0
    %2884 = vmatprep.subr.mxu0 0.0
    %2885 = vmatpush1.msra.mxu0 0.0
    %2886 = vmatprep.subr.mxu0 0.0
    %2887 = vmatpush1.msra.mxu0 0.0
    %2888 = vmatprep.subr.mxu0 0.0
    %2889 = vmatpush1.msra.mxu0 0.0
    %2890 = vmatprep.subr.mxu0 0.0
    %2891 = vmatpush1.msra.mxu0 0.0
    %2892 = vmatprep.subr.mxu0 0.0
    %2893 = vmatpush1.msra.mxu0 0.0
    %2894 = vmatprep.subr.mxu0 0.0
    %2895 = vmatpush1.msra.mxu0 0.0
    %2896 = vmatprep.subr.mxu0 0.0
    %2897 = vmatpush1.msra.mxu0 0.0
    %2898 = vmatprep.subr.mxu0 0.0
    %2899 = vmatpush1.msra.mxu0 0.0
    %2900 = vmatprep.subr.mxu0 0.0
    %2901 = vmatpush1.msra.mxu0 0.0
    %2902 = vmatprep.subr.mxu0 0.0
    %2903 = vmatpush1.msra.mxu0 0.0
    %2904 = vmatprep.subr.mxu0 0.0
    %2905 = vmatpush1.msra.mxu0 0.0
    %2906 = vmatprep.subr.mxu0 0.0
    %2907 = vmatpush1.msra.mxu0 0.0
    %2908 = vmatprep.subr.mxu0 0.0
    %2909 = vmatpush1.msra.mxu0 0.0
    %2910 = vmatprep.subr.mxu0 0.0
    %2911 = vmatpush1.msra.mxu0 0.0
    %2912 = vmatprep.subr.mxu0 0.0
    %2913 = vmatpush1.msra.mxu0 0.0
    %2914 = vmatprep.subr.mxu0 0.0
    %2915 = vmatpush1.msra.mxu0 0.0
    %2916 = vmatprep.subr.mxu0 0.0
    %2917 = vmatpush1.msra.mxu0 0.0
    %2918 = vmatprep.mubr.f32.mxu0 0.0
    %2919 = vmatmul.mubr.f32.gmra.mrb[0].mxu0 %v2776
    %v2920 = vpop.f32.mrb[0].mxu0
    %v2921 = vadd.f32 %v231, %v2920
    %v2922 = vpop.f32.mrb[0].mxu0
    %2923 = vdwg.mxu0
    %v2924 = vxor.u32 %v2921, 2147483648
    %v2925 = vmul.f32 %v2924, 1.442695
    %v2926 = vpow.pop %v2925
    %v2927 = vadd.f32 %v2926, 1.0
    %v2928 = vrcp.pop %v2927
    %v2929 = vmul.f32 1.0, %v2928
    %2930 = vmatprep.subr.mxu0 0.0
    %2931 = vmatpush1.msra.mxu0 %v204
    %2932 = vmatprep.subr.mxu0 0.0
    %2933 = vmatpush1.msra.mxu0 %v205
    %2934 = vmatprep.subr.mxu0 0.0
    %2935 = vmatpush1.msra.mxu0 %v206
    %2936 = vmatprep.subr.mxu0 0.0
    %2937 = vmatpush1.msra.mxu0 %v207
    %2938 = vmatprep.subr.mxu0 0.0
    %2939 = vmatpush1.msra.mxu0 0.0
    %2940 = vmatprep.subr.mxu0 0.0
    %2941 = vmatpush1.msra.mxu0 0.0
    %2942 = vmatprep.subr.mxu0 0.0
    %2943 = vmatpush1.msra.mxu0 0.0
    %2944 = vmatprep.subr.mxu0 0.0
    %2945 = vmatpush1.msra.mxu0 0.0
    %2946 = vmatprep.subr.mxu0 0.0
    %2947 = vmatpush1.msra.mxu0 0.0
    %2948 = vmatprep.subr.mxu0 0.0
    %2949 = vmatpush1.msra.mxu0 0.0
    %2950 = vmatprep.subr.mxu0 0.0
    %2951 = vmatpush1.msra.mxu0 0.0
    %2952 = vmatprep.subr.mxu0 0.0
    %2953 = vmatpush1.msra.mxu0 0.0
    %2954 = vmatprep.subr.mxu0 0.0
    %2955 = vmatpush1.msra.mxu0 0.0
    %2956 = vmatprep.subr.mxu0 0.0
    %2957 = vmatpush1.msra.mxu0 0.0
    %2958 = vmatprep.subr.mxu0 0.0
    %2959 = vmatpush1.msra.mxu0 0.0
    %2960 = vmatprep.subr.mxu0 0.0
    %2961 = vmatpush1.msra.mxu0 0.0
    %2962 = vmatprep.subr.mxu0 0.0
    %2963 = vmatpush1.msra.mxu0 0.0
    %2964 = vmatprep.subr.mxu0 0.0
    %2965 = vmatpush1.msra.mxu0 0.0
    %2966 = vmatprep.subr.mxu0 0.0
    %2967 = vmatpush1.msra.mxu0 0.0
    %2968 = vmatprep.subr.mxu0 0.0
    %2969 = vmatpush1.msra.mxu0 0.0
    %2970 = vmatprep.subr.mxu0 0.0
    %2971 = vmatpush1.msra.mxu0 0.0
    %2972 = vmatprep.subr.mxu0 0.0
    %2973 = vmatpush1.msra.mxu0 0.0
    %2974 = vmatprep.subr.mxu0 0.0
    %2975 = vmatpush1.msra.mxu0 0.0
    %2976 = vmatprep.subr.mxu0 0.0
    %2977 = vmatpush1.msra.mxu0 0.0
    %2978 = vmatprep.subr.mxu0 0.0
    %2979 = vmatpush1.msra.mxu0 0.0
    %2980 = vmatprep.subr.mxu0 0.0
    %2981 = vmatpush1.msra.mxu0 0.0
    %2982 = vmatprep.subr.mxu0 0.0
    %2983 = vmatpush1.msra.mxu0 0.0
    %2984 = vmatprep.subr.mxu0 0.0
    %2985 = vmatpush1.msra.mxu0 0.0
    %2986 = vmatprep.subr.mxu0 0.0
    %2987 = vmatpush1.msra.mxu0 0.0
    %2988 = vmatprep.subr.mxu0 0.0
    %2989 = vmatpush1.msra.mxu0 0.0
    %2990 = vmatprep.subr.mxu0 0.0
    %2991 = vmatpush1.msra.mxu0 0.0
    %2992 = vmatprep.subr.mxu0 0.0
    %2993 = vmatpush1.msra.mxu0 0.0
    %2994 = vmatprep.mubr.f32.mxu0 0.0
    %2995 = vmatmul.mubr.f32.gmra.mrb[0].mxu0 %v2776
    %v2996 = vpop.f32.mrb[0].mxu0
    %v2997 = vadd.f32 %v238, %v2996
    %v2998 = vpop.f32.mrb[0].mxu0
    %2999 = vdwg.mxu0
    %3000 = vmatprep.subr.mxu0 0.0
    %3001 = vmatpush1.msra.mxu0 %v208
    %3002 = vmatprep.subr.mxu0 0.0
    %3003 = vmatpush1.msra.mxu0 %v209
    %3004 = vmatprep.subr.mxu0 0.0
    %3005 = vmatpush1.msra.mxu0 %v210
    %3006 = vmatprep.subr.mxu0 0.0
    %3007 = vmatpush1.msra.mxu0 %v211
    %3008 = vmatprep.subr.mxu0 0.0
    %3009 = vmatpush1.msra.mxu0 0.0
    %3010 = vmatprep.subr.mxu0 0.0
    %3011 = vmatpush1.msra.mxu0 0.0
    %3012 = vmatprep.subr.mxu0 0.0
    %3013 = vmatpush1.msra.mxu0 0.0
    %3014 = vmatprep.subr.mxu0 0.0
    %3015 = vmatpush1.msra.mxu0 0.0
    %3016 = vmatprep.subr.mxu0 0.0
    %3017 = vmatpush1.msra.mxu0 0.0
    %3018 = vmatprep.subr.mxu0 0.0
    %3019 = vmatpush1.msra.mxu0 0.0
    %3020 = vmatprep.subr.mxu0 0.0
    %3021 = vmatpush1.msra.mxu0 0.0
    %3022 = vmatprep.subr.mxu0 0.0
    %3023 = vmatpush1.msra.mxu0 0.0
    %3024 = vmatprep.subr.mxu0 0.0
    %3025 = vmatpush1.msra.mxu0 0.0
    %3026 = vmatprep.subr.mxu0 0.0
    %3027 = vmatpush1.msra.mxu0 0.0
    %3028 = vmatprep.subr.mxu0 0.0
    %3029 = vmatpush1.msra.mxu0 0.0
    %3030 = vmatprep.subr.mxu0 0.0
    %3031 = vmatpush1.msra.mxu0 0.0
    %3032 = vmatprep.subr.mxu0 0.0
    %3033 = vmatpush1.msra.mxu0 0.0
    %3034 = vmatprep.subr.mxu0 0.0
    %3035 = vmatpush1.msra.mxu0 0.0
    %3036 = vmatprep.subr.mxu0 0.0
    %3037 = vmatpush1.msra.mxu0 0.0
    %3038 = vmatprep.subr.mxu0 0.0
    %3039 = vmatpush1.msra.mxu0 0.0
    %3040 = vmatprep.subr.mxu0 0.0
    %3041 = vmatpush1.msra.mxu0 0.0
    %3042 = vmatprep.subr.mxu0 0.0
    %3043 = vmatpush1.msra.mxu0 0.0
    %3044 = vmatprep.subr.mxu0 0.0
    %3045 = vmatpush1.msra.mxu0 0.0
    %3046 = vmatprep.subr.mxu0 0.0
    %3047 = vmatpush1.msra.mxu0 0.0
    %3048 = vmatprep.subr.mxu0 0.0
    %3049 = vmatpush1.msra.mxu0 0.0
    %3050 = vmatprep.subr.mxu0 0.0
    %3051 = vmatpush1.msra.mxu0 0.0
    %3052 = vmatprep.subr.mxu0 0.0
    %3053 = vmatpush1.msra.mxu0 0.0
    %3054 = vmatprep.subr.mxu0 0.0
    %3055 = vmatpush1.msra.mxu0 0.0
    %3056 = vmatprep.subr.mxu0 0.0
    %3057 = vmatpush1.msra.mxu0 0.0
    %3058 = vmatprep.subr.mxu0 0.0
    %3059 = vmatpush1.msra.mxu0 0.0
    %3060 = vmatprep.subr.mxu0 0.0
    %3061 = vmatpush1.msra.mxu0 0.0
    %3062 = vmatprep.subr.mxu0 0.0
    %3063 = vmatpush1.msra.mxu0 0.0
    %3064 = vmatprep.mubr.f32.mxu0 0.0
    %3065 = vmatmul.mubr.f32.gmra.mrb[0].mxu0 %v2776
    %v3066 = vpop.f32.mrb[0].mxu0
    %v3067 = vadd.f32 %v245, %v3066
    %v3068 = vpop.f32.mrb[0].mxu0
    %3069 = vdwg.mxu0
    %v3070 = vmul.f32 %v2853, %v3067
    %v3071 = vadd.f32 %v2997, %v3070
    %v3072 = vtanh.pop %v3071
    %v3073 = vsub.f32 1.0, %v2929
    %v3074 = vmul.f32 %v3073, %v3072
    %v3075 = vmul.f32 %v2929, %v2772
    %v3076 = vadd.f32 %v3074, %v3075
    %3077 = vst.msk [vmem:[#allocation2 + $0x4] sm:$0xf] %vm2773, %v3076
    %v3079 = vsel %vm546, %v3076, 0
    %3081 = vmatprep.subr.mxu0 0.0
    %3082 = vmatpush1.msra.mxu0 %v196
    %3083 = vmatprep.subr.mxu0 0.0
    %3084 = vmatpush1.msra.mxu0 %v197
    %3085 = vmatprep.subr.mxu0 0.0
    %3086 = vmatpush1.msra.mxu0 %v198
    %3087 = vmatprep.subr.mxu0 0.0
    %3088 = vmatpush1.msra.mxu0 %v199
    %3089 = vmatprep.subr.mxu0 0.0
    %3090 = vmatpush1.msra.mxu0 0.0
    %3091 = vmatprep.subr.mxu0 0.0
    %3092 = vmatpush1.msra.mxu0 0.0
    %3093 = vmatprep.subr.mxu0 0.0
    %3094 = vmatpush1.msra.mxu0 0.0
    %3095 = vmatprep.subr.mxu0 0.0
    %3096 = vmatpush1.msra.mxu0 0.0
    %3097 = vmatprep.subr.mxu0 0.0
    %3098 = vmatpush1.msra.mxu0 0.0
    %3099 = vmatprep.subr.mxu0 0.0
    %3100 = vmatpush1.msra.mxu0 0.0
    %3101 = vmatprep.subr.mxu0 0.0
    %3102 = vmatpush1.msra.mxu0 0.0
    %3103 = vmatprep.subr.mxu0 0.0
    %3104 = vmatpush1.msra.mxu0 0.0
    %3105 = vmatprep.subr.mxu0 0.0
    %3106 = vmatpush1.msra.mxu0 0.0
    %3107 = vmatprep.subr.mxu0 0.0
    %3108 = vmatpush1.msra.mxu0 0.0
    %3109 = vmatprep.subr.mxu0 0.0
    %3110 = vmatpush1.msra.mxu0 0.0
    %3111 = vmatprep.subr.mxu0 0.0
    %3112 = vmatpush1.msra.mxu0 0.0
    %3113 = vmatprep.subr.mxu0 0.0
    %3114 = vmatpush1.msra.mxu0 0.0
    %3115 = vmatprep.subr.mxu0 0.0
    %3116 = vmatpush1.msra.mxu0 0.0
    %3117 = vmatprep.subr.mxu0 0.0
    %3118 = vmatpush1.msra.mxu0 0.0
    %3119 = vmatprep.subr.mxu0 0.0
    %3120 = vmatpush1.msra.mxu0 0.0
    %3121 = vmatprep.subr.mxu0 0.0
    %3122 = vmatpush1.msra.mxu0 0.0
    %3123 = vmatprep.subr.mxu0 0.0
    %3124 = vmatpush1.msra.mxu0 0.0
    %3125 = vmatprep.subr.mxu0 0.0
    %3126 = vmatpush1.msra.mxu0 0.0
    %3127 = vmatprep.subr.mxu0 0.0
    %3128 = vmatpush1.msra.mxu0 0.0
    %3129 = vmatprep.subr.mxu0 0.0
    %3130 = vmatpush1.msra.mxu0 0.0
    %3131 = vmatprep.subr.mxu0 0.0
    %3132 = vmatpush1.msra.mxu0 0.0
    %3133 = vmatprep.subr.mxu0 0.0
    %3134 = vmatpush1.msra.mxu0 0.0
    %3135 = vmatprep.subr.mxu0 0.0
    %3136 = vmatpush1.msra.mxu0 0.0
    %3137 = vmatprep.subr.mxu0 0.0
    %3138 = vmatpush1.msra.mxu0 0.0
    %3139 = vmatprep.subr.mxu0 0.0
    %3140 = vmatpush1.msra.mxu0 0.0
    %3141 = vmatprep.subr.mxu0 0.0
    %3142 = vmatpush1.msra.mxu0 0.0
    %3143 = vmatprep.subr.mxu0 0.0
    %3144 = vmatpush1.msra.mxu0 0.0
    %3145 = vmatprep.mubr.f32.mxu0 0.0
    %3146 = vmatmul.mubr.f32.gmra.mrb[0].mxu0 %v3079
    %v3147 = vpop.f32.mrb[0].mxu0
    %v3148 = vadd.f32 %v224, %v3147
    %v3149 = vpop.f32.mrb[0].mxu0
    %3150 = vdwg.mxu0
    %v3151 = vxor.u32 %v3148, 2147483648
    %v3152 = vmul.f32 %v3151, 1.442695
    %v3153 = vpow.pop %v3152
    %v3154 = vadd.f32 %v3153, 1.0
    %v3155 = vrcp.pop %v3154
    %v3156 = vmul.f32 1.0, %v3155
    %3157 = vmatprep.subr.mxu0 0.0
    %3158 = vmatpush1.msra.mxu0 %v200
    %3159 = vmatprep.subr.mxu0 0.0
    %3160 = vmatpush1.msra.mxu0 %v201
    %3161 = vmatprep.subr.mxu0 0.0
    %3162 = vmatpush1.msra.mxu0 %v202
    %3163 = vmatprep.subr.mxu0 0.0
    %3164 = vmatpush1.msra.mxu0 %v203
    %3165 = vmatprep.subr.mxu0 0.0
    %3166 = vmatpush1.msra.mxu0 0.0
    %3167 = vmatprep.subr.mxu0 0.0
    %3168 = vmatpush1.msra.mxu0 0.0
    %3169 = vmatprep.subr.mxu0 0.0
    %3170 = vmatpush1.msra.mxu0 0.0
    %3171 = vmatprep.subr.mxu0 0.0
    %3172 = vmatpush1.msra.mxu0 0.0
    %3173 = vmatprep.subr.mxu0 0.0
    %3174 = vmatpush1.msra.mxu0 0.0
    %3175 = vmatprep.subr.mxu0 0.0
    %3176 = vmatpush1.msra.mxu0 0.0
    %3177 = vmatprep.subr.mxu0 0.0
    %3178 = vmatpush1.msra.mxu0 0.0
    %3179 = vmatprep.subr.mxu0 0.0
    %3180 = vmatpush1.msra.mxu0 0.0
    %3181 = vmatprep.subr.mxu0 0.0
    %3182 = vmatpush1.msra.mxu0 0.0
    %3183 = vmatprep.subr.mxu0 0.0
    %3184 = vmatpush1.msra.mxu0 0.0
    %3185 = vmatprep.subr.mxu0 0.0
    %3186 = vmatpush1.msra.mxu0 0.0
    %3187 = vmatprep.subr.mxu0 0.0
    %3188 = vmatpush1.msra.mxu0 0.0
    %3189 = vmatprep.subr.mxu0 0.0
    %3190 = vmatpush1.msra.mxu0 0.0
    %3191 = vmatprep.subr.mxu0 0.0
    %3192 = vmatpush1.msra.mxu0 0.0
    %3193 = vmatprep.subr.mxu0 0.0
    %3194 = vmatpush1.msra.mxu0 0.0
    %3195 = vmatprep.subr.mxu0 0.0
    %3196 = vmatpush1.msra.mxu0 0.0
    %3197 = vmatprep.subr.mxu0 0.0
    %3198 = vmatpush1.msra.mxu0 0.0
    %3199 = vmatprep.subr.mxu0 0.0
    %3200 = vmatpush1.msra.mxu0 0.0
    %3201 = vmatprep.subr.mxu0 0.0
    %3202 = vmatpush1.msra.mxu0 0.0
    %3203 = vmatprep.subr.mxu0 0.0
    %3204 = vmatpush1.msra.mxu0 0.0
    %3205 = vmatprep.subr.mxu0 0.0
    %3206 = vmatpush1.msra.mxu0 0.0
    %3207 = vmatprep.subr.mxu0 0.0
    %3208 = vmatpush1.msra.mxu0 0.0
    %3209 = vmatprep.subr.mxu0 0.0
    %3210 = vmatpush1.msra.mxu0 0.0
    %3211 = vmatprep.subr.mxu0 0.0
    %3212 = vmatpush1.msra.mxu0 0.0
    %3213 = vmatprep.subr.mxu0 0.0
    %3214 = vmatpush1.msra.mxu0 0.0
    %3215 = vmatprep.subr.mxu0 0.0
    %3216 = vmatpush1.msra.mxu0 0.0
    %3217 = vmatprep.subr.mxu0 0.0
    %3218 = vmatpush1.msra.mxu0 0.0
    %3219 = vmatprep.subr.mxu0 0.0
    %3220 = vmatpush1.msra.mxu0 0.0
    %3221 = vmatprep.mubr.f32.mxu0 0.0
    %3222 = vmatmul.mubr.f32.gmra.mrb[0].mxu0 %v3079
    %v3223 = vpop.f32.mrb[0].mxu0
    %v3224 = vadd.f32 %v231, %v3223
    %v3225 = vpop.f32.mrb[0].mxu0
    %3226 = vdwg.mxu0
    %v3227 = vxor.u32 %v3224, 2147483648
    %v3228 = vmul.f32 %v3227, 1.442695
    %v3229 = vpow.pop %v3228
    %v3230 = vadd.f32 %v3229, 1.0
    %v3231 = vrcp.pop %v3230
    %v3232 = vmul.f32 1.0, %v3231
    %3233 = vmatprep.subr.mxu0 0.0
    %3234 = vmatpush1.msra.mxu0 %v204
    %3235 = vmatprep.subr.mxu0 0.0
    %3236 = vmatpush1.msra.mxu0 %v205
    %3237 = vmatprep.subr.mxu0 0.0
    %3238 = vmatpush1.msra.mxu0 %v206
    %3239 = vmatprep.subr.mxu0 0.0
    %3240 = vmatpush1.msra.mxu0 %v207
    %3241 = vmatprep.subr.mxu0 0.0
    %3242 = vmatpush1.msra.mxu0 0.0
    %3243 = vmatprep.subr.mxu0 0.0
    %3244 = vmatpush1.msra.mxu0 0.0
    %3245 = vmatprep.subr.mxu0 0.0
    %3246 = vmatpush1.msra.mxu0 0.0
    %3247 = vmatprep.subr.mxu0 0.0
    %3248 = vmatpush1.msra.mxu0 0.0
    %3249 = vmatprep.subr.mxu0 0.0
    %3250 = vmatpush1.msra.mxu0 0.0
    %3251 = vmatprep.subr.mxu0 0.0
    %3252 = vmatpush1.msra.mxu0 0.0
    %3253 = vmatprep.subr.mxu0 0.0
    %3254 = vmatpush1.msra.mxu0 0.0
    %3255 = vmatprep.subr.mxu0 0.0
    %3256 = vmatpush1.msra.mxu0 0.0
    %3257 = vmatprep.subr.mxu0 0.0
    %3258 = vmatpush1.msra.mxu0 0.0
    %3259 = vmatprep.subr.mxu0 0.0
    %3260 = vmatpush1.msra.mxu0 0.0
    %3261 = vmatprep.subr.mxu0 0.0
    %3262 = vmatpush1.msra.mxu0 0.0
    %3263 = vmatprep.subr.mxu0 0.0
    %3264 = vmatpush1.msra.mxu0 0.0
    %3265 = vmatprep.subr.mxu0 0.0
    %3266 = vmatpush1.msra.mxu0 0.0
    %3267 = vmatprep.subr.mxu0 0.0
    %3268 = vmatpush1.msra.mxu0 0.0
    %3269 = vmatprep.subr.mxu0 0.0
    %3270 = vmatpush1.msra.mxu0 0.0
    %3271 = vmatprep.subr.mxu0 0.0
    %3272 = vmatpush1.msra.mxu0 0.0
    %3273 = vmatprep.subr.mxu0 0.0
    %3274 = vmatpush1.msra.mxu0 0.0
    %3275 = vmatprep.subr.mxu0 0.0
    %3276 = vmatpush1.msra.mxu0 0.0
    %3277 = vmatprep.subr.mxu0 0.0
    %3278 = vmatpush1.msra.mxu0 0.0
    %3279 = vmatprep.subr.mxu0 0.0
    %3280 = vmatpush1.msra.mxu0 0.0
    %3281 = vmatprep.subr.mxu0 0.0
    %3282 = vmatpush1.msra.mxu0 0.0
    %3283 = vmatprep.subr.mxu0 0.0
    %3284 = vmatpush1.msra.mxu0 0.0
    %3285 = vmatprep.subr.mxu0 0.0
    %3286 = vmatpush1.msra.mxu0 0.0
    %3287 = vmatprep.subr.mxu0 0.0
    %3288 = vmatpush1.msra.mxu0 0.0
    %3289 = vmatprep.subr.mxu0 0.0
    %3290 = vmatpush1.msra.mxu0 0.0
    %3291 = vmatprep.subr.mxu0 0.0
    %3292 = vmatpush1.msra.mxu0 0.0
    %3293 = vmatprep.subr.mxu0 0.0
    %3294 = vmatpush1.msra.mxu0 0.0
    %3295 = vmatprep.subr.mxu0 0.0
    %3296 = vmatpush1.msra.mxu0 0.0
    %3297 = vmatprep.mubr.f32.mxu0 0.0
    %3298 = vmatmul.mubr.f32.gmra.mrb[0].mxu0 %v3079
    %v3299 = vpop.f32.mrb[0].mxu0
    %v3300 = vadd.f32 %v238, %v3299
    %v3301 = vpop.f32.mrb[0].mxu0
    %3302 = vdwg.mxu0
    %3303 = vmatprep.subr.mxu0 0.0
    %3304 = vmatpush1.msra.mxu0 %v208
    %3305 = vmatprep.subr.mxu0 0.0
    %3306 = vmatpush1.msra.mxu0 %v209
    %3307 = vmatprep.subr.mxu0 0.0
    %3308 = vmatpush1.msra.mxu0 %v210
    %3309 = vmatprep.subr.mxu0 0.0
    %3310 = vmatpush1.msra.mxu0 %v211
    %3311 = vmatprep.subr.mxu0 0.0
    %3312 = vmatpush1.msra.mxu0 0.0
    %3313 = vmatprep.subr.mxu0 0.0
    %3314 = vmatpush1.msra.mxu0 0.0
    %3315 = vmatprep.subr.mxu0 0.0
    %3316 = vmatpush1.msra.mxu0 0.0
    %3317 = vmatprep.subr.mxu0 0.0
    %3318 = vmatpush1.msra.mxu0 0.0
    %3319 = vmatprep.subr.mxu0 0.0
    %3320 = vmatpush1.msra.mxu0 0.0
    %3321 = vmatprep.subr.mxu0 0.0
    %3322 = vmatpush1.msra.mxu0 0.0
    %3323 = vmatprep.subr.mxu0 0.0
    %3324 = vmatpush1.msra.mxu0 0.0
    %3325 = vmatprep.subr.mxu0 0.0
    %3326 = vmatpush1.msra.mxu0 0.0
    %3327 = vmatprep.subr.mxu0 0.0
    %3328 = vmatpush1.msra.mxu0 0.0
    %3329 = vmatprep.subr.mxu0 0.0
    %3330 = vmatpush1.msra.mxu0 0.0
    %3331 = vmatprep.subr.mxu0 0.0
    %3332 = vmatpush1.msra.mxu0 0.0
    %3333 = vmatprep.subr.mxu0 0.0
    %3334 = vmatpush1.msra.mxu0 0.0
    %3335 = vmatprep.subr.mxu0 0.0
    %3336 = vmatpush1.msra.mxu0 0.0
    %3337 = vmatprep.subr.mxu0 0.0
    %3338 = vmatpush1.msra.mxu0 0.0
    %3339 = vmatprep.subr.mxu0 0.0
    %3340 = vmatpush1.msra.mxu0 0.0
    %3341 = vmatprep.subr.mxu0 0.0
    %3342 = vmatpush1.msra.mxu0 0.0
    %3343 = vmatprep.subr.mxu0 0.0
    %3344 = vmatpush1.msra.mxu0 0.0
    %3345 = vmatprep.subr.mxu0 0.0
    %3346 = vmatpush1.msra.mxu0 0.0
    %3347 = vmatprep.subr.mxu0 0.0
    %3348 = vmatpush1.msra.mxu0 0.0
    %3349 = vmatprep.subr.mxu0 0.0
    %3350 = vmatpush1.msra.mxu0 0.0
    %3351 = vmatprep.subr.mxu0 0.0
    %3352 = vmatpush1.msra.mxu0 0.0
    %3353 = vmatprep.subr.mxu0 0.0
    %3354 = vmatpush1.msra.mxu0 0.0
    %3355 = vmatprep.subr.mxu0 0.0
    %3356 = vmatpush1.msra.mxu0 0.0
    %3357 = vmatprep.subr.mxu0 0.0
    %3358 = vmatpush1.msra.mxu0 0.0
    %3359 = vmatprep.subr.mxu0 0.0
    %3360 = vmatpush1.msra.mxu0 0.0
    %3361 = vmatprep.subr.mxu0 0.0
    %3362 = vmatpush1.msra.mxu0 0.0
    %3363 = vmatprep.subr.mxu0 0.0
    %3364 = vmatpush1.msra.mxu0 0.0
    %3365 = vmatprep.subr.mxu0 0.0
    %3366 = vmatpush1.msra.mxu0 0.0
    %3367 = vmatprep.mubr.f32.mxu0 0.0
    %3368 = vmatmul.mubr.f32.gmra.mrb[0].mxu0 %v3079
    %v3369 = vpop.f32.mrb[0].mxu0
    %v3370 = vadd.f32 %v245, %v3369
    %v3371 = vpop.f32.mrb[0].mxu0
    %3372 = vdwg.mxu0
    %v3373 = vmul.f32 %v3156, %v3370
    %v3374 = vadd.f32 %v3300, %v3373
    %v3375 = vtanh.pop %v3374
    %v3376 = vsub.f32 1.0, %v3232
    %v3377 = vmul.f32 %v3376, %v3375
    %v3378 = vmul.f32 %v3232, %v3076
    %v3379 = vadd.f32 %v3377, %v3378
    %3380 = vst.msk [vmem:[#allocation2 + $0x8] sm:$0xf] %vm2773, %v3379
    %v3382 = vsel %vm546, %v3379, 0
    %3384 = vmatprep.subr.mxu0 0.0
    %3385 = vmatpush1.msra.mxu0 %v196
    %3386 = vmatprep.subr.mxu0 0.0
    %3387 = vmatpush1.msra.mxu0 %v197
    %3388 = vmatprep.subr.mxu0 0.0
    %3389 = vmatpush1.msra.mxu0 %v198
    %3390 = vmatprep.subr.mxu0 0.0
    %3391 = vmatpush1.msra.mxu0 %v199
    %3392 = vmatprep.subr.mxu0 0.0
    %3393 = vmatpush1.msra.mxu0 0.0
    %3394 = vmatprep.subr.mxu0 0.0
    %3395 = vmatpush1.msra.mxu0 0.0
    %3396 = vmatprep.subr.mxu0 0.0
    %3397 = vmatpush1.msra.mxu0 0.0
    %3398 = vmatprep.subr.mxu0 0.0
    %3399 = vmatpush1.msra.mxu0 0.0
    %3400 = vmatprep.subr.mxu0 0.0
    %3401 = vmatpush1.msra.mxu0 0.0
    %3402 = vmatprep.subr.mxu0 0.0
    %3403 = vmatpush1.msra.mxu0 0.0
    %3404 = vmatprep.subr.mxu0 0.0
    %3405 = vmatpush1.msra.mxu0 0.0
    %3406 = vmatprep.subr.mxu0 0.0
    %3407 = vmatpush1.msra.mxu0 0.0
    %3408 = vmatprep.subr.mxu0 0.0
    %3409 = vmatpush1.msra.mxu0 0.0
    %3410 = vmatprep.subr.mxu0 0.0
    %3411 = vmatpush1.msra.mxu0 0.0
    %3412 = vmatprep.subr.mxu0 0.0
    %3413 = vmatpush1.msra.mxu0 0.0
    %3414 = vmatprep.subr.mxu0 0.0
    %3415 = vmatpush1.msra.mxu0 0.0
    %3416 = vmatprep.subr.mxu0 0.0
    %3417 = vmatpush1.msra.mxu0 0.0
    %3418 = vmatprep.subr.mxu0 0.0
    %3419 = vmatpush1.msra.mxu0 0.0
    %3420 = vmatprep.subr.mxu0 0.0
    %3421 = vmatpush1.msra.mxu0 0.0
    %3422 = vmatprep.subr.mxu0 0.0
    %3423 = vmatpush1.msra.mxu0 0.0
    %3424 = vmatprep.subr.mxu0 0.0
    %3425 = vmatpush1.msra.mxu0 0.0
    %3426 = vmatprep.subr.mxu0 0.0
    %3427 = vmatpush1.msra.mxu0 0.0
    %3428 = vmatprep.subr.mxu0 0.0
    %3429 = vmatpush1.msra.mxu0 0.0
    %3430 = vmatprep.subr.mxu0 0.0
    %3431 = vmatpush1.msra.mxu0 0.0
    %3432 = vmatprep.subr.mxu0 0.0
    %3433 = vmatpush1.msra.mxu0 0.0
    %3434 = vmatprep.subr.mxu0 0.0
    %3435 = vmatpush1.msra.mxu0 0.0
    %3436 = vmatprep.subr.mxu0 0.0
    %3437 = vmatpush1.msra.mxu0 0.0
    %3438 = vmatprep.subr.mxu0 0.0
    %3439 = vmatpush1.msra.mxu0 0.0
    %3440 = vmatprep.subr.mxu0 0.0
    %3441 = vmatpush1.msra.mxu0 0.0
    %3442 = vmatprep.subr.mxu0 0.0
    %3443 = vmatpush1.msra.mxu0 0.0
    %3444 = vmatprep.subr.mxu0 0.0
    %3445 = vmatpush1.msra.mxu0 0.0
    %3446 = vmatprep.subr.mxu0 0.0
    %3447 = vmatpush1.msra.mxu0 0.0
    %3448 = vmatprep.mubr.f32.mxu0 0.0
    %3449 = vmatmul.mubr.f32.gmra.mrb[0].mxu0 %v3382
    %v3450 = vpop.f32.mrb[0].mxu0
    %v3451 = vadd.f32 %v224, %v3450
    %v3452 = vpop.f32.mrb[0].mxu0
    %3453 = vdwg.mxu0
    %v3454 = vxor.u32 %v3451, 2147483648
    %v3455 = vmul.f32 %v3454, 1.442695
    %v3456 = vpow.pop %v3455
    %v3457 = vadd.f32 %v3456, 1.0
    %v3458 = vrcp.pop %v3457
    %v3459 = vmul.f32 1.0, %v3458
    %3460 = vmatprep.subr.mxu0 0.0
    %3461 = vmatpush1.msra.mxu0 %v200
    %3462 = vmatprep.subr.mxu0 0.0
    %3463 = vmatpush1.msra.mxu0 %v201
    %3464 = vmatprep.subr.mxu0 0.0
    %3465 = vmatpush1.msra.mxu0 %v202
    %3466 = vmatprep.subr.mxu0 0.0
    %3467 = vmatpush1.msra.mxu0 %v203
    %3468 = vmatprep.subr.mxu0 0.0
    %3469 = vmatpush1.msra.mxu0 0.0
    %3470 = vmatprep.subr.mxu0 0.0
    %3471 = vmatpush1.msra.mxu0 0.0
    %3472 = vmatprep.subr.mxu0 0.0
    %3473 = vmatpush1.msra.mxu0 0.0
    %3474 = vmatprep.subr.mxu0 0.0
    %3475 = vmatpush1.msra.mxu0 0.0
    %3476 = vmatprep.subr.mxu0 0.0
    %3477 = vmatpush1.msra.mxu0 0.0
    %3478 = vmatprep.subr.mxu0 0.0
    %3479 = vmatpush1.msra.mxu0 0.0
    %3480 = vmatprep.subr.mxu0 0.0
    %3481 = vmatpush1.msra.mxu0 0.0
    %3482 = vmatprep.subr.mxu0 0.0
    %3483 = vmatpush1.msra.mxu0 0.0
    %3484 = vmatprep.subr.mxu0 0.0
    %3485 = vmatpush1.msra.mxu0 0.0
    %3486 = vmatprep.subr.mxu0 0.0
    %3487 = vmatpush1.msra.mxu0 0.0
    %3488 = vmatprep.subr.mxu0 0.0
    %3489 = vmatpush1.msra.mxu0 0.0
    %3490 = vmatprep.subr.mxu0 0.0
    %3491 = vmatpush1.msra.mxu0 0.0
    %3492 = vmatprep.subr.mxu0 0.0
    %3493 = vmatpush1.msra.mxu0 0.0
    %3494 = vmatprep.subr.mxu0 0.0
    %3495 = vmatpush1.msra.mxu0 0.0
    %3496 = vmatprep.subr.mxu0 0.0
    %3497 = vmatpush1.msra.mxu0 0.0
    %3498 = vmatprep.subr.mxu0 0.0
    %3499 = vmatpush1.msra.mxu0 0.0
    %3500 = vmatprep.subr.mxu0 0.0
    %3501 = vmatpush1.msra.mxu0 0.0
    %3502 = vmatprep.subr.mxu0 0.0
    %3503 = vmatpush1.msra.mxu0 0.0
    %3504 = vmatprep.subr.mxu0 0.0
    %3505 = vmatpush1.msra.mxu0 0.0
    %3506 = vmatprep.subr.mxu0 0.0
    %3507 = vmatpush1.msra.mxu0 0.0
    %3508 = vmatprep.subr.mxu0 0.0
    %3509 = vmatpush1.msra.mxu0 0.0
    %3510 = vmatprep.subr.mxu0 0.0
    %3511 = vmatpush1.msra.mxu0 0.0
    %3512 = vmatprep.subr.mxu0 0.0
    %3513 = vmatpush1.msra.mxu0 0.0
    %3514 = vmatprep.subr.mxu0 0.0
    %3515 = vmatpush1.msra.mxu0 0.0
    %3516 = vmatprep.subr.mxu0 0.0
    %3517 = vmatpush1.msra.mxu0 0.0
    %3518 = vmatprep.subr.mxu0 0.0
    %3519 = vmatpush1.msra.mxu0 0.0
    %3520 = vmatprep.subr.mxu0 0.0
    %3521 = vmatpush1.msra.mxu0 0.0
    %3522 = vmatprep.subr.mxu0 0.0
    %3523 = vmatpush1.msra.mxu0 0.0
    %3524 = vmatprep.mubr.f32.mxu0 0.0
    %3525 = vmatmul.mubr.f32.gmra.mrb[0].mxu0 %v3382
    %v3526 = vpop.f32.mrb[0].mxu0
    %v3527 = vadd.f32 %v231, %v3526
    %v3528 = vpop.f32.mrb[0].mxu0
    %3529 = vdwg.mxu0
    %v3530 = vxor.u32 %v3527, 2147483648
    %v3531 = vmul.f32 %v3530, 1.442695
    %v3532 = vpow.pop %v3531
    %v3533 = vadd.f32 %v3532, 1.0
    %v3534 = vrcp.pop %v3533
    %v3535 = vmul.f32 1.0, %v3534
    %3536 = vmatprep.subr.mxu0 0.0
    %3537 = vmatpush1.msra.mxu0 %v204
    %3538 = vmatprep.subr.mxu0 0.0
    %3539 = vmatpush1.msra.mxu0 %v205
    %3540 = vmatprep.subr.mxu0 0.0
    %3541 = vmatpush1.msra.mxu0 %v206
    %3542 = vmatprep.subr.mxu0 0.0
    %3543 = vmatpush1.msra.mxu0 %v207
    %3544 = vmatprep.subr.mxu0 0.0
    %3545 = vmatpush1.msra.mxu0 0.0
    %3546 = vmatprep.subr.mxu0 0.0
    %3547 = vmatpush1.msra.mxu0 0.0
    %3548 = vmatprep.subr.mxu0 0.0
    %3549 = vmatpush1.msra.mxu0 0.0
    %3550 = vmatprep.subr.mxu0 0.0
    %3551 = vmatpush1.msra.mxu0 0.0
    %3552 = vmatprep.subr.mxu0 0.0
    %3553 = vmatpush1.msra.mxu0 0.0
    %3554 = vmatprep.subr.mxu0 0.0
    %3555 = vmatpush1.msra.mxu0 0.0
    %3556 = vmatprep.subr.mxu0 0.0
    %3557 = vmatpush1.msra.mxu0 0.0
    %3558 = vmatprep.subr.mxu0 0.0
    %3559 = vmatpush1.msra.mxu0 0.0
    %3560 = vmatprep.subr.mxu0 0.0
    %3561 = vmatpush1.msra.mxu0 0.0
    %3562 = vmatprep.subr.mxu0 0.0
    %3563 = vmatpush1.msra.mxu0 0.0
    %3564 = vmatprep.subr.mxu0 0.0
    %3565 = vmatpush1.msra.mxu0 0.0
    %3566 = vmatprep.subr.mxu0 0.0
    %3567 = vmatpush1.msra.mxu0 0.0
    %3568 = vmatprep.subr.mxu0 0.0
    %3569 = vmatpush1.msra.mxu0 0.0
    %3570 = vmatprep.subr.mxu0 0.0
    %3571 = vmatpush1.msra.mxu0 0.0
    %3572 = vmatprep.subr.mxu0 0.0
    %3573 = vmatpush1.msra.mxu0 0.0
    %3574 = vmatprep.subr.mxu0 0.0
    %3575 = vmatpush1.msra.mxu0 0.0
    %3576 = vmatprep.subr.mxu0 0.0
    %3577 = vmatpush1.msra.mxu0 0.0
    %3578 = vmatprep.subr.mxu0 0.0
    %3579 = vmatpush1.msra.mxu0 0.0
    %3580 = vmatprep.subr.mxu0 0.0
    %3581 = vmatpush1.msra.mxu0 0.0
    %3582 = vmatprep.subr.mxu0 0.0
    %3583 = vmatpush1.msra.mxu0 0.0
    %3584 = vmatprep.subr.mxu0 0.0
    %3585 = vmatpush1.msra.mxu0 0.0
    %3586 = vmatprep.subr.mxu0 0.0
    %3587 = vmatpush1.msra.mxu0 0.0
    %3588 = vmatprep.subr.mxu0 0.0
    %3589 = vmatpush1.msra.mxu0 0.0
    %3590 = vmatprep.subr.mxu0 0.0
    %3591 = vmatpush1.msra.mxu0 0.0
    %3592 = vmatprep.subr.mxu0 0.0
    %3593 = vmatpush1.msra.mxu0 0.0
    %3594 = vmatprep.subr.mxu0 0.0
    %3595 = vmatpush1.msra.mxu0 0.0
    %3596 = vmatprep.subr.mxu0 0.0
    %3597 = vmatpush1.msra.mxu0 0.0
    %3598 = vmatprep.subr.mxu0 0.0
    %3599 = vmatpush1.msra.mxu0 0.0
    %3600 = vmatprep.mubr.f32.mxu0 0.0
    %3601 = vmatmul.mubr.f32.gmra.mrb[0].mxu0 %v3382
    %v3602 = vpop.f32.mrb[0].mxu0
    %v3603 = vadd.f32 %v238, %v3602
    %v3604 = vpop.f32.mrb[0].mxu0
    %3605 = vdwg.mxu0
    %3606 = vmatprep.subr.mxu0 0.0
    %3607 = vmatpush1.msra.mxu0 %v208
    %3608 = vmatprep.subr.mxu0 0.0
    %3609 = vmatpush1.msra.mxu0 %v209
    %3610 = vmatprep.subr.mxu0 0.0
    %3611 = vmatpush1.msra.mxu0 %v210
    %3612 = vmatprep.subr.mxu0 0.0
    %3613 = vmatpush1.msra.mxu0 %v211
    %3614 = vmatprep.subr.mxu0 0.0
    %3615 = vmatpush1.msra.mxu0 0.0
    %3616 = vmatprep.subr.mxu0 0.0
    %3617 = vmatpush1.msra.mxu0 0.0
    %3618 = vmatprep.subr.mxu0 0.0
    %3619 = vmatpush1.msra.mxu0 0.0
    %3620 = vmatprep.subr.mxu0 0.0
    %3621 = vmatpush1.msra.mxu0 0.0
    %3622 = vmatprep.subr.mxu0 0.0
    %3623 = vmatpush1.msra.mxu0 0.0
    %3624 = vmatprep.subr.mxu0 0.0
    %3625 = vmatpush1.msra.mxu0 0.0
    %3626 = vmatprep.subr.mxu0 0.0
    %3627 = vmatpush1.msra.mxu0 0.0
    %3628 = vmatprep.subr.mxu0 0.0
    %3629 = vmatpush1.msra.mxu0 0.0
    %3630 = vmatprep.subr.mxu0 0.0
    %3631 = vmatpush1.msra.mxu0 0.0
    %3632 = vmatprep.subr.mxu0 0.0
    %3633 = vmatpush1.msra.mxu0 0.0
    %3634 = vmatprep.subr.mxu0 0.0
    %3635 = vmatpush1.msra.mxu0 0.0
    %3636 = vmatprep.subr.mxu0 0.0
    %3637 = vmatpush1.msra.mxu0 0.0
    %3638 = vmatprep.subr.mxu0 0.0
    %3639 = vmatpush1.msra.mxu0 0.0
    %3640 = vmatprep.subr.mxu0 0.0
    %3641 = vmatpush1.msra.mxu0 0.0
    %3642 = vmatprep.subr.mxu0 0.0
    %3643 = vmatpush1.msra.mxu0 0.0
    %3644 = vmatprep.subr.mxu0 0.0
    %3645 = vmatpush1.msra.mxu0 0.0
    %3646 = vmatprep.subr.mxu0 0.0
    %3647 = vmatpush1.msra.mxu0 0.0
    %3648 = vmatprep.subr.mxu0 0.0
    %3649 = vmatpush1.msra.mxu0 0.0
    %3650 = vmatprep.subr.mxu0 0.0
    %3651 = vmatpush1.msra.mxu0 0.0
    %3652 = vmatprep.subr.mxu0 0.0
    %3653 = vmatpush1.msra.mxu0 0.0
    %3654 = vmatprep.subr.mxu0 0.0
    %3655 = vmatpush1.msra.mxu0 0.0
    %3656 = vmatprep.subr.mxu0 0.0
    %3657 = vmatpush1.msra.mxu0 0.0
    %3658 = vmatprep.subr.mxu0 0.0
    %3659 = vmatpush1.msra.mxu0 0.0
    %3660 = vmatprep.subr.mxu0 0.0
    %3661 = vmatpush1.msra.mxu0 0.0
    %3662 = vmatprep.subr.mxu0 0.0
    %3663 = vmatpush1.msra.mxu0 0.0
    %3664 = vmatprep.subr.mxu0 0.0
    %3665 = vmatpush1.msra.mxu0 0.0
    %3666 = vmatprep.subr.mxu0 0.0
    %3667 = vmatpush1.msra.mxu0 0.0
    %3668 = vmatprep.subr.mxu0 0.0
    %3669 = vmatpush1.msra.mxu0 0.0
    %3670 = vmatprep.mubr.f32.mxu0 0.0
    %3671 = vmatmul.mubr.f32.gmra.mrb[0].mxu0 %v3382
    %v3672 = vpop.f32.mrb[0].mxu0
    %v3673 = vadd.f32 %v245, %v3672
    %v3674 = vpop.f32.mrb[0].mxu0
    %3675 = vdwg.mxu0
    %v3676 = vmul.f32 %v3459, %v3673
    %v3677 = vadd.f32 %v3603, %v3676
    %v3678 = vtanh.pop %v3677
    %v3679 = vsub.f32 1.0, %v3535
    %v3680 = vmul.f32 %v3679, %v3678
    %v3681 = vmul.f32 %v3535, %v3379
    %v3682 = vadd.f32 %v3680, %v3681
    %3683 = vst.msk [vmem:[#allocation2 + $0xc] sm:$0xf] %vm2773, %v3682
    %v3685 = vsel %vm546, %v3682, 0
    %3687 = vmatprep.subr.mxu0 0.0
    %3688 = vmatpush1.msra.mxu0 %v196
    %3689 = vmatprep.subr.mxu0 0.0
    %3690 = vmatpush1.msra.mxu0 %v197
    %3691 = vmatprep.subr.mxu0 0.0
    %3692 = vmatpush1.msra.mxu0 %v198
    %3693 = vmatprep.subr.mxu0 0.0
    %3694 = vmatpush1.msra.mxu0 %v199
    %3695 = vmatprep.subr.mxu0 0.0
    %3696 = vmatpush1.msra.mxu0 0.0
    %3697 = vmatprep.subr.mxu0 0.0
    %3698 = vmatpush1.msra.mxu0 0.0
    %3699 = vmatprep.subr.mxu0 0.0
    %3700 = vmatpush1.msra.mxu0 0.0
    %3701 = vmatprep.subr.mxu0 0.0
    %3702 = vmatpush1.msra.mxu0 0.0
    %3703 = vmatprep.subr.mxu0 0.0
    %3704 = vmatpush1.msra.mxu0 0.0
    %3705 = vmatprep.subr.mxu0 0.0
    %3706 = vmatpush1.msra.mxu0 0.0
    %3707 = vmatprep.subr.mxu0 0.0
    %3708 = vmatpush1.msra.mxu0 0.0
    %3709 = vmatprep.subr.mxu0 0.0
    %3710 = vmatpush1.msra.mxu0 0.0
    %3711 = vmatprep.subr.mxu0 0.0
    %3712 = vmatpush1.msra.mxu0 0.0
    %3713 = vmatprep.subr.mxu0 0.0
    %3714 = vmatpush1.msra.mxu0 0.0
    %3715 = vmatprep.subr.mxu0 0.0
    %3716 = vmatpush1.msra.mxu0 0.0
    %3717 = vmatprep.subr.mxu0 0.0
    %3718 = vmatpush1.msra.mxu0 0.0
    %3719 = vmatprep.subr.mxu0 0.0
    %3720 = vmatpush1.msra.mxu0 0.0
    %3721 = vmatprep.subr.mxu0 0.0
    %3722 = vmatpush1.msra.mxu0 0.0
    %3723 = vmatprep.subr.mxu0 0.0
    %3724 = vmatpush1.msra.mxu0 0.0
    %3725 = vmatprep.subr.mxu0 0.0
    %3726 = vmatpush1.msra.mxu0 0.0
    %3727 = vmatprep.subr.mxu0 0.0
    %3728 = vmatpush1.msra.mxu0 0.0
    %3729 = vmatprep.subr.mxu0 0.0
    %3730 = vmatpush1.msra.mxu0 0.0
    %3731 = vmatprep.subr.mxu0 0.0
    %3732 = vmatpush1.msra.mxu0 0.0
    %3733 = vmatprep.subr.mxu0 0.0
    %3734 = vmatpush1.msra.mxu0 0.0
    %3735 = vmatprep.subr.mxu0 0.0
    %3736 = vmatpush1.msra.mxu0 0.0
    %3737 = vmatprep.subr.mxu0 0.0
    %3738 = vmatpush1.msra.mxu0 0.0
    %3739 = vmatprep.subr.mxu0 0.0
    %3740 = vmatpush1.msra.mxu0 0.0
    %3741 = vmatprep.subr.mxu0 0.0
    %3742 = vmatpush1.msra.mxu0 0.0
    %3743 = vmatprep.subr.mxu0 0.0
    %3744 = vmatpush1.msra.mxu0 0.0
    %3745 = vmatprep.subr.mxu0 0.0
    %3746 = vmatpush1.msra.mxu0 0.0
    %3747 = vmatprep.subr.mxu0 0.0
    %3748 = vmatpush1.msra.mxu0 0.0
    %3749 = vmatprep.subr.mxu0 0.0
    %3750 = vmatpush1.msra.mxu0 0.0
    %3751 = vmatprep.mubr.f32.mxu0 0.0
    %3752 = vmatmul.mubr.f32.gmra.mrb[0].mxu0 %v3685
    %v3753 = vpop.f32.mrb[0].mxu0
    %v3754 = vadd.f32 %v224, %v3753
    %v3755 = vpop.f32.mrb[0].mxu0
    %3756 = vdwg.mxu0
    %v3757 = vxor.u32 %v3754, 2147483648
    %v3758 = vmul.f32 %v3757, 1.442695
    %v3759 = vpow.pop %v3758
    %v3760 = vadd.f32 %v3759, 1.0
    %v3761 = vrcp.pop %v3760
    %v3762 = vmul.f32 1.0, %v3761
    %3763 = vmatprep.subr.mxu0 0.0
    %3764 = vmatpush1.msra.mxu0 %v200
    %3765 = vmatprep.subr.mxu0 0.0
    %3766 = vmatpush1.msra.mxu0 %v201
    %3767 = vmatprep.subr.mxu0 0.0
    %3768 = vmatpush1.msra.mxu0 %v202
    %3769 = vmatprep.subr.mxu0 0.0
    %3770 = vmatpush1.msra.mxu0 %v203
    %3771 = vmatprep.subr.mxu0 0.0
    %3772 = vmatpush1.msra.mxu0 0.0
    %3773 = vmatprep.subr.mxu0 0.0
    %3774 = vmatpush1.msra.mxu0 0.0
    %3775 = vmatprep.subr.mxu0 0.0
    %3776 = vmatpush1.msra.mxu0 0.0
    %3777 = vmatprep.subr.mxu0 0.0
    %3778 = vmatpush1.msra.mxu0 0.0
    %3779 = vmatprep.subr.mxu0 0.0
    %3780 = vmatpush1.msra.mxu0 0.0
    %3781 = vmatprep.subr.mxu0 0.0
    %3782 = vmatpush1.msra.mxu0 0.0
    %3783 = vmatprep.subr.mxu0 0.0
    %3784 = vmatpush1.msra.mxu0 0.0
    %3785 = vmatprep.subr.mxu0 0.0
    %3786 = vmatpush1.msra.mxu0 0.0
    %3787 = vmatprep.subr.mxu0 0.0
    %3788 = vmatpush1.msra.mxu0 0.0
    %3789 = vmatprep.subr.mxu0 0.0
    %3790 = vmatpush1.msra.mxu0 0.0
    %3791 = vmatprep.subr.mxu0 0.0
    %3792 = vmatpush1.msra.mxu0 0.0
    %3793 = vmatprep.subr.mxu0 0.0
    %3794 = vmatpush1.msra.mxu0 0.0
    %3795 = vmatprep.subr.mxu0 0.0
    %3796 = vmatpush1.msra.mxu0 0.0
    %3797 = vmatprep.subr.mxu0 0.0
    %3798 = vmatpush1.msra.mxu0 0.0
    %3799 = vmatprep.subr.mxu0 0.0
    %3800 = vmatpush1.msra.mxu0 0.0
    %3801 = vmatprep.subr.mxu0 0.0
    %3802 = vmatpush1.msra.mxu0 0.0
    %3803 = vmatprep.subr.mxu0 0.0
    %3804 = vmatpush1.msra.mxu0 0.0
    %3805 = vmatprep.subr.mxu0 0.0
    %3806 = vmatpush1.msra.mxu0 0.0
    %3807 = vmatprep.subr.mxu0 0.0
    %3808 = vmatpush1.msra.mxu0 0.0
    %3809 = vmatprep.subr.mxu0 0.0
    %3810 = vmatpush1.msra.mxu0 0.0
    %3811 = vmatprep.subr.mxu0 0.0
    %3812 = vmatpush1.msra.mxu0 0.0
    %3813 = vmatprep.subr.mxu0 0.0
    %3814 = vmatpush1.msra.mxu0 0.0
    %3815 = vmatprep.subr.mxu0 0.0
    %3816 = vmatpush1.msra.mxu0 0.0
    %3817 = vmatprep.subr.mxu0 0.0
    %3818 = vmatpush1.msra.mxu0 0.0
    %3819 = vmatprep.subr.mxu0 0.0
    %3820 = vmatpush1.msra.mxu0 0.0
    %3821 = vmatprep.subr.mxu0 0.0
    %3822 = vmatpush1.msra.mxu0 0.0
    %3823 = vmatprep.subr.mxu0 0.0
    %3824 = vmatpush1.msra.mxu0 0.0
    %3825 = vmatprep.subr.mxu0 0.0
    %3826 = vmatpush1.msra.mxu0 0.0
    %3827 = vmatprep.mubr.f32.mxu0 0.0
    %3828 = vmatmul.mubr.f32.gmra.mrb[0].mxu0 %v3685
    %v3829 = vpop.f32.mrb[0].mxu0
    %v3830 = vadd.f32 %v231, %v3829
    %v3831 = vpop.f32.mrb[0].mxu0
    %3832 = vdwg.mxu0
    %v3833 = vxor.u32 %v3830, 2147483648
    %v3834 = vmul.f32 %v3833, 1.442695
    %v3835 = vpow.pop %v3834
    %v3836 = vadd.f32 %v3835, 1.0
    %v3837 = vrcp.pop %v3836
    %v3838 = vmul.f32 1.0, %v3837
    %3839 = vmatprep.subr.mxu0 0.0
    %3840 = vmatpush1.msra.mxu0 %v204
    %3841 = vmatprep.subr.mxu0 0.0
    %3842 = vmatpush1.msra.mxu0 %v205
    %3843 = vmatprep.subr.mxu0 0.0
    %3844 = vmatpush1.msra.mxu0 %v206
    %3845 = vmatprep.subr.mxu0 0.0
    %3846 = vmatpush1.msra.mxu0 %v207
    %3847 = vmatprep.subr.mxu0 0.0
    %3848 = vmatpush1.msra.mxu0 0.0
    %3849 = vmatprep.subr.mxu0 0.0
    %3850 = vmatpush1.msra.mxu0 0.0
    %3851 = vmatprep.subr.mxu0 0.0
    %3852 = vmatpush1.msra.mxu0 0.0
    %3853 = vmatprep.subr.mxu0 0.0
    %3854 = vmatpush1.msra.mxu0 0.0
    %3855 = vmatprep.subr.mxu0 0.0
    %3856 = vmatpush1.msra.mxu0 0.0
    %3857 = vmatprep.subr.mxu0 0.0
    %3858 = vmatpush1.msra.mxu0 0.0
    %3859 = vmatprep.subr.mxu0 0.0
    %3860 = vmatpush1.msra.mxu0 0.0
    %3861 = vmatprep.subr.mxu0 0.0
    %3862 = vmatpush1.msra.mxu0 0.0
    %3863 = vmatprep.subr.mxu0 0.0
    %3864 = vmatpush1.msra.mxu0 0.0
    %3865 = vmatprep.subr.mxu0 0.0
    %3866 = vmatpush1.msra.mxu0 0.0
    %3867 = vmatprep.subr.mxu0 0.0
    %3868 = vmatpush1.msra.mxu0 0.0
    %3869 = vmatprep.subr.mxu0 0.0
    %3870 = vmatpush1.msra.mxu0 0.0
    %3871 = vmatprep.subr.mxu0 0.0
    %3872 = vmatpush1.msra.mxu0 0.0
    %3873 = vmatprep.subr.mxu0 0.0
    %3874 = vmatpush1.msra.mxu0 0.0
    %3875 = vmatprep.subr.mxu0 0.0
    %3876 = vmatpush1.msra.mxu0 0.0
    %3877 = vmatprep.subr.mxu0 0.0
    %3878 = vmatpush1.msra.mxu0 0.0
    %3879 = vmatprep.subr.mxu0 0.0
    %3880 = vmatpush1.msra.mxu0 0.0
    %3881 = vmatprep.subr.mxu0 0.0
    %3882 = vmatpush1.msra.mxu0 0.0
    %3883 = vmatprep.subr.mxu0 0.0
    %3884 = vmatpush1.msra.mxu0 0.0
    %3885 = vmatprep.subr.mxu0 0.0
    %3886 = vmatpush1.msra.mxu0 0.0
    %3887 = vmatprep.subr.mxu0 0.0
    %3888 = vmatpush1.msra.mxu0 0.0
    %3889 = vmatprep.subr.mxu0 0.0
    %3890 = vmatpush1.msra.mxu0 0.0
    %3891 = vmatprep.subr.mxu0 0.0
    %3892 = vmatpush1.msra.mxu0 0.0
    %3893 = vmatprep.subr.mxu0 0.0
    %3894 = vmatpush1.msra.mxu0 0.0
    %3895 = vmatprep.subr.mxu0 0.0
    %3896 = vmatpush1.msra.mxu0 0.0
    %3897 = vmatprep.subr.mxu0 0.0
    %3898 = vmatpush1.msra.mxu0 0.0
    %3899 = vmatprep.subr.mxu0 0.0
    %3900 = vmatpush1.msra.mxu0 0.0
    %3901 = vmatprep.subr.mxu0 0.0
    %3902 = vmatpush1.msra.mxu0 0.0
    %3903 = vmatprep.mubr.f32.mxu0 0.0
    %3904 = vmatmul.mubr.f32.gmra.mrb[0].mxu0 %v3685
    %v3905 = vpop.f32.mrb[0].mxu0
    %v3906 = vadd.f32 %v238, %v3905
    %v3907 = vpop.f32.mrb[0].mxu0
    %3908 = vdwg.mxu0
    %3909 = vmatprep.subr.mxu0 0.0
    %3910 = vmatpush1.msra.mxu0 %v208
    %3911 = vmatprep.subr.mxu0 0.0
    %3912 = vmatpush1.msra.mxu0 %v209
    %3913 = vmatprep.subr.mxu0 0.0
    %3914 = vmatpush1.msra.mxu0 %v210
    %3915 = vmatprep.subr.mxu0 0.0
    %3916 = vmatpush1.msra.mxu0 %v211
    %3917 = vmatprep.subr.mxu0 0.0
    %3918 = vmatpush1.msra.mxu0 0.0
    %3919 = vmatprep.subr.mxu0 0.0
    %3920 = vmatpush1.msra.mxu0 0.0
    %3921 = vmatprep.subr.mxu0 0.0
    %3922 = vmatpush1.msra.mxu0 0.0
    %3923 = vmatprep.subr.mxu0 0.0
    %3924 = vmatpush1.msra.mxu0 0.0
    %3925 = vmatprep.subr.mxu0 0.0
    %3926 = vmatpush1.msra.mxu0 0.0
    %3927 = vmatprep.subr.mxu0 0.0
    %3928 = vmatpush1.msra.mxu0 0.0
    %3929 = vmatprep.subr.mxu0 0.0
    %3930 = vmatpush1.msra.mxu0 0.0
    %3931 = vmatprep.subr.mxu0 0.0
    %3932 = vmatpush1.msra.mxu0 0.0
    %3933 = vmatprep.subr.mxu0 0.0
    %3934 = vmatpush1.msra.mxu0 0.0
    %3935 = vmatprep.subr.mxu0 0.0
    %3936 = vmatpush1.msra.mxu0 0.0
    %3937 = vmatprep.subr.mxu0 0.0
    %3938 = vmatpush1.msra.mxu0 0.0
    %3939 = vmatprep.subr.mxu0 0.0
    %3940 = vmatpush1.msra.mxu0 0.0
    %3941 = vmatprep.subr.mxu0 0.0
    %3942 = vmatpush1.msra.mxu0 0.0
    %3943 = vmatprep.subr.mxu0 0.0
    %3944 = vmatpush1.msra.mxu0 0.0
    %3945 = vmatprep.subr.mxu0 0.0
    %3946 = vmatpush1.msra.mxu0 0.0
    %3947 = vmatprep.subr.mxu0 0.0
    %3948 = vmatpush1.msra.mxu0 0.0
    %3949 = vmatprep.subr.mxu0 0.0
    %3950 = vmatpush1.msra.mxu0 0.0
    %3951 = vmatprep.subr.mxu0 0.0
    %3952 = vmatpush1.msra.mxu0 0.0
    %3953 = vmatprep.subr.mxu0 0.0
    %3954 = vmatpush1.msra.mxu0 0.0
    %3955 = vmatprep.subr.mxu0 0.0
    %3956 = vmatpush1.msra.mxu0 0.0
    %3957 = vmatprep.subr.mxu0 0.0
    %3958 = vmatpush1.msra.mxu0 0.0
    %3959 = vmatprep.subr.mxu0 0.0
    %3960 = vmatpush1.msra.mxu0 0.0
    %3961 = vmatprep.subr.mxu0 0.0
    %3962 = vmatpush1.msra.mxu0 0.0
    %3963 = vmatprep.subr.mxu0 0.0
    %3964 = vmatpush1.msra.mxu0 0.0
    %3965 = vmatprep.subr.mxu0 0.0
    %3966 = vmatpush1.msra.mxu0 0.0
    %3967 = vmatprep.subr.mxu0 0.0
    %3968 = vmatpush1.msra.mxu0 0.0
    %3969 = vmatprep.subr.mxu0 0.0
    %3970 = vmatpush1.msra.mxu0 0.0
    %3971 = vmatprep.subr.mxu0 0.0
    %3972 = vmatpush1.msra.mxu0 0.0
    %3973 = vmatprep.mubr.f32.mxu0 0.0
    %3974 = vmatmul.mubr.f32.gmra.mrb[0].mxu0 %v3685
    %v3975 = vpop.f32.mrb[0].mxu0
    %v3976 = vadd.f32 %v245, %v3975
    %v3977 = vpop.f32.mrb[0].mxu0
    %3978 = vdwg.mxu0
    %v3979 = vmul.f32 %v3762, %v3976
    %v3980 = vadd.f32 %v3906, %v3979
    %v3981 = vtanh.pop %v3980
    %v3982 = vsub.f32 1.0, %v3838
    %v3983 = vmul.f32 %v3982, %v3981
    %v3984 = vmul.f32 %v3838, %v3682
    %v3985 = vadd.f32 %v3983, %v3984
    %3986 = vst.msk [vmem:[#allocation2 + $0x10] sm:$0xf] %vm2773, %v3985
    %v3988 = vsel %vm546, %v3985, 0
    %3990 = vmatprep.subr.mxu0 0.0
    %3991 = vmatpush1.msra.mxu0 %v196
    %3992 = vmatprep.subr.mxu0 0.0
    %3993 = vmatpush1.msra.mxu0 %v197
    %3994 = vmatprep.subr.mxu0 0.0
    %3995 = vmatpush1.msra.mxu0 %v198
    %3996 = vmatprep.subr.mxu0 0.0
    %3997 = vmatpush1.msra.mxu0 %v199
    %3998 = vmatprep.subr.mxu0 0.0
    %3999 = vmatpush1.msra.mxu0 0.0
    %4000 = vmatprep.subr.mxu0 0.0
    %4001 = vmatpush1.msra.mxu0 0.0
    %4002 = vmatprep.subr.mxu0 0.0
    %4003 = vmatpush1.msra.mxu0 0.0
    %4004 = vmatprep.subr.mxu0 0.0
    %4005 = vmatpush1.msra.mxu0 0.0
    %4006 = vmatprep.subr.mxu0 0.0
    %4007 = vmatpush1.msra.mxu0 0.0
    %4008 = vmatprep.subr.mxu0 0.0
    %4009 = vmatpush1.msra.mxu0 0.0
    %4010 = vmatprep.subr.mxu0 0.0
    %4011 = vmatpush1.msra.mxu0 0.0
    %4012 = vmatprep.subr.mxu0 0.0
    %4013 = vmatpush1.msra.mxu0 0.0
    %4014 = vmatprep.subr.mxu0 0.0
    %4015 = vmatpush1.msra.mxu0 0.0
    %4016 = vmatprep.subr.mxu0 0.0
    %4017 = vmatpush1.msra.mxu0 0.0
    %4018 = vmatprep.subr.mxu0 0.0
    %4019 = vmatpush1.msra.mxu0 0.0
    %4020 = vmatprep.subr.mxu0 0.0
    %4021 = vmatpush1.msra.mxu0 0.0
    %4022 = vmatprep.subr.mxu0 0.0
    %4023 = vmatpush1.msra.mxu0 0.0
    %4024 = vmatprep.subr.mxu0 0.0
    %4025 = vmatpush1.msra.mxu0 0.0
    %4026 = vmatprep.subr.mxu0 0.0
    %4027 = vmatpush1.msra.mxu0 0.0
    %4028 = vmatprep.subr.mxu0 0.0
    %4029 = vmatpush1.msra.mxu0 0.0
    %4030 = vmatprep.subr.mxu0 0.0
    %4031 = vmatpush1.msra.mxu0 0.0
    %4032 = vmatprep.subr.mxu0 0.0
    %4033 = vmatpush1.msra.mxu0 0.0
    %4034 = vmatprep.subr.mxu0 0.0
    %4035 = vmatpush1.msra.mxu0 0.0
    %4036 = vmatprep.subr.mxu0 0.0
    %4037 = vmatpush1.msra.mxu0 0.0
    %4038 = vmatprep.subr.mxu0 0.0
    %4039 = vmatpush1.msra.mxu0 0.0
    %4040 = vmatprep.subr.mxu0 0.0
    %4041 = vmatpush1.msra.mxu0 0.0
    %4042 = vmatprep.subr.mxu0 0.0
    %4043 = vmatpush1.msra.mxu0 0.0
    %4044 = vmatprep.subr.mxu0 0.0
    %4045 = vmatpush1.msra.mxu0 0.0
    %4046 = vmatprep.subr.mxu0 0.0
    %4047 = vmatpush1.msra.mxu0 0.0
    %4048 = vmatprep.subr.mxu0 0.0
    %4049 = vmatpush1.msra.mxu0 0.0
    %4050 = vmatprep.subr.mxu0 0.0
    %4051 = vmatpush1.msra.mxu0 0.0
    %4052 = vmatprep.subr.mxu0 0.0
    %4053 = vmatpush1.msra.mxu0 0.0
    %4054 = vmatprep.mubr.f32.mxu0 0.0
    %4055 = vmatmul.mubr.f32.gmra.mrb[0].mxu0 %v3988
    %v4056 = vpop.f32.mrb[0].mxu0
    %v4057 = vadd.f32 %v224, %v4056
    %v4058 = vpop.f32.mrb[0].mxu0
    %4059 = vdwg.mxu0
    %v4060 = vxor.u32 %v4057, 2147483648
    %v4061 = vmul.f32 %v4060, 1.442695
    %v4062 = vpow.pop %v4061
    %v4063 = vadd.f32 %v4062, 1.0
    %v4064 = vrcp.pop %v4063
    %v4065 = vmul.f32 1.0, %v4064
    %4066 = vmatprep.subr.mxu0 0.0
    %4067 = vmatpush1.msra.mxu0 %v200
    %4068 = vmatprep.subr.mxu0 0.0
    %4069 = vmatpush1.msra.mxu0 %v201
    %4070 = vmatprep.subr.mxu0 0.0
    %4071 = vmatpush1.msra.mxu0 %v202
    %4072 = vmatprep.subr.mxu0 0.0
    %4073 = vmatpush1.msra.mxu0 %v203
    %4074 = vmatprep.subr.mxu0 0.0
    %4075 = vmatpush1.msra.mxu0 0.0
    %4076 = vmatprep.subr.mxu0 0.0
    %4077 = vmatpush1.msra.mxu0 0.0
    %4078 = vmatprep.subr.mxu0 0.0
    %4079 = vmatpush1.msra.mxu0 0.0
    %4080 = vmatprep.subr.mxu0 0.0
    %4081 = vmatpush1.msra.mxu0 0.0
    %4082 = vmatprep.subr.mxu0 0.0
    %4083 = vmatpush1.msra.mxu0 0.0
    %4084 = vmatprep.subr.mxu0 0.0
    %4085 = vmatpush1.msra.mxu0 0.0
    %4086 = vmatprep.subr.mxu0 0.0
    %4087 = vmatpush1.msra.mxu0 0.0
    %4088 = vmatprep.subr.mxu0 0.0
    %4089 = vmatpush1.msra.mxu0 0.0
    %4090 = vmatprep.subr.mxu0 0.0
    %4091 = vmatpush1.msra.mxu0 0.0
    %4092 = vmatprep.subr.mxu0 0.0
    %4093 = vmatpush1.msra.mxu0 0.0
    %4094 = vmatprep.subr.mxu0 0.0
    %4095 = vmatpush1.msra.mxu0 0.0
    %4096 = vmatprep.subr.mxu0 0.0
    %4097 = vmatpush1.msra.mxu0 0.0
    %4098 = vmatprep.subr.mxu0 0.0
    %4099 = vmatpush1.msra.mxu0 0.0
    %4100 = vmatprep.subr.mxu0 0.0
    %4101 = vmatpush1.msra.mxu0 0.0
    %4102 = vmatprep.subr.mxu0 0.0
    %4103 = vmatpush1.msra.mxu0 0.0
    %4104 = vmatprep.subr.mxu0 0.0
    %4105 = vmatpush1.msra.mxu0 0.0
    %4106 = vmatprep.subr.mxu0 0.0
    %4107 = vmatpush1.msra.mxu0 0.0
    %4108 = vmatprep.subr.mxu0 0.0
    %4109 = vmatpush1.msra.mxu0 0.0
    %4110 = vmatprep.subr.mxu0 0.0
    %4111 = vmatpush1.msra.mxu0 0.0
    %4112 = vmatprep.subr.mxu0 0.0
    %4113 = vmatpush1.msra.mxu0 0.0
    %4114 = vmatprep.subr.mxu0 0.0
    %4115 = vmatpush1.msra.mxu0 0.0
    %4116 = vmatprep.subr.mxu0 0.0
    %4117 = vmatpush1.msra.mxu0 0.0
    %4118 = vmatprep.subr.mxu0 0.0
    %4119 = vmatpush1.msra.mxu0 0.0
    %4120 = vmatprep.subr.mxu0 0.0
    %4121 = vmatpush1.msra.mxu0 0.0
    %4122 = vmatprep.subr.mxu0 0.0
    %4123 = vmatpush1.msra.mxu0 0.0
    %4124 = vmatprep.subr.mxu0 0.0
    %4125 = vmatpush1.msra.mxu0 0.0
    %4126 = vmatprep.subr.mxu0 0.0
    %4127 = vmatpush1.msra.mxu0 0.0
    %4128 = vmatprep.subr.mxu0 0.0
    %4129 = vmatpush1.msra.mxu0 0.0
    %4130 = vmatprep.mubr.f32.mxu0 0.0
    %4131 = vmatmul.mubr.f32.gmra.mrb[0].mxu0 %v3988
    %v4132 = vpop.f32.mrb[0].mxu0
    %v4133 = vadd.f32 %v231, %v4132
    %v4134 = vpop.f32.mrb[0].mxu0
    %4135 = vdwg.mxu0
    %v4136 = vxor.u32 %v4133, 2147483648
    %v4137 = vmul.f32 %v4136, 1.442695
    %v4138 = vpow.pop %v4137
    %v4139 = vadd.f32 %v4138, 1.0
    %v4140 = vrcp.pop %v4139
    %v4141 = vmul.f32 1.0, %v4140
    %4142 = vmatprep.subr.mxu0 0.0
    %4143 = vmatpush1.msra.mxu0 %v204
    %4144 = vmatprep.subr.mxu0 0.0
    %4145 = vmatpush1.msra.mxu0 %v205
    %4146 = vmatprep.subr.mxu0 0.0
    %4147 = vmatpush1.msra.mxu0 %v206
    %4148 = vmatprep.subr.mxu0 0.0
    %4149 = vmatpush1.msra.mxu0 %v207
    %4150 = vmatprep.subr.mxu0 0.0
    %4151 = vmatpush1.msra.mxu0 0.0
    %4152 = vmatprep.subr.mxu0 0.0
    %4153 = vmatpush1.msra.mxu0 0.0
    %4154 = vmatprep.subr.mxu0 0.0
    %4155 = vmatpush1.msra.mxu0 0.0
    %4156 = vmatprep.subr.mxu0 0.0
    %4157 = vmatpush1.msra.mxu0 0.0
    %4158 = vmatprep.subr.mxu0 0.0
    %4159 = vmatpush1.msra.mxu0 0.0
    %4160 = vmatprep.subr.mxu0 0.0
    %4161 = vmatpush1.msra.mxu0 0.0
    %4162 = vmatprep.subr.mxu0 0.0
    %4163 = vmatpush1.msra.mxu0 0.0
    %4164 = vmatprep.subr.mxu0 0.0
    %4165 = vmatpush1.msra.mxu0 0.0
    %4166 = vmatprep.subr.mxu0 0.0
    %4167 = vmatpush1.msra.mxu0 0.0
    %4168 = vmatprep.subr.mxu0 0.0
    %4169 = vmatpush1.msra.mxu0 0.0
    %4170 = vmatprep.subr.mxu0 0.0
    %4171 = vmatpush1.msra.mxu0 0.0
    %4172 = vmatprep.subr.mxu0 0.0
    %4173 = vmatpush1.msra.mxu0 0.0
    %4174 = vmatprep.subr.mxu0 0.0
    %4175 = vmatpush1.msra.mxu0 0.0
    %4176 = vmatprep.subr.mxu0 0.0
    %4177 = vmatpush1.msra.mxu0 0.0
    %4178 = vmatprep.subr.mxu0 0.0
    %4179 = vmatpush1.msra.mxu0 0.0
    %4180 = vmatprep.subr.mxu0 0.0
    %4181 = vmatpush1.msra.mxu0 0.0
    %4182 = vmatprep.subr.mxu0 0.0
    %4183 = vmatpush1.msra.mxu0 0.0
    %4184 = vmatprep.subr.mxu0 0.0
    %4185 = vmatpush1.msra.mxu0 0.0
    %4186 = vmatprep.subr.mxu0 0.0
    %4187 = vmatpush1.msra.mxu0 0.0
    %4188 = vmatprep.subr.mxu0 0.0
    %4189 = vmatpush1.msra.mxu0 0.0
    %4190 = vmatprep.subr.mxu0 0.0
    %4191 = vmatpush1.msra.mxu0 0.0
    %4192 = vmatprep.subr.mxu0 0.0
    %4193 = vmatpush1.msra.mxu0 0.0
    %4194 = vmatprep.subr.mxu0 0.0
    %4195 = vmatpush1.msra.mxu0 0.0
    %4196 = vmatprep.subr.mxu0 0.0
    %4197 = vmatpush1.msra.mxu0 0.0
    %4198 = vmatprep.subr.mxu0 0.0
    %4199 = vmatpush1.msra.mxu0 0.0
    %4200 = vmatprep.subr.mxu0 0.0
    %4201 = vmatpush1.msra.mxu0 0.0
    %4202 = vmatprep.subr.mxu0 0.0
    %4203 = vmatpush1.msra.mxu0 0.0
    %4204 = vmatprep.subr.mxu0 0.0
    %4205 = vmatpush1.msra.mxu0 0.0
    %4206 = vmatprep.mubr.f32.mxu0 0.0
    %4207 = vmatmul.mubr.f32.gmra.mrb[0].mxu0 %v3988
    %v4208 = vpop.f32.mrb[0].mxu0
    %v4209 = vadd.f32 %v238, %v4208
    %v4210 = vpop.f32.mrb[0].mxu0
    %4211 = vdwg.mxu0
    %4212 = vmatprep.subr.mxu0 0.0
    %4213 = vmatpush1.msra.mxu0 %v208
    %4214 = vmatprep.subr.mxu0 0.0
    %4215 = vmatpush1.msra.mxu0 %v209
    %4216 = vmatprep.subr.mxu0 0.0
    %4217 = vmatpush1.msra.mxu0 %v210
    %4218 = vmatprep.subr.mxu0 0.0
    %4219 = vmatpush1.msra.mxu0 %v211
    %4220 = vmatprep.subr.mxu0 0.0
    %4221 = vmatpush1.msra.mxu0 0.0
    %4222 = vmatprep.subr.mxu0 0.0
    %4223 = vmatpush1.msra.mxu0 0.0
    %4224 = vmatprep.subr.mxu0 0.0
    %4225 = vmatpush1.msra.mxu0 0.0
    %4226 = vmatprep.subr.mxu0 0.0
    %4227 = vmatpush1.msra.mxu0 0.0
    %4228 = vmatprep.subr.mxu0 0.0
    %4229 = vmatpush1.msra.mxu0 0.0
    %4230 = vmatprep.subr.mxu0 0.0
    %4231 = vmatpush1.msra.mxu0 0.0
    %4232 = vmatprep.subr.mxu0 0.0
    %4233 = vmatpush1.msra.mxu0 0.0
    %4234 = vmatprep.subr.mxu0 0.0
    %4235 = vmatpush1.msra.mxu0 0.0
    %4236 = vmatprep.subr.mxu0 0.0
    %4237 = vmatpush1.msra.mxu0 0.0
    %4238 = vmatprep.subr.mxu0 0.0
    %4239 = vmatpush1.msra.mxu0 0.0
    %4240 = vmatprep.subr.mxu0 0.0
    %4241 = vmatpush1.msra.mxu0 0.0
    %4242 = vmatprep.subr.mxu0 0.0
    %4243 = vmatpush1.msra.mxu0 0.0
    %4244 = vmatprep.subr.mxu0 0.0
    %4245 = vmatpush1.msra.mxu0 0.0
    %4246 = vmatprep.subr.mxu0 0.0
    %4247 = vmatpush1.msra.mxu0 0.0
    %4248 = vmatprep.subr.mxu0 0.0
    %4249 = vmatpush1.msra.mxu0 0.0
    %4250 = vmatprep.subr.mxu0 0.0
    %4251 = vmatpush1.msra.mxu0 0.0
    %4252 = vmatprep.subr.mxu0 0.0
    %4253 = vmatpush1.msra.mxu0 0.0
    %4254 = vmatprep.subr.mxu0 0.0
    %4255 = vmatpush1.msra.mxu0 0.0
    %4256 = vmatprep.subr.mxu0 0.0
    %4257 = vmatpush1.msra.mxu0 0.0
    %4258 = vmatprep.subr.mxu0 0.0
    %4259 = vmatpush1.msra.mxu0 0.0
    %4260 = vmatprep.subr.mxu0 0.0
    %4261 = vmatpush1.msra.mxu0 0.0
    %4262 = vmatprep.subr.mxu0 0.0
    %4263 = vmatpush1.msra.mxu0 0.0
    %4264 = vmatprep.subr.mxu0 0.0
    %4265 = vmatpush1.msra.mxu0 0.0
    %4266 = vmatprep.subr.mxu0 0.0
    %4267 = vmatpush1.msra.mxu0 0.0
    %4268 = vmatprep.subr.mxu0 0.0
    %4269 = vmatpush1.msra.mxu0 0.0
    %4270 = vmatprep.subr.mxu0 0.0
    %4271 = vmatpush1.msra.mxu0 0.0
    %4272 = vmatprep.subr.mxu0 0.0
    %4273 = vmatpush1.msra.mxu0 0.0
    %4274 = vmatprep.subr.mxu0 0.0
    %4275 = vmatpush1.msra.mxu0 0.0
    %4276 = vmatprep.mubr.f32.mxu0 0.0
    %4277 = vmatmul.mubr.f32.gmra.mrb[0].mxu0 %v3988
    %v4278 = vpop.f32.mrb[0].mxu0
    %v4279 = vadd.f32 %v245, %v4278
    %v4280 = vpop.f32.mrb[0].mxu0
    %4281 = vdwg.mxu0
    %v4282 = vmul.f32 %v4065, %v4279
    %v4283 = vadd.f32 %v4209, %v4282
    %v4284 = vtanh.pop %v4283
    %v4285 = vsub.f32 1.0, %v4141
    %v4286 = vmul.f32 %v4285, %v4284
    %v4287 = vmul.f32 %v4141, %v3985
    %v4288 = vadd.f32 %v4286, %v4287
    %4289 = vst.msk [vmem:[#allocation2 + $0x14] sm:$0xf] %vm2773, %v4288
    %v4291 = vsel %vm546, %v4288, 0
    %4293 = vmatprep.subr.mxu0 0.0
    %4294 = vmatpush1.msra.mxu0 %v196
    %4295 = vmatprep.subr.mxu0 0.0
    %4296 = vmatpush1.msra.mxu0 %v197
    %4297 = vmatprep.subr.mxu0 0.0
    %4298 = vmatpush1.msra.mxu0 %v198
    %4299 = vmatprep.subr.mxu0 0.0
    %4300 = vmatpush1.msra.mxu0 %v199
    %4301 = vmatprep.subr.mxu0 0.0
    %4302 = vmatpush1.msra.mxu0 0.0
    %4303 = vmatprep.subr.mxu0 0.0
    %4304 = vmatpush1.msra.mxu0 0.0
    %4305 = vmatprep.subr.mxu0 0.0
    %4306 = vmatpush1.msra.mxu0 0.0
    %4307 = vmatprep.subr.mxu0 0.0
    %4308 = vmatpush1.msra.mxu0 0.0
    %4309 = vmatprep.subr.mxu0 0.0
    %4310 = vmatpush1.msra.mxu0 0.0
    %4311 = vmatprep.subr.mxu0 0.0
    %4312 = vmatpush1.msra.mxu0 0.0
    %4313 = vmatprep.subr.mxu0 0.0
    %4314 = vmatpush1.msra.mxu0 0.0
    %4315 = vmatprep.subr.mxu0 0.0
    %4316 = vmatpush1.msra.mxu0 0.0
    %4317 = vmatprep.subr.mxu0 0.0
    %4318 = vmatpush1.msra.mxu0 0.0
    %4319 = vmatprep.subr.mxu0 0.0
    %4320 = vmatpush1.msra.mxu0 0.0
    %4321 = vmatprep.subr.mxu0 0.0
    %4322 = vmatpush1.msra.mxu0 0.0
    %4323 = vmatprep.subr.mxu0 0.0
    %4324 = vmatpush1.msra.mxu0 0.0
    %4325 = vmatprep.subr.mxu0 0.0
    %4326 = vmatpush1.msra.mxu0 0.0
    %4327 = vmatprep.subr.mxu0 0.0
    %4328 = vmatpush1.msra.mxu0 0.0
    %4329 = vmatprep.subr.mxu0 0.0
    %4330 = vmatpush1.msra.mxu0 0.0
    %4331 = vmatprep.subr.mxu0 0.0
    %4332 = vmatpush1.msra.mxu0 0.0
    %4333 = vmatprep.subr.mxu0 0.0
    %4334 = vmatpush1.msra.mxu0 0.0
    %4335 = vmatprep.subr.mxu0 0.0
    %4336 = vmatpush1.msra.mxu0 0.0
    %4337 = vmatprep.subr.mxu0 0.0
    %4338 = vmatpush1.msra.mxu0 0.0
    %4339 = vmatprep.subr.mxu0 0.0
    %4340 = vmatpush1.msra.mxu0 0.0
    %4341 = vmatprep.subr.mxu0 0.0
    %4342 = vmatpush1.msra.mxu0 0.0
    %4343 = vmatprep.subr.mxu0 0.0
    %4344 = vmatpush1.msra.mxu0 0.0
    %4345 = vmatprep.subr.mxu0 0.0
    %4346 = vmatpush1.msra.mxu0 0.0
    %4347 = vmatprep.subr.mxu0 0.0
    %4348 = vmatpush1.msra.mxu0 0.0
    %4349 = vmatprep.subr.mxu0 0.0
    %4350 = vmatpush1.msra.mxu0 0.0
    %4351 = vmatprep.subr.mxu0 0.0
    %4352 = vmatpush1.msra.mxu0 0.0
    %4353 = vmatprep.subr.mxu0 0.0
    %4354 = vmatpush1.msra.mxu0 0.0
    %4355 = vmatprep.subr.mxu0 0.0
    %4356 = vmatpush1.msra.mxu0 0.0
    %4357 = vmatprep.mubr.f32.mxu0 0.0
    %4358 = vmatmul.mubr.f32.gmra.mrb[0].mxu0 %v4291
    %v4359 = vpop.f32.mrb[0].mxu0
    %v4360 = vadd.f32 %v224, %v4359
    %v4361 = vpop.f32.mrb[0].mxu0
    %4362 = vdwg.mxu0
    %v4363 = vxor.u32 %v4360, 2147483648
    %v4364 = vmul.f32 %v4363, 1.442695
    %v4365 = vpow.pop %v4364
    %v4366 = vadd.f32 %v4365, 1.0
    %v4367 = vrcp.pop %v4366
    %v4368 = vmul.f32 1.0, %v4367
    %4369 = vmatprep.subr.mxu0 0.0
    %4370 = vmatpush1.msra.mxu0 %v200
    %4371 = vmatprep.subr.mxu0 0.0
    %4372 = vmatpush1.msra.mxu0 %v201
    %4373 = vmatprep.subr.mxu0 0.0
    %4374 = vmatpush1.msra.mxu0 %v202
    %4375 = vmatprep.subr.mxu0 0.0
    %4376 = vmatpush1.msra.mxu0 %v203
    %4377 = vmatprep.subr.mxu0 0.0
    %4378 = vmatpush1.msra.mxu0 0.0
    %4379 = vmatprep.subr.mxu0 0.0
    %4380 = vmatpush1.msra.mxu0 0.0
    %4381 = vmatprep.subr.mxu0 0.0
    %4382 = vmatpush1.msra.mxu0 0.0
    %4383 = vmatprep.subr.mxu0 0.0
    %4384 = vmatpush1.msra.mxu0 0.0
    %4385 = vmatprep.subr.mxu0 0.0
    %4386 = vmatpush1.msra.mxu0 0.0
    %4387 = vmatprep.subr.mxu0 0.0
    %4388 = vmatpush1.msra.mxu0 0.0
    %4389 = vmatprep.subr.mxu0 0.0
    %4390 = vmatpush1.msra.mxu0 0.0
    %4391 = vmatprep.subr.mxu0 0.0
    %4392 = vmatpush1.msra.mxu0 0.0
    %4393 = vmatprep.subr.mxu0 0.0
    %4394 = vmatpush1.msra.mxu0 0.0
    %4395 = vmatprep.subr.mxu0 0.0
    %4396 = vmatpush1.msra.mxu0 0.0
    %4397 = vmatprep.subr.mxu0 0.0
    %4398 = vmatpush1.msra.mxu0 0.0
    %4399 = vmatprep.subr.mxu0 0.0
    %4400 = vmatpush1.msra.mxu0 0.0
    %4401 = vmatprep.subr.mxu0 0.0
    %4402 = vmatpush1.msra.mxu0 0.0
    %4403 = vmatprep.subr.mxu0 0.0
    %4404 = vmatpush1.msra.mxu0 0.0
    %4405 = vmatprep.subr.mxu0 0.0
    %4406 = vmatpush1.msra.mxu0 0.0
    %4407 = vmatprep.subr.mxu0 0.0
    %4408 = vmatpush1.msra.mxu0 0.0
    %4409 = vmatprep.subr.mxu0 0.0
    %4410 = vmatpush1.msra.mxu0 0.0
    %4411 = vmatprep.subr.mxu0 0.0
    %4412 = vmatpush1.msra.mxu0 0.0
    %4413 = vmatprep.subr.mxu0 0.0
    %4414 = vmatpush1.msra.mxu0 0.0
    %4415 = vmatprep.subr.mxu0 0.0
    %4416 = vmatpush1.msra.mxu0 0.0
    %4417 = vmatprep.subr.mxu0 0.0
    %4418 = vmatpush1.msra.mxu0 0.0
    %4419 = vmatprep.subr.mxu0 0.0
    %4420 = vmatpush1.msra.mxu0 0.0
    %4421 = vmatprep.subr.mxu0 0.0
    %4422 = vmatpush1.msra.mxu0 0.0
    %4423 = vmatprep.subr.mxu0 0.0
    %4424 = vmatpush1.msra.mxu0 0.0
    %4425 = vmatprep.subr.mxu0 0.0
    %4426 = vmatpush1.msra.mxu0 0.0
    %4427 = vmatprep.subr.mxu0 0.0
    %4428 = vmatpush1.msra.mxu0 0.0
    %4429 = vmatprep.subr.mxu0 0.0
    %4430 = vmatpush1.msra.mxu0 0.0
    %4431 = vmatprep.subr.mxu0 0.0
    %4432 = vmatpush1.msra.mxu0 0.0
    %4433 = vmatprep.mubr.f32.mxu0 0.0
    %4434 = vmatmul.mubr.f32.gmra.mrb[0].mxu0 %v4291
    %v4435 = vpop.f32.mrb[0].mxu0
    %v4436 = vadd.f32 %v231, %v4435
    %v4437 = vpop.f32.mrb[0].mxu0
    %4438 = vdwg.mxu0
    %v4439 = vxor.u32 %v4436, 2147483648
    %v4440 = vmul.f32 %v4439, 1.442695
    %v4441 = vpow.pop %v4440
    %v4442 = vadd.f32 %v4441, 1.0
    %v4443 = vrcp.pop %v4442
    %v4444 = vmul.f32 1.0, %v4443
    %4445 = vmatprep.subr.mxu0 0.0
    %4446 = vmatpush1.msra.mxu0 %v204
    %4447 = vmatprep.subr.mxu0 0.0
    %4448 = vmatpush1.msra.mxu0 %v205
    %4449 = vmatprep.subr.mxu0 0.0
    %4450 = vmatpush1.msra.mxu0 %v206
    %4451 = vmatprep.subr.mxu0 0.0
    %4452 = vmatpush1.msra.mxu0 %v207
    %4453 = vmatprep.subr.mxu0 0.0
    %4454 = vmatpush1.msra.mxu0 0.0
    %4455 = vmatprep.subr.mxu0 0.0
    %4456 = vmatpush1.msra.mxu0 0.0
    %4457 = vmatprep.subr.mxu0 0.0
    %4458 = vmatpush1.msra.mxu0 0.0
    %4459 = vmatprep.subr.mxu0 0.0
    %4460 = vmatpush1.msra.mxu0 0.0
    %4461 = vmatprep.subr.mxu0 0.0
    %4462 = vmatpush1.msra.mxu0 0.0
    %4463 = vmatprep.subr.mxu0 0.0
    %4464 = vmatpush1.msra.mxu0 0.0
    %4465 = vmatprep.subr.mxu0 0.0
    %4466 = vmatpush1.msra.mxu0 0.0
    %4467 = vmatprep.subr.mxu0 0.0
    %4468 = vmatpush1.msra.mxu0 0.0
    %4469 = vmatprep.subr.mxu0 0.0
    %4470 = vmatpush1.msra.mxu0 0.0
    %4471 = vmatprep.subr.mxu0 0.0
    %4472 = vmatpush1.msra.mxu0 0.0
    %4473 = vmatprep.subr.mxu0 0.0
    %4474 = vmatpush1.msra.mxu0 0.0
    %4475 = vmatprep.subr.mxu0 0.0
    %4476 = vmatpush1.msra.mxu0 0.0
    %4477 = vmatprep.subr.mxu0 0.0
    %4478 = vmatpush1.msra.mxu0 0.0
    %4479 = vmatprep.subr.mxu0 0.0
    %4480 = vmatpush1.msra.mxu0 0.0
    %4481 = vmatprep.subr.mxu0 0.0
    %4482 = vmatpush1.msra.mxu0 0.0
    %4483 = vmatprep.subr.mxu0 0.0
    %4484 = vmatpush1.msra.mxu0 0.0
    %4485 = vmatprep.subr.mxu0 0.0
    %4486 = vmatpush1.msra.mxu0 0.0
    %4487 = vmatprep.subr.mxu0 0.0
    %4488 = vmatpush1.msra.mxu0 0.0
    %4489 = vmatprep.subr.mxu0 0.0
    %4490 = vmatpush1.msra.mxu0 0.0
    %4491 = vmatprep.subr.mxu0 0.0
    %4492 = vmatpush1.msra.mxu0 0.0
    %4493 = vmatprep.subr.mxu0 0.0
    %4494 = vmatpush1.msra.mxu0 0.0
    %4495 = vmatprep.subr.mxu0 0.0
    %4496 = vmatpush1.msra.mxu0 0.0
    %4497 = vmatprep.subr.mxu0 0.0
    %4498 = vmatpush1.msra.mxu0 0.0
    %4499 = vmatprep.subr.mxu0 0.0
    %4500 = vmatpush1.msra.mxu0 0.0
    %4501 = vmatprep.subr.mxu0 0.0
    %4502 = vmatpush1.msra.mxu0 0.0
    %4503 = vmatprep.subr.mxu0 0.0
    %4504 = vmatpush1.msra.mxu0 0.0
    %4505 = vmatprep.subr.mxu0 0.0
    %4506 = vmatpush1.msra.mxu0 0.0
    %4507 = vmatprep.subr.mxu0 0.0
    %4508 = vmatpush1.msra.mxu0 0.0
    %4509 = vmatprep.mubr.f32.mxu0 0.0
    %4510 = vmatmul.mubr.f32.gmra.mrb[0].mxu0 %v4291
    %v4511 = vpop.f32.mrb[0].mxu0
    %v4512 = vadd.f32 %v238, %v4511
    %v4513 = vpop.f32.mrb[0].mxu0
    %4514 = vdwg.mxu0
    %4515 = vmatprep.subr.mxu0 0.0
    %4516 = vmatpush1.msra.mxu0 %v208
    %4517 = vmatprep.subr.mxu0 0.0
    %4518 = vmatpush1.msra.mxu0 %v209
    %4519 = vmatprep.subr.mxu0 0.0
    %4520 = vmatpush1.msra.mxu0 %v210
    %4521 = vmatprep.subr.mxu0 0.0
    %4522 = vmatpush1.msra.mxu0 %v211
    %4523 = vmatprep.subr.mxu0 0.0
    %4524 = vmatpush1.msra.mxu0 0.0
    %4525 = vmatprep.subr.mxu0 0.0
    %4526 = vmatpush1.msra.mxu0 0.0
    %4527 = vmatprep.subr.mxu0 0.0
    %4528 = vmatpush1.msra.mxu0 0.0
    %4529 = vmatprep.subr.mxu0 0.0
    %4530 = vmatpush1.msra.mxu0 0.0
    %4531 = vmatprep.subr.mxu0 0.0
    %4532 = vmatpush1.msra.mxu0 0.0
    %4533 = vmatprep.subr.mxu0 0.0
    %4534 = vmatpush1.msra.mxu0 0.0
    %4535 = vmatprep.subr.mxu0 0.0
    %4536 = vmatpush1.msra.mxu0 0.0
    %4537 = vmatprep.subr.mxu0 0.0
    %4538 = vmatpush1.msra.mxu0 0.0
    %4539 = vmatprep.subr.mxu0 0.0
    %4540 = vmatpush1.msra.mxu0 0.0
    %4541 = vmatprep.subr.mxu0 0.0
    %4542 = vmatpush1.msra.mxu0 0.0
    %4543 = vmatprep.subr.mxu0 0.0
    %4544 = vmatpush1.msra.mxu0 0.0
    %4545 = vmatprep.subr.mxu0 0.0
    %4546 = vmatpush1.msra.mxu0 0.0
    %4547 = vmatprep.subr.mxu0 0.0
    %4548 = vmatpush1.msra.mxu0 0.0
    %4549 = vmatprep.subr.mxu0 0.0
    %4550 = vmatpush1.msra.mxu0 0.0
    %4551 = vmatprep.subr.mxu0 0.0
    %4552 = vmatpush1.msra.mxu0 0.0
    %4553 = vmatprep.subr.mxu0 0.0
    %4554 = vmatpush1.msra.mxu0 0.0
    %4555 = vmatprep.subr.mxu0 0.0
    %4556 = vmatpush1.msra.mxu0 0.0
    %4557 = vmatprep.subr.mxu0 0.0
    %4558 = vmatpush1.msra.mxu0 0.0
    %4559 = vmatprep.subr.mxu0 0.0
    %4560 = vmatpush1.msra.mxu0 0.0
    %4561 = vmatprep.subr.mxu0 0.0
    %4562 = vmatpush1.msra.mxu0 0.0
    %4563 = vmatprep.subr.mxu0 0.0
    %4564 = vmatpush1.msra.mxu0 0.0
    %4565 = vmatprep.subr.mxu0 0.0
    %4566 = vmatpush1.msra.mxu0 0.0
    %4567 = vmatprep.subr.mxu0 0.0
    %4568 = vmatpush1.msra.mxu0 0.0
    %4569 = vmatprep.subr.mxu0 0.0
    %4570 = vmatpush1.msra.mxu0 0.0
    %4571 = vmatprep.subr.mxu0 0.0
    %4572 = vmatpush1.msra.mxu0 0.0
    %4573 = vmatprep.subr.mxu0 0.0
    %4574 = vmatpush1.msra.mxu0 0.0
    %4575 = vmatprep.subr.mxu0 0.0
    %4576 = vmatpush1.msra.mxu0 0.0
    %4577 = vmatprep.subr.mxu0 0.0
    %4578 = vmatpush1.msra.mxu0 0.0
    %4579 = vmatprep.mubr.f32.mxu0 0.0
    %4580 = vmatmul.mubr.f32.gmra.mrb[0].mxu0 %v4291
    %v4581 = vpop.f32.mrb[0].mxu0
    %v4582 = vadd.f32 %v245, %v4581
    %v4583 = vpop.f32.mrb[0].mxu0
    %4584 = vdwg.mxu0
    %v4585 = vmul.f32 %v4368, %v4582
    %v4586 = vadd.f32 %v4512, %v4585
    %v4587 = vtanh.pop %v4586
    %v4588 = vsub.f32 1.0, %v4444
    %v4589 = vmul.f32 %v4588, %v4587
    %v4590 = vmul.f32 %v4444, %v4288
    %v4591 = vadd.f32 %v4589, %v4590
    %4592 = vst.msk [vmem:[#allocation2 + $0x18] sm:$0xf] %vm2773, %v4591
    %v4594 = vsel %vm546, %v4591, 0
    %4596 = vmatprep.subr.mxu0 0.0
    %4597 = vmatpush1.msra.mxu0 %v196
    %4598 = vmatprep.subr.mxu0 0.0
    %4599 = vmatpush1.msra.mxu0 %v197
    %4600 = vmatprep.subr.mxu0 0.0
    %4601 = vmatpush1.msra.mxu0 %v198
    %4602 = vmatprep.subr.mxu0 0.0
    %4603 = vmatpush1.msra.mxu0 %v199
    %4604 = vmatprep.subr.mxu0 0.0
    %4605 = vmatpush1.msra.mxu0 0.0
    %4606 = vmatprep.subr.mxu0 0.0
    %4607 = vmatpush1.msra.mxu0 0.0
    %4608 = vmatprep.subr.mxu0 0.0
    %4609 = vmatpush1.msra.mxu0 0.0
    %4610 = vmatprep.subr.mxu0 0.0
    %4611 = vmatpush1.msra.mxu0 0.0
    %4612 = vmatprep.subr.mxu0 0.0
    %4613 = vmatpush1.msra.mxu0 0.0
    %4614 = vmatprep.subr.mxu0 0.0
    %4615 = vmatpush1.msra.mxu0 0.0
    %4616 = vmatprep.subr.mxu0 0.0
    %4617 = vmatpush1.msra.mxu0 0.0
    %4618 = vmatprep.subr.mxu0 0.0
    %4619 = vmatpush1.msra.mxu0 0.0
    %4620 = vmatprep.subr.mxu0 0.0
    %4621 = vmatpush1.msra.mxu0 0.0
    %4622 = vmatprep.subr.mxu0 0.0
    %4623 = vmatpush1.msra.mxu0 0.0
    %4624 = vmatprep.subr.mxu0 0.0
    %4625 = vmatpush1.msra.mxu0 0.0
    %4626 = vmatprep.subr.mxu0 0.0
    %4627 = vmatpush1.msra.mxu0 0.0
    %4628 = vmatprep.subr.mxu0 0.0
    %4629 = vmatpush1.msra.mxu0 0.0
    %4630 = vmatprep.subr.mxu0 0.0
    %4631 = vmatpush1.msra.mxu0 0.0
    %4632 = vmatprep.subr.mxu0 0.0
    %4633 = vmatpush1.msra.mxu0 0.0
    %4634 = vmatprep.subr.mxu0 0.0
    %4635 = vmatpush1.msra.mxu0 0.0
    %4636 = vmatprep.subr.mxu0 0.0
    %4637 = vmatpush1.msra.mxu0 0.0
    %4638 = vmatprep.subr.mxu0 0.0
    %4639 = vmatpush1.msra.mxu0 0.0
    %4640 = vmatprep.subr.mxu0 0.0
    %4641 = vmatpush1.msra.mxu0 0.0
    %4642 = vmatprep.subr.mxu0 0.0
    %4643 = vmatpush1.msra.mxu0 0.0
    %4644 = vmatprep.subr.mxu0 0.0
    %4645 = vmatpush1.msra.mxu0 0.0
    %4646 = vmatprep.subr.mxu0 0.0
    %4647 = vmatpush1.msra.mxu0 0.0
    %4648 = vmatprep.subr.mxu0 0.0
    %4649 = vmatpush1.msra.mxu0 0.0
    %4650 = vmatprep.subr.mxu0 0.0
    %4651 = vmatpush1.msra.mxu0 0.0
    %4652 = vmatprep.subr.mxu0 0.0
    %4653 = vmatpush1.msra.mxu0 0.0
    %4654 = vmatprep.subr.mxu0 0.0
    %4655 = vmatpush1.msra.mxu0 0.0
    %4656 = vmatprep.subr.mxu0 0.0
    %4657 = vmatpush1.msra.mxu0 0.0
    %4658 = vmatprep.subr.mxu0 0.0
    %4659 = vmatpush1.msra.mxu0 0.0
    %4660 = vmatprep.mubr.f32.mxu0 0.0
    %4661 = vmatmul.mubr.f32.gmra.mrb[0].mxu0 %v4594
    %v4662 = vpop.f32.mrb[0].mxu0
    %v4663 = vadd.f32 %v224, %v4662
    %v4664 = vpop.f32.mrb[0].mxu0
    %4665 = vdwg.mxu0
    %v4666 = vxor.u32 %v4663, 2147483648
    %v4667 = vmul.f32 %v4666, 1.442695
    %v4668 = vpow.pop %v4667
    %v4669 = vadd.f32 %v4668, 1.0
    %v4670 = vrcp.pop %v4669
    %v4671 = vmul.f32 1.0, %v4670
    %4672 = vmatprep.subr.mxu0 0.0
    %4673 = vmatpush1.msra.mxu0 %v200
    %4674 = vmatprep.subr.mxu0 0.0
    %4675 = vmatpush1.msra.mxu0 %v201
    %4676 = vmatprep.subr.mxu0 0.0
    %4677 = vmatpush1.msra.mxu0 %v202
    %4678 = vmatprep.subr.mxu0 0.0
    %4679 = vmatpush1.msra.mxu0 %v203
    %4680 = vmatprep.subr.mxu0 0.0
    %4681 = vmatpush1.msra.mxu0 0.0
    %4682 = vmatprep.subr.mxu0 0.0
    %4683 = vmatpush1.msra.mxu0 0.0
    %4684 = vmatprep.subr.mxu0 0.0
    %4685 = vmatpush1.msra.mxu0 0.0
    %4686 = vmatprep.subr.mxu0 0.0
    %4687 = vmatpush1.msra.mxu0 0.0
    %4688 = vmatprep.subr.mxu0 0.0
    %4689 = vmatpush1.msra.mxu0 0.0
    %4690 = vmatprep.subr.mxu0 0.0
    %4691 = vmatpush1.msra.mxu0 0.0
    %4692 = vmatprep.subr.mxu0 0.0
    %4693 = vmatpush1.msra.mxu0 0.0
    %4694 = vmatprep.subr.mxu0 0.0
    %4695 = vmatpush1.msra.mxu0 0.0
    %4696 = vmatprep.subr.mxu0 0.0
    %4697 = vmatpush1.msra.mxu0 0.0
    %4698 = vmatprep.subr.mxu0 0.0
    %4699 = vmatpush1.msra.mxu0 0.0
    %4700 = vmatprep.subr.mxu0 0.0
    %4701 = vmatpush1.msra.mxu0 0.0
    %4702 = vmatprep.subr.mxu0 0.0
    %4703 = vmatpush1.msra.mxu0 0.0
    %4704 = vmatprep.subr.mxu0 0.0
    %4705 = vmatpush1.msra.mxu0 0.0
    %4706 = vmatprep.subr.mxu0 0.0
    %4707 = vmatpush1.msra.mxu0 0.0
    %4708 = vmatprep.subr.mxu0 0.0
    %4709 = vmatpush1.msra.mxu0 0.0
    %4710 = vmatprep.subr.mxu0 0.0
    %4711 = vmatpush1.msra.mxu0 0.0
    %4712 = vmatprep.subr.mxu0 0.0
    %4713 = vmatpush1.msra.mxu0 0.0
    %4714 = vmatprep.subr.mxu0 0.0
    %4715 = vmatpush1.msra.mxu0 0.0
    %4716 = vmatprep.subr.mxu0 0.0
    %4717 = vmatpush1.msra.mxu0 0.0
    %4718 = vmatprep.subr.mxu0 0.0
    %4719 = vmatpush1.msra.mxu0 0.0
    %4720 = vmatprep.subr.mxu0 0.0
    %4721 = vmatpush1.msra.mxu0 0.0
    %4722 = vmatprep.subr.mxu0 0.0
    %4723 = vmatpush1.msra.mxu0 0.0
    %4724 = vmatprep.subr.mxu0 0.0
    %4725 = vmatpush1.msra.mxu0 0.0
    %4726 = vmatprep.subr.mxu0 0.0
    %4727 = vmatpush1.msra.mxu0 0.0
    %4728 = vmatprep.subr.mxu0 0.0
    %4729 = vmatpush1.msra.mxu0 0.0
    %4730 = vmatprep.subr.mxu0 0.0
    %4731 = vmatpush1.msra.mxu0 0.0
    %4732 = vmatprep.subr.mxu0 0.0
    %4733 = vmatpush1.msra.mxu0 0.0
    %4734 = vmatprep.subr.mxu0 0.0
    %4735 = vmatpush1.msra.mxu0 0.0
    %4736 = vmatprep.mubr.f32.mxu0 0.0
    %4737 = vmatmul.mubr.f32.gmra.mrb[0].mxu0 %v4594
    %v4738 = vpop.f32.mrb[0].mxu0
    %v4739 = vadd.f32 %v231, %v4738
    %v4740 = vpop.f32.mrb[0].mxu0
    %4741 = vdwg.mxu0
    %v4742 = vxor.u32 %v4739, 2147483648
    %v4743 = vmul.f32 %v4742, 1.442695
    %v4744 = vpow.pop %v4743
    %v4745 = vadd.f32 %v4744, 1.0
    %v4746 = vrcp.pop %v4745
    %v4747 = vmul.f32 1.0, %v4746
    %4748 = vmatprep.subr.mxu0 0.0
    %4749 = vmatpush1.msra.mxu0 %v204
    %4750 = vmatprep.subr.mxu0 0.0
    %4751 = vmatpush1.msra.mxu0 %v205
    %4752 = vmatprep.subr.mxu0 0.0
    %4753 = vmatpush1.msra.mxu0 %v206
    %4754 = vmatprep.subr.mxu0 0.0
    %4755 = vmatpush1.msra.mxu0 %v207
    %4756 = vmatprep.subr.mxu0 0.0
    %4757 = vmatpush1.msra.mxu0 0.0
    %4758 = vmatprep.subr.mxu0 0.0
    %4759 = vmatpush1.msra.mxu0 0.0
    %4760 = vmatprep.subr.mxu0 0.0
    %4761 = vmatpush1.msra.mxu0 0.0
    %4762 = vmatprep.subr.mxu0 0.0
    %4763 = vmatpush1.msra.mxu0 0.0
    %4764 = vmatprep.subr.mxu0 0.0
    %4765 = vmatpush1.msra.mxu0 0.0
    %4766 = vmatprep.subr.mxu0 0.0
    %4767 = vmatpush1.msra.mxu0 0.0
    %4768 = vmatprep.subr.mxu0 0.0
    %4769 = vmatpush1.msra.mxu0 0.0
    %4770 = vmatprep.subr.mxu0 0.0
    %4771 = vmatpush1.msra.mxu0 0.0
    %4772 = vmatprep.subr.mxu0 0.0
    %4773 = vmatpush1.msra.mxu0 0.0
    %4774 = vmatprep.subr.mxu0 0.0
    %4775 = vmatpush1.msra.mxu0 0.0
    %4776 = vmatprep.subr.mxu0 0.0
    %4777 = vmatpush1.msra.mxu0 0.0
    %4778 = vmatprep.subr.mxu0 0.0
    %4779 = vmatpush1.msra.mxu0 0.0
    %4780 = vmatprep.subr.mxu0 0.0
    %4781 = vmatpush1.msra.mxu0 0.0
    %4782 = vmatprep.subr.mxu0 0.0
    %4783 = vmatpush1.msra.mxu0 0.0
    %4784 = vmatprep.subr.mxu0 0.0
    %4785 = vmatpush1.msra.mxu0 0.0
    %4786 = vmatprep.subr.mxu0 0.0
    %4787 = vmatpush1.msra.mxu0 0.0
    %4788 = vmatprep.subr.mxu0 0.0
    %4789 = vmatpush1.msra.mxu0 0.0
    %4790 = vmatprep.subr.mxu0 0.0
    %4791 = vmatpush1.msra.mxu0 0.0
    %4792 = vmatprep.subr.mxu0 0.0
    %4793 = vmatpush1.msra.mxu0 0.0
    %4794 = vmatprep.subr.mxu0 0.0
    %4795 = vmatpush1.msra.mxu0 0.0
    %4796 = vmatprep.subr.mxu0 0.0
    %4797 = vmatpush1.msra.mxu0 0.0
    %4798 = vmatprep.subr.mxu0 0.0
    %4799 = vmatpush1.msra.mxu0 0.0
    %4800 = vmatprep.subr.mxu0 0.0
    %4801 = vmatpush1.msra.mxu0 0.0
    %4802 = vmatprep.subr.mxu0 0.0
    %4803 = vmatpush1.msra.mxu0 0.0
    %4804 = vmatprep.subr.mxu0 0.0
    %4805 = vmatpush1.msra.mxu0 0.0
    %4806 = vmatprep.subr.mxu0 0.0
    %4807 = vmatpush1.msra.mxu0 0.0
    %4808 = vmatprep.subr.mxu0 0.0
    %4809 = vmatpush1.msra.mxu0 0.0
    %4810 = vmatprep.subr.mxu0 0.0
    %4811 = vmatpush1.msra.mxu0 0.0
    %4812 = vmatprep.mubr.f32.mxu0 0.0
    %4813 = vmatmul.mubr.f32.gmra.mrb[0].mxu0 %v4594
    %v4814 = vpop.f32.mrb[0].mxu0
    %v4815 = vadd.f32 %v238, %v4814
    %v4816 = vpop.f32.mrb[0].mxu0
    %4817 = vdwg.mxu0
    %4818 = vmatprep.subr.mxu0 0.0
    %4819 = vmatpush1.msra.mxu0 %v208
    %4820 = vmatprep.subr.mxu0 0.0
    %4821 = vmatpush1.msra.mxu0 %v209
    %4822 = vmatprep.subr.mxu0 0.0
    %4823 = vmatpush1.msra.mxu0 %v210
    %4824 = vmatprep.subr.mxu0 0.0
    %4825 = vmatpush1.msra.mxu0 %v211
    %4826 = vmatprep.subr.mxu0 0.0
    %4827 = vmatpush1.msra.mxu0 0.0
    %4828 = vmatprep.subr.mxu0 0.0
    %4829 = vmatpush1.msra.mxu0 0.0
    %4830 = vmatprep.subr.mxu0 0.0
    %4831 = vmatpush1.msra.mxu0 0.0
    %4832 = vmatprep.subr.mxu0 0.0
    %4833 = vmatpush1.msra.mxu0 0.0
    %4834 = vmatprep.subr.mxu0 0.0
    %4835 = vmatpush1.msra.mxu0 0.0
    %4836 = vmatprep.subr.mxu0 0.0
    %4837 = vmatpush1.msra.mxu0 0.0
    %4838 = vmatprep.subr.mxu0 0.0
    %4839 = vmatpush1.msra.mxu0 0.0
    %4840 = vmatprep.subr.mxu0 0.0
    %4841 = vmatpush1.msra.mxu0 0.0
    %4842 = vmatprep.subr.mxu0 0.0
    %4843 = vmatpush1.msra.mxu0 0.0
    %4844 = vmatprep.subr.mxu0 0.0
    %4845 = vmatpush1.msra.mxu0 0.0
    %4846 = vmatprep.subr.mxu0 0.0
    %4847 = vmatpush1.msra.mxu0 0.0
    %4848 = vmatprep.subr.mxu0 0.0
    %4849 = vmatpush1.msra.mxu0 0.0
    %4850 = vmatprep.subr.mxu0 0.0
    %4851 = vmatpush1.msra.mxu0 0.0
    %4852 = vmatprep.subr.mxu0 0.0
    %4853 = vmatpush1.msra.mxu0 0.0
    %4854 = vmatprep.subr.mxu0 0.0
    %4855 = vmatpush1.msra.mxu0 0.0
    %4856 = vmatprep.subr.mxu0 0.0
    %4857 = vmatpush1.msra.mxu0 0.0
    %4858 = vmatprep.subr.mxu0 0.0
    %4859 = vmatpush1.msra.mxu0 0.0
    %4860 = vmatprep.subr.mxu0 0.0
    %4861 = vmatpush1.msra.mxu0 0.0
    %4862 = vmatprep.subr.mxu0 0.0
    %4863 = vmatpush1.msra.mxu0 0.0
    %4864 = vmatprep.subr.mxu0 0.0
    %4865 = vmatpush1.msra.mxu0 0.0
    %4866 = vmatprep.subr.mxu0 0.0
    %4867 = vmatpush1.msra.mxu0 0.0
    %4868 = vmatprep.subr.mxu0 0.0
    %4869 = vmatpush1.msra.mxu0 0.0
    %4870 = vmatprep.subr.mxu0 0.0
    %4871 = vmatpush1.msra.mxu0 0.0
    %4872 = vmatprep.subr.mxu0 0.0
    %4873 = vmatpush1.msra.mxu0 0.0
    %4874 = vmatprep.subr.mxu0 0.0
    %4875 = vmatpush1.msra.mxu0 0.0
    %4876 = vmatprep.subr.mxu0 0.0
    %4877 = vmatpush1.msra.mxu0 0.0
    %4878 = vmatprep.subr.mxu0 0.0
    %4879 = vmatpush1.msra.mxu0 0.0
    %4880 = vmatprep.subr.mxu0 0.0
    %4881 = vmatpush1.msra.mxu0 0.0
    %4882 = vmatprep.mubr.f32.mxu0 0.0
    %4883 = vmatmul.mubr.f32.gmra.mrb[0].mxu0 %v4594
    %v4884 = vpop.f32.mrb[0].mxu0
    %v4885 = vadd.f32 %v245, %v4884
    %v4886 = vpop.f32.mrb[0].mxu0
    %4887 = vdwg.mxu0
    %v4888 = vmul.f32 %v4671, %v4885
    %v4889 = vadd.f32 %v4815, %v4888
    %v4890 = vtanh.pop %v4889
    %v4891 = vsub.f32 1.0, %v4747
    %v4892 = vmul.f32 %v4891, %v4890
    %v4893 = vmul.f32 %v4747, %v4591
    %v4894 = vadd.f32 %v4892, %v4893
    %4895 = vst.msk [vmem:[#allocation2 + $0x1c] sm:$0xf] %vm2773, %v4894
    %v4896 = vld [vmem:[#allocation2] sm:$0xff]
    %v4897 = vld [vmem:[#allocation2 + $0x8] sm:$0xff]
    %v4898 = vld [vmem:[#allocation2 + $0x10] sm:$0xff]
    %v4899 = vld [vmem:[#allocation2 + $0x18] sm:$0xff]
    %v4900 = vld [vmem:[%s19] sm:$0xff]
    %v4901 = vld [vmem:[%s19 + $0x8] sm:$0xff]
    %v4902 = vld [vmem:[%s19 + $0x10] sm:$0xff]
    %v4903 = vld [vmem:[%s19 + $0x18] sm:$0xff]
    %v4904 = vld [vmem:[%s20] sm:$0x1]
    %v4906 = vlaneseq
    %v4907 = vshrl.u32 %v4906, 7
    %v4908 = vsub.s32 0, %v4907
    %v4909 = vrot.slane %v4904, %v4908
    %v4912 = vsel %vm546, %v4896, 0
    %v4915 = vsel %vm546, %v4897, 0
    %v4918 = vsel %vm546, %v4898, 0
    %v4921 = vsel %vm546, %v4899, 0
    %4923 = vmatprep.subr.mxu0 0.0
    %4924 = vmatpush1.msra.mxu0 %v4900
    %4925 = vmatprep.subr.mxu0 0.0
    %4926 = vmatpush1.msra.mxu0 %v4901
    %4927 = vmatprep.subr.mxu0 0.0
    %4928 = vmatpush1.msra.mxu0 %v4902
    %4929 = vmatprep.subr.mxu0 0.0
    %4930 = vmatpush1.msra.mxu0 %v4903
    %4931 = vmatprep.subr.mxu0 0.0
    %4932 = vmatpush1.msra.mxu0 0.0
    %4933 = vmatprep.subr.mxu0 0.0
    %4934 = vmatpush1.msra.mxu0 0.0
    %4935 = vmatprep.subr.mxu0 0.0
    %4936 = vmatpush1.msra.mxu0 0.0
    %4937 = vmatprep.subr.mxu0 0.0
    %4938 = vmatpush1.msra.mxu0 0.0
    %4939 = vmatprep.subr.mxu0 0.0
    %4940 = vmatpush1.msra.mxu0 0.0
    %4941 = vmatprep.subr.mxu0 0.0
    %4942 = vmatpush1.msra.mxu0 0.0
    %4943 = vmatprep.subr.mxu0 0.0
    %4944 = vmatpush1.msra.mxu0 0.0
    %4945 = vmatprep.subr.mxu0 0.0
    %4946 = vmatpush1.msra.mxu0 0.0
    %4947 = vmatprep.subr.mxu0 0.0
    %4948 = vmatpush1.msra.mxu0 0.0
    %4949 = vmatprep.subr.mxu0 0.0
    %4950 = vmatpush1.msra.mxu0 0.0
    %4951 = vmatprep.subr.mxu0 0.0
    %4952 = vmatpush1.msra.mxu0 0.0
    %4953 = vmatprep.subr.mxu0 0.0
    %4954 = vmatpush1.msra.mxu0 0.0
    %4955 = vmatprep.subr.mxu0 0.0
    %4956 = vmatpush1.msra.mxu0 0.0
    %4957 = vmatprep.subr.mxu0 0.0
    %4958 = vmatpush1.msra.mxu0 0.0
    %4959 = vmatprep.subr.mxu0 0.0
    %4960 = vmatpush1.msra.mxu0 0.0
    %4961 = vmatprep.subr.mxu0 0.0
    %4962 = vmatpush1.msra.mxu0 0.0
    %4963 = vmatprep.subr.mxu0 0.0
    %4964 = vmatpush1.msra.mxu0 0.0
    %4965 = vmatprep.subr.mxu0 0.0
    %4966 = vmatpush1.msra.mxu0 0.0
    %4967 = vmatprep.subr.mxu0 0.0
    %4968 = vmatpush1.msra.mxu0 0.0
    %4969 = vmatprep.subr.mxu0 0.0
    %4970 = vmatpush1.msra.mxu0 0.0
    %4971 = vmatprep.subr.mxu0 0.0
    %4972 = vmatpush1.msra.mxu0 0.0
    %4973 = vmatprep.subr.mxu0 0.0
    %4974 = vmatpush1.msra.mxu0 0.0
    %4975 = vmatprep.subr.mxu0 0.0
    %4976 = vmatpush1.msra.mxu0 0.0
    %4977 = vmatprep.subr.mxu0 0.0
    %4978 = vmatpush1.msra.mxu0 0.0
    %4979 = vmatprep.subr.mxu0 0.0
    %4980 = vmatpush1.msra.mxu0 0.0
    %4981 = vmatprep.subr.mxu0 0.0
    %4982 = vmatpush1.msra.mxu0 0.0
    %4983 = vmatprep.subr.mxu0 0.0
    %4984 = vmatpush1.msra.mxu0 0.0
    %4985 = vmatprep.subr.mxu0 0.0
    %4986 = vmatpush1.msra.mxu0 0.0
    %4987 = vmatprep.mubr.f32.mxu0 0.0
    %4988 = vmatmul.mubr.f32.gmra.mrb[0].mxu0 %v4912
    %v4989 = vpop.f32.mrb[0].mxu0
    %v4990 = vadd.f32 %v4909, %v4989
    %v4991 = vpop.f32.mrb[0].mxu0
    %4992 = vmatprep.mubr.f32.mxu0 0.0
    %4993 = vmatmul.mubr.f32.gmra.mrb[0].mxu0 %v4915
    %v4994 = vpop.f32.mrb[0].mxu0
    %v4995 = vadd.f32 %v4909, %v4994
    %v4996 = vpop.f32.mrb[0].mxu0
    %4997 = vmatprep.mubr.f32.mxu0 0.0
    %4998 = vmatmul.mubr.f32.gmra.mrb[0].mxu0 %v4918
    %v4999 = vpop.f32.mrb[0].mxu0
    %v5000 = vadd.f32 %v4909, %v4999
    %v5001 = vpop.f32.mrb[0].mxu0
    %5002 = vmatprep.mubr.f32.mxu0 0.0
    %5003 = vmatmul.mubr.f32.gmra.mrb[0].mxu0 %v4921
    %v5004 = vpop.f32.mrb[0].mxu0
    %v5005 = vadd.f32 %v4909, %v5004
    %v5006 = vpop.f32.mrb[0].mxu0
    %5007 = vdwg.mxu0
    %5008 = vst.msk [vmem:[%s21] sm:$0xff] %vm260, %v4990
    %5009 = vst.msk [vmem:[%s21 + $0x8] sm:$0xff] %vm260, %v4995
    %5010 = vst.msk [vmem:[%s21 + $0x10] sm:$0xff] %vm260, %v5000
    %5011 = vst.msk [vmem:[%s21 + $0x18] sm:$0xff] %vm260, %v5005
    // Predicated region
    $region122: #{tpu_custom_call.1} parent=1 // pred_check
      _
    $region123: #{tpu_custom_call.1} parent=1 // pred_check_branch
      %5013 = sbr.rel (0) target = $region125
    $region124: #{tpu_custom_call.1} parent=1 // pred_region
      _
    $region125: #{tpu_custom_call.1} parent=1 // pred_fallthru
      _
    // Predicated region
    $region126: #{tpu_custom_call.1} parent=1 // pred_check
      _
    $region127: #{tpu_custom_call.1} parent=1 // pred_check_branch
      %5015 = sbr.rel (0) target = $region129
    $region128: #{tpu_custom_call.1} parent=1 // pred_region
      _
    $region129: #{tpu_custom_call.1} parent=1 // pred_fallthru
      _
    %5016 = vsyncpa [#allocation4], 1
    %5017 = vsyncpa [#allocation6], 1
    %5018 = vsyncpa [#allocation9], 1
    %5019 = vsyncpa [#allocation12], 1
    %5020 = vsyncpa [#allocation15], 1

</llo_original>
